<compile_context>
chip_gen: v7x
topology: tpu7x:2x2x1
jax: 0.10.0
libtpu: 0.0.40
codegen_flags: <defaults>
</compile_context>

<pallas_src>
import jax
import jax.numpy as jnp
from jax.experimental import pallas as pl
from jax.experimental.pallas import tpu as pltpu

# ----- module config (TransformerEncoderLayers(__init__) args) -----
NUM_LAYERS = 2
D_MODEL = 32
NUM_HEADS = 4
FFN = 64
HEAD_DIM = D_MODEL // NUM_HEADS
LN_EPS = 1e-5
USE_FINAL_LN = True


def _layer_norm(x, gamma, beta):
    mu = jnp.mean(x, axis=-1, keepdims=True)
    var = jnp.mean(jnp.square(x - mu), axis=-1, keepdims=True)
    return (x - mu) * jax.lax.rsqrt(var + LN_EPS) * gamma + beta


def _mm(x2, w):
    # x2: (T, in) bf16, w: (out, in) bf16 (PyTorch Linear layout) -> (T, out), fp32 MXU acc.
    return jax.lax.dot_general(x2, w, (((1,), (1,)), ((), ())),
                               preferred_element_type=jnp.float32)


def encoder_kernel(x_ref, mask_ref, wqkv_ref, wout_ref, wff1_ref, wff2_ref, vec_ref, out_ref):
    BT, S, D = x_ref.shape
    T = BT * S
    H, Dh = NUM_HEADS, HEAD_DIM

    # Residual stream: all tokens of this batch tile as one (T, D) fp32 slab.
    x = x_ref[...].astype(jnp.float32).reshape(T, D)

    # Additive key-padding bias, broadcast once to (BT*H, 1, S) -- hoisted out of the layer loop.
    mask = mask_ref[...].astype(jnp.float32)                                    # (BT, 1, S)
    mask_bh = jnp.broadcast_to(mask[:, None, :, :], (BT, H, 1, S)).reshape(BT * H, 1, S)

    def split_heads(t):                                      # (T, D) fp32 -> (BT*H, S, Dh) bf16
        t4 = jnp.swapaxes(t.reshape(BT, S, H, Dh), 1, 2)     # (BT, H, S, Dh)
        return t4.reshape(BT * H, S, Dh).astype(jnp.bfloat16)

    for l in range(NUM_LAYERS):
        vp = vec_ref[l]                                      # (10, FFN) packed per-layer vectors
        b_q, b_k, b_v = vp[0:1, :D], vp[1:2, :D], vp[2:3, :D]
        b_o = vp[3:4, :D]
        g1, be1, g2, be2 = vp[4:5, :D], vp[5:6, :D], vp[6:7, :D], vp[7:8, :D]
        b_ff2 = vp[8:9, :D]
        b_ff1 = vp[9:10, :]                                  # (1, FFN)

        # ---------------- self-attention block (norm_first) ----------------
        h = _layer_norm(x, g1, be1).astype(jnp.bfloat16)
        # 1/sqrt(head_dim) is already folded into W_q / b_q in the wrapper.
        q = _mm(h, wqkv_ref[l, 0]) + b_q                     # (T, D) fp32
        k = _mm(h, wqkv_ref[l, 1]) + b_k
        v = _mm(h, wqkv_ref[l, 2]) + b_v

        qh, kh, vh = split_heads(q), split_heads(k), split_heads(v)
        s = jnp.einsum('hqd,hkd->hqk', qh, kh,
                       preferred_element_type=jnp.float32)   # (BT*H, S, S) fp32
        s = s + mask_bh                                      # key-padding bias (fp32 path)
        s = s - jnp.max(s, axis=-1, keepdims=True)           # fully-masked rows stay finite
        p = jnp.exp(s)
        denom = jnp.maximum(jnp.sum(p, axis=-1, keepdims=True), 1e-30)
        p = p * pl.reciprocal(denom, approx=True)            # softmax normalize on EUP
        ctx = jnp.einsum('hqk,hkd->hqd', p.astype(jnp.bfloat16), vh,
                         preferred_element_type=jnp.float32)  # (BT*H, S, Dh)
        ctx = jnp.swapaxes(ctx.reshape(BT, H, S, Dh), 1, 2).reshape(T, D).astype(jnp.bfloat16)

        x = x + _mm(ctx, wout_ref[l]) + b_o

        # ---------------- feed-forward block (norm_first) ----------------
        h2 = _layer_norm(x, g2, be2).astype(jnp.bfloat16)
        f = jnp.maximum(_mm(h2, wff1_ref[l]) + b_ff1, 0.0)    # ReLU, fp32
        x = x + _mm(f.astype(jnp.bfloat16), wff2_ref[l]) + b_ff2

    if USE_FINAL_LN:
        lnf = vec_ref[NUM_LAYERS]                             # extra "layer" row holds final LN
        x = _layer_norm(x, lnf[0:1, :D], lnf[1:2, :D])

    out_ref[...] = x.reshape(BT, S, D).astype(out_ref.dtype)


def _const_spec(arr):
    zeros = (0,) * arr.ndim
    return pl.BlockSpec(arr.shape, lambda b, z=zeros: z)


def transformer_encoder_pallas(x, mask_bias, packed, *, batch_tile=None):
    B, S, D = x.shape
    wqkv, wout, wff1, wff2, vec = packed
    bt = B if batch_tile is None else batch_tile     # batch_tile=B//2 on v7x to use both TCs
    assert B % bt == 0

    in_specs = [
        pl.BlockSpec((bt, S, D), lambda b: (b, 0, 0)),   # activations (bf16)
        pl.BlockSpec((bt, 1, S), lambda b: (b, 0, 0)),   # additive key-padding bias (fp32)
        _const_spec(wqkv),                               # (L, 3, D, D)    bf16
        _const_spec(wout),                               # (L, D, D)       bf16
        _const_spec(wff1),                               # (L, F, D)       bf16
        _const_spec(wff2),                               # (L, D, F)       bf16
        _const_spec(vec),                                # (L+1, 10, F)    packed fp32 vectors
    ]
    return pl.pallas_call(
        encoder_kernel,
        out_shape=jax.ShapeDtypeStruct((B, S, D), jnp.bfloat16),
        grid_spec=pltpu.PrefetchScalarGridSpec(
            num_scalar_prefetch=0,
            grid=(B // bt,),
            in_specs=in_specs,
            out_specs=pl.BlockSpec((bt, S, D), lambda b: (b, 0, 0)),
        ),
        compiler_params=pltpu.CompilerParams(
            dimension_semantics=("parallel",)),
    )(x, mask_bias, wqkv, wout, wff1, wff2, vec)


def init_params(key):
    L, D, F = NUM_LAYERS, D_MODEL, FFN
    ks = jax.random.split(key, 12)

    def nrm(k, shape, scale=0.05):
        return jax.random.normal(k, shape, jnp.float32) * scale

    wqkv = nrm(ks[0], (L, 3 * D, D))
    bqkv = nrm(ks[1], (L, 1, 3 * D), 0.01)
    wout = nrm(ks[2], (L, D, D))
    bout = nrm(ks[3], (L, 1, D), 0.01)
    g1 = 1.0 + nrm(ks[4], (L, 1, D), 0.02)
    b1 = nrm(ks[5], (L, 1, D), 0.02)
    g2 = 1.0 + nrm(ks[6], (L, 1, D), 0.02)
    b2 = nrm(ks[7], (L, 1, D), 0.02)
    wff1 = nrm(ks[8], (L, F, D))
    bff1 = nrm(ks[9], (L, 1, F), 0.01)
    wff2 = nrm(ks[10], (L, D, F))
    bff2 = nrm(ks[11], (L, 1, D), 0.01)
    gf = jnp.ones((1, D), jnp.float32)
    bf = jnp.zeros((1, D), jnp.float32)
    return (wqkv, bqkv, wout, bout, g1, b1, g2, b2,
            wff1, bff1, wff2, bff2, gf, bf)


def pack_params(params):
    """Fold attention scale into W_q/b_q, pack ALL small vectors into one slab, cast to bf16."""
    (wqkv, bqkv, wout, bout, g1, b1, g2, b2,
     wff1, bff1, wff2, bff2, gf, bf) = params
    L, D, F = NUM_LAYERS, D_MODEL, FFN
    scale = 1.0 / jnp.sqrt(jnp.float32(HEAD_DIM))

    w3 = wqkv.reshape(L, 3, D, D)
    w3 = w3.at[:, 0].multiply(scale)               # fold 1/sqrt(head_dim) into W_q
    b3 = bqkv[:, 0, :].reshape(L, 3, D)
    b3 = b3.at[:, 0].multiply(scale)               # ... and into b_q

    dvecs = jnp.stack([b3[:, 0], b3[:, 1], b3[:, 2], bout[:, 0],
                       g1[:, 0], b1[:, 0], g2[:, 0], b2[:, 0], bff2[:, 0]],
                      axis=1)                      # (L, 9, D)
    vec = jnp.zeros((L + 1, 10, F), jnp.float32)
    vec = vec.at[:L, :9, :D].set(dvecs)            # per-layer D-sized vectors
    vec = vec.at[:L, 9, :].set(bff1[:, 0, :])      # per-layer FFN bias
    vec = vec.at[L, 0, :D].set(gf[0])              # final LayerNorm gamma
    vec = vec.at[L, 1, :D].set(bf[0])              # final LayerNorm beta

    return (w3.astype(jnp.bfloat16),
            wout.astype(jnp.bfloat16),
            wff1.astype(jnp.bfloat16),
            wff2.astype(jnp.bfloat16),
            vec)


def reference_forward(x, mask_bias, params):
    (wqkv, bqkv, wout, bout, g1, b1, g2, b2,
     wff1, bff1, wff2, bff2, gf, bf) = params

    def ln(v, g, b):
        mu = v.mean(-1, keepdims=True)
        var = ((v - mu) ** 2).mean(-1, keepdims=True)
        return (v - mu) / jnp.sqrt(var + LN_EPS) * g + b

    B, S, D = x.shape
    dh = D // NUM_HEADS
    for l in range(NUM_LAYERS):
        h = ln(x, g1[l, 0], b1[l, 0])
        qkv = h @ wqkv[l].T + bqkv[l, 0]
        q, k, v = jnp.split(qkv, 3, axis=-1)
        q = q.reshape(B, S, NUM_HEADS, dh).transpose(0, 2, 1, 3)
        k = k.reshape(B, S, NUM_HEADS, dh).transpose(0, 2, 1, 3)
        v = v.reshape(B, S, NUM_HEADS, dh).transpose(0, 2, 1, 3)
        s = (q @ k.transpose(0, 1, 3, 2)) / jnp.sqrt(jnp.float32(dh))
        s = s + mask_bias[:, None, :, :]
        p = jax.nn.softmax(s, axis=-1)
        ctx = (p @ v).transpose(0, 2, 1, 3).reshape(B, S, D)
        x = x + ctx @ wout[l].T + bout[l, 0]
        h2 = ln(x, g2[l, 0], b2[l, 0])
        f = jax.nn.relu(h2 @ wff1[l].T + bff1[l, 0])
        x = x + f @ wff2[l].T + bff2[l, 0]
    if USE_FINAL_LN:
        x = ln(x, gf[0], bf[0])
    return x


if __name__ == "__main__":
    key = jax.random.PRNGKey(0)
    kx, kp = jax.random.split(key, 2)
    B, S = 2, 8
    x = jax.random.normal(kx, (B, S, D_MODEL), jnp.float32)
    params = init_params(kp)
    packed = pack_params(params)

    # key-padding mask: True == padded key position (PyTorch convention); last 2 tokens padded.
    is_padding = jnp.zeros((B, S), dtype=bool).at[:, -2:].set(True)
    mask_bias = jnp.where(is_padding, -1e30, 0.0).astype(jnp.float32)[:, None, :]  # (B, 1, S)

    # Activations cross the kernel boundary in bf16; the reference consumes the same
    # bf16-rounded input so only compute-path differences count against the tolerance.
    x_bf16 = x.astype(jnp.bfloat16)
    out = transformer_encoder_pallas(x_bf16, mask_bias, packed)
    out = jax.block_until_ready(out)

    ref = reference_forward(x_bf16.astype(jnp.float32), mask_bias, params)
    out_f32 = out.astype(jnp.float32)
    err = float(jnp.max(jnp.abs(out_f32 - ref)))
    # Tolerance covers bf16 MXU operands (fp32 accumulation), approx reciprocal in softmax,
    # and bf16 rounding of the output activations.
    assert jnp.allclose(out_f32, ref, atol=3e-2, rtol=3e-2), f"max abs err {err}"
    print("KERNEL_OK")
</pallas_src>

<mosaic_0001>
module attributes {stable_mosaic.version = 11 : i64} {
  func.func @encoder_kernel(%arg0: i32, %arg1: memref<2x8x32xbf16, #tpu.memory_space<vmem>>, %arg2: memref<2x1x8xf32, #tpu.memory_space<vmem>>, %arg3: memref<2x3x32x32xbf16, #tpu.memory_space<vmem>>, %arg4: memref<2x32x32xbf16, #tpu.memory_space<vmem>>, %arg5: memref<2x64x32xbf16, #tpu.memory_space<vmem>>, %arg6: memref<2x32x64xbf16, #tpu.memory_space<vmem>>, %arg7: memref<3x10x64xf32, #tpu.memory_space<vmem>>, %arg8: memref<2x8x32xbf16, #tpu.memory_space<vmem>>) attributes {dimension_semantics = [#tpu.dimension_semantics<parallel>], iteration_bounds = array<i64: 1>, scalar_prefetch = 0 : i64, scratch_operands = 0 : i64, tpu.core_type = #tpu.core_type<tc>, window_params = [{transform_indices = @transform_0, window_bounds = array<i64: 2, 8, 32>}, {transform_indices = @transform_1, window_bounds = array<i64: 2, 1, 8>}, {pipeline_mode = #tpu.pipeline_mode<synchronous>, transform_indices = @transform_2, window_bounds = array<i64: 2, 3, 32, 32>}, {pipeline_mode = #tpu.pipeline_mode<synchronous>, transform_indices = @transform_3, window_bounds = array<i64: 2, 32, 32>}, {pipeline_mode = #tpu.pipeline_mode<synchronous>, transform_indices = @transform_4, window_bounds = array<i64: 2, 64, 32>}, {pipeline_mode = #tpu.pipeline_mode<synchronous>, transform_indices = @transform_5, window_bounds = array<i64: 2, 32, 64>}, {pipeline_mode = #tpu.pipeline_mode<synchronous>, transform_indices = @transform_6, window_bounds = array<i64: 3, 10, 64>}, {transform_indices = @transform_7, window_bounds = array<i64: 2, 8, 32>}]} {
    %c0 = arith.constant 0 : index
    %c0_0 = arith.constant 0 : index
    %c0_1 = arith.constant 0 : index
    %0 = vector.load %arg1[%c0, %c0_0, %c0_1] : memref<2x8x32xbf16, #tpu.memory_space<vmem>>, vector<2x8x32xbf16>
    %1 = arith.extf %0 : vector<2x8x32xbf16> to vector<2x8x32xf32>
    %2 = vector.shape_cast %1 : vector<2x8x32xf32> to vector<16x32xf32>
    %c0_2 = arith.constant 0 : index
    %c0_3 = arith.constant 0 : index
    %c0_4 = arith.constant 0 : index
    %3 = vector.load %arg2[%c0_2, %c0_3, %c0_4] : memref<2x1x8xf32, #tpu.memory_space<vmem>>, vector<2x1x8xf32>
    %4 = vector.shape_cast %3 : vector<2x1x8xf32> to vector<2x1x1x8xf32>
    %5 = vector.shape_cast %4 : vector<2x1x1x8xf32> to vector<2x1x1x8xf32>
    %6 = vector.broadcast %5 : vector<2x1x1x8xf32> to vector<2x4x1x8xf32>
    %7 = vector.shape_cast %6 : vector<2x4x1x8xf32> to vector<8x1x8xf32>
    %c0_5 = arith.constant 0 : index
    %c0_6 = arith.constant 0 : index
    %c0_7 = arith.constant 0 : index
    %8 = vector.load %arg7[%c0_5, %c0_6, %c0_7] : memref<3x10x64xf32, #tpu.memory_space<vmem>>, vector<1x10x64xf32>
    %9 = vector.shape_cast %8 : vector<1x10x64xf32> to vector<10x64xf32>
    %10 = vector.extract_strided_slice %9 {offsets = [0, 0], sizes = [1, 32], strides = [1, 1]} : vector<10x64xf32> to vector<1x32xf32>
    %11 = vector.extract_strided_slice %9 {offsets = [1, 0], sizes = [1, 32], strides = [1, 1]} : vector<10x64xf32> to vector<1x32xf32>
    %12 = vector.extract_strided_slice %9 {offsets = [2, 0], sizes = [1, 32], strides = [1, 1]} : vector<10x64xf32> to vector<1x32xf32>
    %13 = vector.extract_strided_slice %9 {offsets = [3, 0], sizes = [1, 32], strides = [1, 1]} : vector<10x64xf32> to vector<1x32xf32>
    %14 = vector.extract_strided_slice %9 {offsets = [4, 0], sizes = [1, 32], strides = [1, 1]} : vector<10x64xf32> to vector<1x32xf32>
    %15 = vector.extract_strided_slice %9 {offsets = [5, 0], sizes = [1, 32], strides = [1, 1]} : vector<10x64xf32> to vector<1x32xf32>
    %16 = vector.extract_strided_slice %9 {offsets = [6, 0], sizes = [1, 32], strides = [1, 1]} : vector<10x64xf32> to vector<1x32xf32>
    %17 = vector.extract_strided_slice %9 {offsets = [7, 0], sizes = [1, 32], strides = [1, 1]} : vector<10x64xf32> to vector<1x32xf32>
    %18 = vector.extract_strided_slice %9 {offsets = [8, 0], sizes = [1, 32], strides = [1, 1]} : vector<10x64xf32> to vector<1x32xf32>
    %19 = vector.extract_strided_slice %9 {offsets = [9, 0], sizes = [1, 64], strides = [1, 1]} : vector<10x64xf32> to vector<1x64xf32>
    %cst = arith.constant dense<0.000000e+00> : vector<16xf32>
    %20 = vector.multi_reduction <add>, %2, %cst [1] : vector<16x32xf32> to vector<16xf32>
    %21 = vector.shape_cast %20 : vector<16xf32> to vector<16x1xf32>
    %cst_8 = arith.constant 3.200000e+01 : f32
    %22 = vector.broadcast %cst_8 : f32 to vector<16x1xf32>
    %23 = arith.divf %21, %22 : vector<16x1xf32>
    %24 = vector.broadcast %23 : vector<16x1xf32> to vector<16x32xf32>
    %25 = arith.subf %2, %24 : vector<16x32xf32>
    %26 = arith.mulf %25, %25 : vector<16x32xf32>
    %cst_9 = arith.constant dense<0.000000e+00> : vector<16xf32>
    %27 = vector.multi_reduction <add>, %26, %cst_9 [1] : vector<16x32xf32> to vector<16xf32>
    %28 = vector.shape_cast %27 : vector<16xf32> to vector<16x1xf32>
    %cst_10 = arith.constant 3.200000e+01 : f32
    %29 = vector.broadcast %cst_10 : f32 to vector<16x1xf32>
    %30 = arith.divf %28, %29 : vector<16x1xf32>
    %31 = vector.broadcast %23 : vector<16x1xf32> to vector<16x32xf32>
    %32 = arith.subf %2, %31 : vector<16x32xf32>
    %cst_11 = arith.constant 9.99999974E-6 : f32
    %33 = vector.broadcast %cst_11 : f32 to vector<16x1xf32>
    %34 = arith.addf %30, %33 : vector<16x1xf32>
    %35 = math.rsqrt %34 : vector<16x1xf32>
    %36 = vector.broadcast %35 : vector<16x1xf32> to vector<16x32xf32>
    %37 = arith.mulf %32, %36 : vector<16x32xf32>
    %38 = vector.broadcast %14 : vector<1x32xf32> to vector<16x32xf32>
    %39 = arith.mulf %37, %38 : vector<16x32xf32>
    %40 = vector.broadcast %15 : vector<1x32xf32> to vector<16x32xf32>
    %41 = arith.addf %39, %40 : vector<16x32xf32>
    %42 = arith.truncf %41 : vector<16x32xf32> to vector<16x32xbf16>
    %c0_12 = arith.constant 0 : index
    %c0_13 = arith.constant 0 : index
    %c0_14 = arith.constant 0 : index
    %c0_15 = arith.constant 0 : index
    %43 = vector.load %arg3[%c0_12, %c0_13, %c0_14, %c0_15] : memref<2x3x32x32xbf16, #tpu.memory_space<vmem>>, vector<1x1x32x32xbf16>
    %44 = vector.shape_cast %43 : vector<1x1x32x32xbf16> to vector<32x32xbf16>
    %cst_16 = arith.constant dense<0.000000e+00> : vector<16x32xf32>
    %45 = tpu.matmul %42, %44, %cst_16 {dimension_numbers = #tpu.dot_dimension_numbers<[1], [1], [0], [0], [0, 0, 1, 0], [], []>} : vector<16x32xbf16>, vector<32x32xbf16>, vector<16x32xf32> -> vector<16x32xf32>
    %46 = vector.broadcast %10 : vector<1x32xf32> to vector<16x32xf32>
    %47 = arith.addf %45, %46 : vector<16x32xf32>
    %c0_17 = arith.constant 0 : index
    %c1 = arith.constant 1 : index
    %c0_18 = arith.constant 0 : index
    %c0_19 = arith.constant 0 : index
    %48 = vector.load %arg3[%c0_17, %c1, %c0_18, %c0_19] : memref<2x3x32x32xbf16, #tpu.memory_space<vmem>>, vector<1x1x32x32xbf16>
    %49 = vector.shape_cast %48 : vector<1x1x32x32xbf16> to vector<32x32xbf16>
    %cst_20 = arith.constant dense<0.000000e+00> : vector<16x32xf32>
    %50 = tpu.matmul %42, %49, %cst_20 {dimension_numbers = #tpu.dot_dimension_numbers<[1], [1], [0], [0], [0, 0, 1, 0], [], []>} : vector<16x32xbf16>, vector<32x32xbf16>, vector<16x32xf32> -> vector<16x32xf32>
    %51 = vector.broadcast %11 : vector<1x32xf32> to vector<16x32xf32>
    %52 = arith.addf %50, %51 : vector<16x32xf32>
    %c0_21 = arith.constant 0 : index
    %c2 = arith.constant 2 : index
    %c0_22 = arith.constant 0 : index
    %c0_23 = arith.constant 0 : index
    %53 = vector.load %arg3[%c0_21, %c2, %c0_22, %c0_23] : memref<2x3x32x32xbf16, #tpu.memory_space<vmem>>, vector<1x1x32x32xbf16>
    %54 = vector.shape_cast %53 : vector<1x1x32x32xbf16> to vector<32x32xbf16>
    %cst_24 = arith.constant dense<0.000000e+00> : vector<16x32xf32>
    %55 = tpu.matmul %42, %54, %cst_24 {dimension_numbers = #tpu.dot_dimension_numbers<[1], [1], [0], [0], [0, 0, 1, 0], [], []>} : vector<16x32xbf16>, vector<32x32xbf16>, vector<16x32xf32> -> vector<16x32xf32>
    %56 = vector.broadcast %12 : vector<1x32xf32> to vector<16x32xf32>
    %57 = arith.addf %55, %56 : vector<16x32xf32>
    %58 = vector.shape_cast %47 : vector<16x32xf32> to vector<2x8x4x8xf32>
    %59 = tpu.transpose %58, [0, 2, 1, 3] : vector<2x8x4x8xf32> -> vector<2x4x8x8xf32>
    %60 = vector.shape_cast %59 : vector<2x4x8x8xf32> to vector<8x8x8xf32>
    %61 = arith.truncf %60 : vector<8x8x8xf32> to vector<8x8x8xbf16>
    %62 = vector.shape_cast %52 : vector<16x32xf32> to vector<2x8x4x8xf32>
    %63 = tpu.transpose %62, [0, 2, 1, 3] : vector<2x8x4x8xf32> -> vector<2x4x8x8xf32>
    %64 = vector.shape_cast %63 : vector<2x4x8x8xf32> to vector<8x8x8xf32>
    %65 = arith.truncf %64 : vector<8x8x8xf32> to vector<8x8x8xbf16>
    %66 = vector.shape_cast %57 : vector<16x32xf32> to vector<2x8x4x8xf32>
    %67 = tpu.transpose %66, [0, 2, 1, 3] : vector<2x8x4x8xf32> -> vector<2x4x8x8xf32>
    %68 = vector.shape_cast %67 : vector<2x4x8x8xf32> to vector<8x8x8xf32>
    %69 = arith.truncf %68 : vector<8x8x8xf32> to vector<8x8x8xbf16>
    "tpu.trace_start"() <{level = 10 : i32, message = "hqd,hkd->hqk"}> : () -> ()
    %cst_25 = arith.constant dense<0.000000e+00> : vector<8x8x8xf32>
    %70 = tpu.matmul %61, %65, %cst_25 {dimension_numbers = #tpu.dot_dimension_numbers<[2], [2], [1], [1], [0, 0, 0, 1, 1, 1], [0], [0]>} : vector<8x8x8xbf16>, vector<8x8x8xbf16>, vector<8x8x8xf32> -> vector<8x8x8xf32>
    "tpu.trace_stop"() : () -> ()
    %71 = vector.broadcast %7 : vector<8x1x8xf32> to vector<8x8x8xf32>
    %72 = arith.addf %70, %71 : vector<8x8x8xf32>
    %cst_26 = arith.constant dense<0xFF800000> : vector<8x8xf32>
    %73 = vector.multi_reduction <maximumf>, %72, %cst_26 [2] : vector<8x8x8xf32> to vector<8x8xf32>
    %74 = vector.shape_cast %73 : vector<8x8xf32> to vector<8x8x1xf32>
    %75 = vector.broadcast %74 : vector<8x8x1xf32> to vector<8x8x8xf32>
    %76 = arith.subf %72, %75 : vector<8x8x8xf32>
    %77 = math.exp %76 : vector<8x8x8xf32>
    %cst_27 = arith.constant dense<0.000000e+00> : vector<8x8xf32>
    %78 = vector.multi_reduction <add>, %77, %cst_27 [2] : vector<8x8x8xf32> to vector<8x8xf32>
    %79 = vector.shape_cast %78 : vector<8x8xf32> to vector<8x8x1xf32>
    %cst_28 = arith.constant 1.000000e-30 : f32
    %80 = vector.broadcast %cst_28 : f32 to vector<8x8x1xf32>
    %81 = arith.maximumf %79, %80 : vector<8x8x1xf32>
    %82 = tpu.reciprocal %81 {approx = true} : vector<8x8x1xf32> -> vector<8x8x1xf32>
    %83 = vector.broadcast %82 : vector<8x8x1xf32> to vector<8x8x8xf32>
    %84 = arith.mulf %77, %83 : vector<8x8x8xf32>
    %85 = arith.truncf %84 : vector<8x8x8xf32> to vector<8x8x8xbf16>
    "tpu.trace_start"() <{level = 10 : i32, message = "hqk,hkd->hqd"}> : () -> ()
    %cst_29 = arith.constant dense<0.000000e+00> : vector<8x8x8xf32>
    %86 = tpu.matmul %85, %69, %cst_29 {dimension_numbers = #tpu.dot_dimension_numbers<[2], [1], [1], [2], [0, 0, 0, 1, 1, 2], [0], [0]>} : vector<8x8x8xbf16>, vector<8x8x8xbf16>, vector<8x8x8xf32> -> vector<8x8x8xf32>
    "tpu.trace_stop"() : () -> ()
    %87 = vector.shape_cast %86 : vector<8x8x8xf32> to vector<2x4x8x8xf32>
    %88 = tpu.transpose %87, [0, 2, 1, 3] : vector<2x4x8x8xf32> -> vector<2x8x4x8xf32>
    %89 = vector.shape_cast %88 : vector<2x8x4x8xf32> to vector<16x32xf32>
    %90 = arith.truncf %89 : vector<16x32xf32> to vector<16x32xbf16>
    %c0_30 = arith.constant 0 : index
    %c0_31 = arith.constant 0 : index
    %c0_32 = arith.constant 0 : index
    %91 = vector.load %arg4[%c0_30, %c0_31, %c0_32] : memref<2x32x32xbf16, #tpu.memory_space<vmem>>, vector<1x32x32xbf16>
    %92 = vector.shape_cast %91 : vector<1x32x32xbf16> to vector<32x32xbf16>
    %cst_33 = arith.constant dense<0.000000e+00> : vector<16x32xf32>
    %93 = tpu.matmul %90, %92, %cst_33 {dimension_numbers = #tpu.dot_dimension_numbers<[1], [1], [0], [0], [0, 0, 1, 0], [], []>} : vector<16x32xbf16>, vector<32x32xbf16>, vector<16x32xf32> -> vector<16x32xf32>
    %94 = arith.addf %2, %93 : vector<16x32xf32>
    %95 = vector.broadcast %13 : vector<1x32xf32> to vector<16x32xf32>
    %96 = arith.addf %94, %95 : vector<16x32xf32>
    %cst_34 = arith.constant dense<0.000000e+00> : vector<16xf32>
    %97 = vector.multi_reduction <add>, %96, %cst_34 [1] : vector<16x32xf32> to vector<16xf32>
    %98 = vector.shape_cast %97 : vector<16xf32> to vector<16x1xf32>
    %cst_35 = arith.constant 3.200000e+01 : f32
    %99 = vector.broadcast %cst_35 : f32 to vector<16x1xf32>
    %100 = arith.divf %98, %99 : vector<16x1xf32>
    %101 = vector.broadcast %100 : vector<16x1xf32> to vector<16x32xf32>
    %102 = arith.subf %96, %101 : vector<16x32xf32>
    %103 = arith.mulf %102, %102 : vector<16x32xf32>
    %cst_36 = arith.constant dense<0.000000e+00> : vector<16xf32>
    %104 = vector.multi_reduction <add>, %103, %cst_36 [1] : vector<16x32xf32> to vector<16xf32>
    %105 = vector.shape_cast %104 : vector<16xf32> to vector<16x1xf32>
    %cst_37 = arith.constant 3.200000e+01 : f32
    %106 = vector.broadcast %cst_37 : f32 to vector<16x1xf32>
    %107 = arith.divf %105, %106 : vector<16x1xf32>
    %108 = vector.broadcast %100 : vector<16x1xf32> to vector<16x32xf32>
    %109 = arith.subf %96, %108 : vector<16x32xf32>
    %cst_38 = arith.constant 9.99999974E-6 : f32
    %110 = vector.broadcast %cst_38 : f32 to vector<16x1xf32>
    %111 = arith.addf %107, %110 : vector<16x1xf32>
    %112 = math.rsqrt %111 : vector<16x1xf32>
    %113 = vector.broadcast %112 : vector<16x1xf32> to vector<16x32xf32>
    %114 = arith.mulf %109, %113 : vector<16x32xf32>
    %115 = vector.broadcast %16 : vector<1x32xf32> to vector<16x32xf32>
    %116 = arith.mulf %114, %115 : vector<16x32xf32>
    %117 = vector.broadcast %17 : vector<1x32xf32> to vector<16x32xf32>
    %118 = arith.addf %116, %117 : vector<16x32xf32>
    %119 = arith.truncf %118 : vector<16x32xf32> to vector<16x32xbf16>
    %c0_39 = arith.constant 0 : index
    %c0_40 = arith.constant 0 : index
    %c0_41 = arith.constant 0 : index
    %120 = vector.load %arg5[%c0_39, %c0_40, %c0_41] : memref<2x64x32xbf16, #tpu.memory_space<vmem>>, vector<1x64x32xbf16>
    %121 = vector.shape_cast %120 : vector<1x64x32xbf16> to vector<64x32xbf16>
    %cst_42 = arith.constant dense<0.000000e+00> : vector<16x64xf32>
    %122 = tpu.matmul %119, %121, %cst_42 {dimension_numbers = #tpu.dot_dimension_numbers<[1], [1], [0], [0], [0, 0, 1, 0], [], []>} : vector<16x32xbf16>, vector<64x32xbf16>, vector<16x64xf32> -> vector<16x64xf32>
    %123 = vector.broadcast %19 : vector<1x64xf32> to vector<16x64xf32>
    %124 = arith.addf %122, %123 : vector<16x64xf32>
    %cst_43 = arith.constant 0.000000e+00 : f32
    %125 = vector.broadcast %cst_43 : f32 to vector<16x64xf32>
    %126 = arith.maximumf %124, %125 : vector<16x64xf32>
    %127 = arith.truncf %126 : vector<16x64xf32> to vector<16x64xbf16>
    %c0_44 = arith.constant 0 : index
    %c0_45 = arith.constant 0 : index
    %c0_46 = arith.constant 0 : index
    %128 = vector.load %arg6[%c0_44, %c0_45, %c0_46] : memref<2x32x64xbf16, #tpu.memory_space<vmem>>, vector<1x32x64xbf16>
    %129 = vector.shape_cast %128 : vector<1x32x64xbf16> to vector<32x64xbf16>
    %cst_47 = arith.constant dense<0.000000e+00> : vector<16x32xf32>
    %130 = tpu.matmul %127, %129, %cst_47 {dimension_numbers = #tpu.dot_dimension_numbers<[1], [1], [0], [0], [0, 0, 1, 0], [], []>} : vector<16x64xbf16>, vector<32x64xbf16>, vector<16x32xf32> -> vector<16x32xf32>
    %131 = arith.addf %96, %130 : vector<16x32xf32>
    %132 = vector.broadcast %18 : vector<1x32xf32> to vector<16x32xf32>
    %133 = arith.addf %131, %132 : vector<16x32xf32>
    %c1_48 = arith.constant 1 : index
    %c0_49 = arith.constant 0 : index
    %c0_50 = arith.constant 0 : index
    %134 = vector.load %arg7[%c1_48, %c0_49, %c0_50] : memref<3x10x64xf32, #tpu.memory_space<vmem>>, vector<1x10x64xf32>
    %135 = vector.shape_cast %134 : vector<1x10x64xf32> to vector<10x64xf32>
    %136 = vector.extract_strided_slice %135 {offsets = [0, 0], sizes = [1, 32], strides = [1, 1]} : vector<10x64xf32> to vector<1x32xf32>
    %137 = vector.extract_strided_slice %135 {offsets = [1, 0], sizes = [1, 32], strides = [1, 1]} : vector<10x64xf32> to vector<1x32xf32>
    %138 = vector.extract_strided_slice %135 {offsets = [2, 0], sizes = [1, 32], strides = [1, 1]} : vector<10x64xf32> to vector<1x32xf32>
    %139 = vector.extract_strided_slice %135 {offsets = [3, 0], sizes = [1, 32], strides = [1, 1]} : vector<10x64xf32> to vector<1x32xf32>
    %140 = vector.extract_strided_slice %135 {offsets = [4, 0], sizes = [1, 32], strides = [1, 1]} : vector<10x64xf32> to vector<1x32xf32>
    %141 = vector.extract_strided_slice %135 {offsets = [5, 0], sizes = [1, 32], strides = [1, 1]} : vector<10x64xf32> to vector<1x32xf32>
    %142 = vector.extract_strided_slice %135 {offsets = [6, 0], sizes = [1, 32], strides = [1, 1]} : vector<10x64xf32> to vector<1x32xf32>
    %143 = vector.extract_strided_slice %135 {offsets = [7, 0], sizes = [1, 32], strides = [1, 1]} : vector<10x64xf32> to vector<1x32xf32>
    %144 = vector.extract_strided_slice %135 {offsets = [8, 0], sizes = [1, 32], strides = [1, 1]} : vector<10x64xf32> to vector<1x32xf32>
    %145 = vector.extract_strided_slice %135 {offsets = [9, 0], sizes = [1, 64], strides = [1, 1]} : vector<10x64xf32> to vector<1x64xf32>
    %cst_51 = arith.constant dense<0.000000e+00> : vector<16xf32>
    %146 = vector.multi_reduction <add>, %133, %cst_51 [1] : vector<16x32xf32> to vector<16xf32>
    %147 = vector.shape_cast %146 : vector<16xf32> to vector<16x1xf32>
    %cst_52 = arith.constant 3.200000e+01 : f32
    %148 = vector.broadcast %cst_52 : f32 to vector<16x1xf32>
    %149 = arith.divf %147, %148 : vector<16x1xf32>
    %150 = vector.broadcast %149 : vector<16x1xf32> to vector<16x32xf32>
    %151 = arith.subf %133, %150 : vector<16x32xf32>
    %152 = arith.mulf %151, %151 : vector<16x32xf32>
    %cst_53 = arith.constant dense<0.000000e+00> : vector<16xf32>
    %153 = vector.multi_reduction <add>, %152, %cst_53 [1] : vector<16x32xf32> to vector<16xf32>
    %154 = vector.shape_cast %153 : vector<16xf32> to vector<16x1xf32>
    %cst_54 = arith.constant 3.200000e+01 : f32
    %155 = vector.broadcast %cst_54 : f32 to vector<16x1xf32>
    %156 = arith.divf %154, %155 : vector<16x1xf32>
    %157 = vector.broadcast %149 : vector<16x1xf32> to vector<16x32xf32>
    %158 = arith.subf %133, %157 : vector<16x32xf32>
    %cst_55 = arith.constant 9.99999974E-6 : f32
    %159 = vector.broadcast %cst_55 : f32 to vector<16x1xf32>
    %160 = arith.addf %156, %159 : vector<16x1xf32>
    %161 = math.rsqrt %160 : vector<16x1xf32>
    %162 = vector.broadcast %161 : vector<16x1xf32> to vector<16x32xf32>
    %163 = arith.mulf %158, %162 : vector<16x32xf32>
    %164 = vector.broadcast %140 : vector<1x32xf32> to vector<16x32xf32>
    %165 = arith.mulf %163, %164 : vector<16x32xf32>
    %166 = vector.broadcast %141 : vector<1x32xf32> to vector<16x32xf32>
    %167 = arith.addf %165, %166 : vector<16x32xf32>
    %168 = arith.truncf %167 : vector<16x32xf32> to vector<16x32xbf16>
    %c1_56 = arith.constant 1 : index
    %c0_57 = arith.constant 0 : index
    %c0_58 = arith.constant 0 : index
    %c0_59 = arith.constant 0 : index
    %169 = vector.load %arg3[%c1_56, %c0_57, %c0_58, %c0_59] : memref<2x3x32x32xbf16, #tpu.memory_space<vmem>>, vector<1x1x32x32xbf16>
    %170 = vector.shape_cast %169 : vector<1x1x32x32xbf16> to vector<32x32xbf16>
    %cst_60 = arith.constant dense<0.000000e+00> : vector<16x32xf32>
    %171 = tpu.matmul %168, %170, %cst_60 {dimension_numbers = #tpu.dot_dimension_numbers<[1], [1], [0], [0], [0, 0, 1, 0], [], []>} : vector<16x32xbf16>, vector<32x32xbf16>, vector<16x32xf32> -> vector<16x32xf32>
    %172 = vector.broadcast %136 : vector<1x32xf32> to vector<16x32xf32>
    %173 = arith.addf %171, %172 : vector<16x32xf32>
    %c1_61 = arith.constant 1 : index
    %c1_62 = arith.constant 1 : index
    %c0_63 = arith.constant 0 : index
    %c0_64 = arith.constant 0 : index
    %174 = vector.load %arg3[%c1_61, %c1_62, %c0_63, %c0_64] : memref<2x3x32x32xbf16, #tpu.memory_space<vmem>>, vector<1x1x32x32xbf16>
    %175 = vector.shape_cast %174 : vector<1x1x32x32xbf16> to vector<32x32xbf16>
    %cst_65 = arith.constant dense<0.000000e+00> : vector<16x32xf32>
    %176 = tpu.matmul %168, %175, %cst_65 {dimension_numbers = #tpu.dot_dimension_numbers<[1], [1], [0], [0], [0, 0, 1, 0], [], []>} : vector<16x32xbf16>, vector<32x32xbf16>, vector<16x32xf32> -> vector<16x32xf32>
    %177 = vector.broadcast %137 : vector<1x32xf32> to vector<16x32xf32>
    %178 = arith.addf %176, %177 : vector<16x32xf32>
    %c1_66 = arith.constant 1 : index
    %c2_67 = arith.constant 2 : index
    %c0_68 = arith.constant 0 : index
    %c0_69 = arith.constant 0 : index
    %179 = vector.load %arg3[%c1_66, %c2_67, %c0_68, %c0_69] : memref<2x3x32x32xbf16, #tpu.memory_space<vmem>>, vector<1x1x32x32xbf16>
    %180 = vector.shape_cast %179 : vector<1x1x32x32xbf16> to vector<32x32xbf16>
    %cst_70 = arith.constant dense<0.000000e+00> : vector<16x32xf32>
    %181 = tpu.matmul %168, %180, %cst_70 {dimension_numbers = #tpu.dot_dimension_numbers<[1], [1], [0], [0], [0, 0, 1, 0], [], []>} : vector<16x32xbf16>, vector<32x32xbf16>, vector<16x32xf32> -> vector<16x32xf32>
    %182 = vector.broadcast %138 : vector<1x32xf32> to vector<16x32xf32>
    %183 = arith.addf %181, %182 : vector<16x32xf32>
    %184 = vector.shape_cast %173 : vector<16x32xf32> to vector<2x8x4x8xf32>
    %185 = tpu.transpose %184, [0, 2, 1, 3] : vector<2x8x4x8xf32> -> vector<2x4x8x8xf32>
    %186 = vector.shape_cast %185 : vector<2x4x8x8xf32> to vector<8x8x8xf32>
    %187 = arith.truncf %186 : vector<8x8x8xf32> to vector<8x8x8xbf16>
    %188 = vector.shape_cast %178 : vector<16x32xf32> to vector<2x8x4x8xf32>
    %189 = tpu.transpose %188, [0, 2, 1, 3] : vector<2x8x4x8xf32> -> vector<2x4x8x8xf32>
    %190 = vector.shape_cast %189 : vector<2x4x8x8xf32> to vector<8x8x8xf32>
    %191 = arith.truncf %190 : vector<8x8x8xf32> to vector<8x8x8xbf16>
    %192 = vector.shape_cast %183 : vector<16x32xf32> to vector<2x8x4x8xf32>
    %193 = tpu.transpose %192, [0, 2, 1, 3] : vector<2x8x4x8xf32> -> vector<2x4x8x8xf32>
    %194 = vector.shape_cast %193 : vector<2x4x8x8xf32> to vector<8x8x8xf32>
    %195 = arith.truncf %194 : vector<8x8x8xf32> to vector<8x8x8xbf16>
    "tpu.trace_start"() <{level = 10 : i32, message = "hqd,hkd->hqk"}> : () -> ()
    %cst_71 = arith.constant dense<0.000000e+00> : vector<8x8x8xf32>
    %196 = tpu.matmul %187, %191, %cst_71 {dimension_numbers = #tpu.dot_dimension_numbers<[2], [2], [1], [1], [0, 0, 0, 1, 1, 1], [0], [0]>} : vector<8x8x8xbf16>, vector<8x8x8xbf16>, vector<8x8x8xf32> -> vector<8x8x8xf32>
    "tpu.trace_stop"() : () -> ()
    %197 = vector.broadcast %7 : vector<8x1x8xf32> to vector<8x8x8xf32>
    %198 = arith.addf %196, %197 : vector<8x8x8xf32>
    %cst_72 = arith.constant dense<0xFF800000> : vector<8x8xf32>
    %199 = vector.multi_reduction <maximumf>, %198, %cst_72 [2] : vector<8x8x8xf32> to vector<8x8xf32>
    %200 = vector.shape_cast %199 : vector<8x8xf32> to vector<8x8x1xf32>
    %201 = vector.broadcast %200 : vector<8x8x1xf32> to vector<8x8x8xf32>
    %202 = arith.subf %198, %201 : vector<8x8x8xf32>
    %203 = math.exp %202 : vector<8x8x8xf32>
    %cst_73 = arith.constant dense<0.000000e+00> : vector<8x8xf32>
    %204 = vector.multi_reduction <add>, %203, %cst_73 [2] : vector<8x8x8xf32> to vector<8x8xf32>
    %205 = vector.shape_cast %204 : vector<8x8xf32> to vector<8x8x1xf32>
    %cst_74 = arith.constant 1.000000e-30 : f32
    %206 = vector.broadcast %cst_74 : f32 to vector<8x8x1xf32>
    %207 = arith.maximumf %205, %206 : vector<8x8x1xf32>
    %208 = tpu.reciprocal %207 {approx = true} : vector<8x8x1xf32> -> vector<8x8x1xf32>
    %209 = vector.broadcast %208 : vector<8x8x1xf32> to vector<8x8x8xf32>
    %210 = arith.mulf %203, %209 : vector<8x8x8xf32>
    %211 = arith.truncf %210 : vector<8x8x8xf32> to vector<8x8x8xbf16>
    "tpu.trace_start"() <{level = 10 : i32, message = "hqk,hkd->hqd"}> : () -> ()
    %cst_75 = arith.constant dense<0.000000e+00> : vector<8x8x8xf32>
    %212 = tpu.matmul %211, %195, %cst_75 {dimension_numbers = #tpu.dot_dimension_numbers<[2], [1], [1], [2], [0, 0, 0, 1, 1, 2], [0], [0]>} : vector<8x8x8xbf16>, vector<8x8x8xbf16>, vector<8x8x8xf32> -> vector<8x8x8xf32>
    "tpu.trace_stop"() : () -> ()
    %213 = vector.shape_cast %212 : vector<8x8x8xf32> to vector<2x4x8x8xf32>
    %214 = tpu.transpose %213, [0, 2, 1, 3] : vector<2x4x8x8xf32> -> vector<2x8x4x8xf32>
    %215 = vector.shape_cast %214 : vector<2x8x4x8xf32> to vector<16x32xf32>
    %216 = arith.truncf %215 : vector<16x32xf32> to vector<16x32xbf16>
    %c1_76 = arith.constant 1 : index
    %c0_77 = arith.constant 0 : index
    %c0_78 = arith.constant 0 : index
    %217 = vector.load %arg4[%c1_76, %c0_77, %c0_78] : memref<2x32x32xbf16, #tpu.memory_space<vmem>>, vector<1x32x32xbf16>
    %218 = vector.shape_cast %217 : vector<1x32x32xbf16> to vector<32x32xbf16>
    %cst_79 = arith.constant dense<0.000000e+00> : vector<16x32xf32>
    %219 = tpu.matmul %216, %218, %cst_79 {dimension_numbers = #tpu.dot_dimension_numbers<[1], [1], [0], [0], [0, 0, 1, 0], [], []>} : vector<16x32xbf16>, vector<32x32xbf16>, vector<16x32xf32> -> vector<16x32xf32>
    %220 = arith.addf %133, %219 : vector<16x32xf32>
    %221 = vector.broadcast %139 : vector<1x32xf32> to vector<16x32xf32>
    %222 = arith.addf %220, %221 : vector<16x32xf32>
    %cst_80 = arith.constant dense<0.000000e+00> : vector<16xf32>
    %223 = vector.multi_reduction <add>, %222, %cst_80 [1] : vector<16x32xf32> to vector<16xf32>
    %224 = vector.shape_cast %223 : vector<16xf32> to vector<16x1xf32>
    %cst_81 = arith.constant 3.200000e+01 : f32
    %225 = vector.broadcast %cst_81 : f32 to vector<16x1xf32>
    %226 = arith.divf %224, %225 : vector<16x1xf32>
    %227 = vector.broadcast %226 : vector<16x1xf32> to vector<16x32xf32>
    %228 = arith.subf %222, %227 : vector<16x32xf32>
    %229 = arith.mulf %228, %228 : vector<16x32xf32>
    %cst_82 = arith.constant dense<0.000000e+00> : vector<16xf32>
    %230 = vector.multi_reduction <add>, %229, %cst_82 [1] : vector<16x32xf32> to vector<16xf32>
    %231 = vector.shape_cast %230 : vector<16xf32> to vector<16x1xf32>
    %cst_83 = arith.constant 3.200000e+01 : f32
    %232 = vector.broadcast %cst_83 : f32 to vector<16x1xf32>
    %233 = arith.divf %231, %232 : vector<16x1xf32>
    %234 = vector.broadcast %226 : vector<16x1xf32> to vector<16x32xf32>
    %235 = arith.subf %222, %234 : vector<16x32xf32>
    %cst_84 = arith.constant 9.99999974E-6 : f32
    %236 = vector.broadcast %cst_84 : f32 to vector<16x1xf32>
    %237 = arith.addf %233, %236 : vector<16x1xf32>
    %238 = math.rsqrt %237 : vector<16x1xf32>
    %239 = vector.broadcast %238 : vector<16x1xf32> to vector<16x32xf32>
    %240 = arith.mulf %235, %239 : vector<16x32xf32>
    %241 = vector.broadcast %142 : vector<1x32xf32> to vector<16x32xf32>
    %242 = arith.mulf %240, %241 : vector<16x32xf32>
    %243 = vector.broadcast %143 : vector<1x32xf32> to vector<16x32xf32>
    %244 = arith.addf %242, %243 : vector<16x32xf32>
    %245 = arith.truncf %244 : vector<16x32xf32> to vector<16x32xbf16>
    %c1_85 = arith.constant 1 : index
    %c0_86 = arith.constant 0 : index
    %c0_87 = arith.constant 0 : index
    %246 = vector.load %arg5[%c1_85, %c0_86, %c0_87] : memref<2x64x32xbf16, #tpu.memory_space<vmem>>, vector<1x64x32xbf16>
    %247 = vector.shape_cast %246 : vector<1x64x32xbf16> to vector<64x32xbf16>
    %cst_88 = arith.constant dense<0.000000e+00> : vector<16x64xf32>
    %248 = tpu.matmul %245, %247, %cst_88 {dimension_numbers = #tpu.dot_dimension_numbers<[1], [1], [0], [0], [0, 0, 1, 0], [], []>} : vector<16x32xbf16>, vector<64x32xbf16>, vector<16x64xf32> -> vector<16x64xf32>
    %249 = vector.broadcast %145 : vector<1x64xf32> to vector<16x64xf32>
    %250 = arith.addf %248, %249 : vector<16x64xf32>
    %cst_89 = arith.constant 0.000000e+00 : f32
    %251 = vector.broadcast %cst_89 : f32 to vector<16x64xf32>
    %252 = arith.maximumf %250, %251 : vector<16x64xf32>
    %253 = arith.truncf %252 : vector<16x64xf32> to vector<16x64xbf16>
    %c1_90 = arith.constant 1 : index
    %c0_91 = arith.constant 0 : index
    %c0_92 = arith.constant 0 : index
    %254 = vector.load %arg6[%c1_90, %c0_91, %c0_92] : memref<2x32x64xbf16, #tpu.memory_space<vmem>>, vector<1x32x64xbf16>
    %255 = vector.shape_cast %254 : vector<1x32x64xbf16> to vector<32x64xbf16>
    %cst_93 = arith.constant dense<0.000000e+00> : vector<16x32xf32>
    %256 = tpu.matmul %253, %255, %cst_93 {dimension_numbers = #tpu.dot_dimension_numbers<[1], [1], [0], [0], [0, 0, 1, 0], [], []>} : vector<16x64xbf16>, vector<32x64xbf16>, vector<16x32xf32> -> vector<16x32xf32>
    %257 = arith.addf %222, %256 : vector<16x32xf32>
    %258 = vector.broadcast %144 : vector<1x32xf32> to vector<16x32xf32>
    %259 = arith.addf %257, %258 : vector<16x32xf32>
    %c2_94 = arith.constant 2 : index
    %c0_95 = arith.constant 0 : index
    %c0_96 = arith.constant 0 : index
    %260 = vector.load %arg7[%c2_94, %c0_95, %c0_96] : memref<3x10x64xf32, #tpu.memory_space<vmem>>, vector<1x10x64xf32>
    %261 = vector.shape_cast %260 : vector<1x10x64xf32> to vector<10x64xf32>
    %262 = vector.extract_strided_slice %261 {offsets = [0, 0], sizes = [1, 32], strides = [1, 1]} : vector<10x64xf32> to vector<1x32xf32>
    %263 = vector.extract_strided_slice %261 {offsets = [1, 0], sizes = [1, 32], strides = [1, 1]} : vector<10x64xf32> to vector<1x32xf32>
    %cst_97 = arith.constant dense<0.000000e+00> : vector<16xf32>
    %264 = vector.multi_reduction <add>, %259, %cst_97 [1] : vector<16x32xf32> to vector<16xf32>
    %265 = vector.shape_cast %264 : vector<16xf32> to vector<16x1xf32>
    %cst_98 = arith.constant 3.200000e+01 : f32
    %266 = vector.broadcast %cst_98 : f32 to vector<16x1xf32>
    %267 = arith.divf %265, %266 : vector<16x1xf32>
    %268 = vector.broadcast %267 : vector<16x1xf32> to vector<16x32xf32>
    %269 = arith.subf %259, %268 : vector<16x32xf32>
    %270 = arith.mulf %269, %269 : vector<16x32xf32>
    %cst_99 = arith.constant dense<0.000000e+00> : vector<16xf32>
    %271 = vector.multi_reduction <add>, %270, %cst_99 [1] : vector<16x32xf32> to vector<16xf32>
    %272 = vector.shape_cast %271 : vector<16xf32> to vector<16x1xf32>
    %cst_100 = arith.constant 3.200000e+01 : f32
    %273 = vector.broadcast %cst_100 : f32 to vector<16x1xf32>
    %274 = arith.divf %272, %273 : vector<16x1xf32>
    %275 = vector.broadcast %267 : vector<16x1xf32> to vector<16x32xf32>
    %276 = arith.subf %259, %275 : vector<16x32xf32>
    %cst_101 = arith.constant 9.99999974E-6 : f32
    %277 = vector.broadcast %cst_101 : f32 to vector<16x1xf32>
    %278 = arith.addf %274, %277 : vector<16x1xf32>
    %279 = math.rsqrt %278 : vector<16x1xf32>
    %280 = vector.broadcast %279 : vector<16x1xf32> to vector<16x32xf32>
    %281 = arith.mulf %276, %280 : vector<16x32xf32>
    %282 = vector.broadcast %262 : vector<1x32xf32> to vector<16x32xf32>
    %283 = arith.mulf %281, %282 : vector<16x32xf32>
    %284 = vector.broadcast %263 : vector<1x32xf32> to vector<16x32xf32>
    %285 = arith.addf %283, %284 : vector<16x32xf32>
    %286 = vector.shape_cast %285 : vector<16x32xf32> to vector<2x8x32xf32>
    %287 = arith.truncf %286 : vector<2x8x32xf32> to vector<2x8x32xbf16>
    %c0_102 = arith.constant 0 : index
    %c0_103 = arith.constant 0 : index
    %c0_104 = arith.constant 0 : index
    %288 = vector.load %arg8[%c0_102, %c0_103, %c0_104] : memref<2x8x32xbf16, #tpu.memory_space<vmem>>, vector<2x8x32xbf16>
    tpu.vector_store %arg8[%c0_102, %c0_103, %c0_104], %287 {strides = array<i32>} : memref<2x8x32xbf16, #tpu.memory_space<vmem>>, vector<2x8x32xbf16>,
    return
  }
  func.func @transform_0(%arg0: i32) -> (i32, i32, i32) {
    %c0_i32 = arith.constant 0 : i32
    %c0_i32_0 = arith.constant 0 : i32
    %c0_i32_1 = arith.constant 0 : i32
    return %arg0, %c0_i32, %c0_i32_0 : i32, i32, i32
  }
  func.func @transform_1(%arg0: i32) -> (i32, i32, i32) {
    %c0_i32 = arith.constant 0 : i32
    %c0_i32_0 = arith.constant 0 : i32
    %c0_i32_1 = arith.constant 0 : i32
    return %arg0, %c0_i32, %c0_i32_0 : i32, i32, i32
  }
  func.func @transform_2(%arg0: i32) -> (i32, i32, i32, i32) {
    %c0_i32 = arith.constant 0 : i32
    %c0_i32_0 = arith.constant 0 : i32
    %c0_i32_1 = arith.constant 0 : i32
    %c0_i32_2 = arith.constant 0 : i32
    %c0_i32_3 = arith.constant 0 : i32
    return %c0_i32, %c0_i32_0, %c0_i32_1, %c0_i32_2 : i32, i32, i32, i32
  }
  func.func @transform_3(%arg0: i32) -> (i32, i32, i32) {
    %c0_i32 = arith.constant 0 : i32
    %c0_i32_0 = arith.constant 0 : i32
    %c0_i32_1 = arith.constant 0 : i32
    %c0_i32_2 = arith.constant 0 : i32
    return %c0_i32, %c0_i32_0, %c0_i32_1 : i32, i32, i32
  }
  func.func @transform_4(%arg0: i32) -> (i32, i32, i32) {
    %c0_i32 = arith.constant 0 : i32
    %c0_i32_0 = arith.constant 0 : i32
    %c0_i32_1 = arith.constant 0 : i32
    %c0_i32_2 = arith.constant 0 : i32
    return %c0_i32, %c0_i32_0, %c0_i32_1 : i32, i32, i32
  }
  func.func @transform_5(%arg0: i32) -> (i32, i32, i32) {
    %c0_i32 = arith.constant 0 : i32
    %c0_i32_0 = arith.constant 0 : i32
    %c0_i32_1 = arith.constant 0 : i32
    %c0_i32_2 = arith.constant 0 : i32
    return %c0_i32, %c0_i32_0, %c0_i32_1 : i32, i32, i32
  }
  func.func @transform_6(%arg0: i32) -> (i32, i32, i32) {
    %c0_i32 = arith.constant 0 : i32
    %c0_i32_0 = arith.constant 0 : i32
    %c0_i32_1 = arith.constant 0 : i32
    %c0_i32_2 = arith.constant 0 : i32
    return %c0_i32, %c0_i32_0, %c0_i32_1 : i32, i32, i32
  }
  func.func @transform_7(%arg0: i32) -> (i32, i32, i32) {
    %c0_i32 = arith.constant 0 : i32
    %c0_i32_0 = arith.constant 0 : i32
    %c0_i32_1 = arith.constant 0 : i32
    return %arg0, %c0_i32, %c0_i32_0 : i32, i32, i32
  }
}

</mosaic_0001>

<llo_original>
// kernel: tpu_custom_call.1
$region0: #{tpu_custom_call.1}
  #allocation0 [shape = 'u32[]', space=smem, size = 0x4, offset = 0x4, fixed_abs, tag = 'smem constant byte address 0x4 - core index']
  #allocation1 [shape = 'u32[144,128]{1,0:T(1,128)}', space=vmem, size = 0x12000, scoped, tag = 'internal scratch']
  %s0 = inlined_call_operand.hbm [shape: bf16[2,8,32], index: 0, kind: input, shape index: {}]
  %s1 = inlined_call_operand.vmem [shape: f32[2,1,8], index: 1, kind: input, shape index: {}]
  %s2 = inlined_call_operand.vmem [shape: bf16[2,3,32,32], index: 2, kind: input, shape index: {}]
  %s3 = inlined_call_operand.vmem [shape: bf16[2,32,32], index: 3, kind: input, shape index: {}]
  %s4 = inlined_call_operand.vmem [shape: bf16[2,64,32], index: 4, kind: input, shape index: {}]
  %s5 = inlined_call_operand.vmem [shape: bf16[2,32,64], index: 5, kind: input, shape index: {}]
  %s6 = inlined_call_operand.vmem [shape: f32[3,10,64], index: 6, kind: input, shape index: {}]
  %s7 = inlined_call_operand.hbm [shape: bf16[2,8,32], index: 7, kind: output, shape index: {}]
  %s8 = sld [smem:[#allocation0]]
  $region42: #{tpu_custom_call.1} parent=0
    _
  %s10 = ssub.s32 1, %s8
  %s11 = scalar_select 0, %s10, %s8
  $region1: #{tpu_custom_call.1} parent=0
    #allocation2 [shape = 'u8[4096]{0}', space=vmem, size = 0x1000, scoped, tag = 'input window, operand 0, single buffered']
    #allocation3 [shape = 's32[1]{0}', space=sflag, size = 0x4, scoped, tag = 'scoped memory for tpu_custom_call.1']
    #allocation4 [shape = 's32[1]{0}', space=sflag, size = 0x4, scoped, tag = 'scoped memory for tpu_custom_call.1']
    #allocation5 [shape = 'u8[4096]{0}', space=vmem, size = 0x1000, scoped, tag = 'output window, operand 0, single buffered']
    %12 = vsyncpa [#allocation3], 0
    %13 = vsyncpa [#allocation4], 0
    // Predicated region
    $region2: #{tpu_custom_call.1} parent=1 // pred_check
      _
    $region3: #{tpu_custom_call.1} parent=1 // pred_check_branch
      %15 = sbr.rel (0) target = $region5
    $region4: #{tpu_custom_call.1} parent=1 // pred_region
      %s17 = ssub.s32 128, 128
      %18 = vsyncadd [#allocation3], %s17
      %s19 = sshll.u32 [#allocation2], 4
      %s20 = int_to_ptr.vmem [resolvable:$true] %s19
      %25 = dma.hbm_to_vmem [thread:$0]  %s0, 128, %s20, [#allocation3], 64, 64, 4
    $region5: #{tpu_custom_call.1} parent=1 // pred_fallthru
      _
    // Predicated region
    $region6: #{tpu_custom_call.1} parent=1 // pred_check
      _
    $region7: #{tpu_custom_call.1} parent=1 // pred_check_branch
      %27 = sbr.rel (0) target = $region9
    $region8: #{tpu_custom_call.1} parent=1 // pred_region
      _
    $region9: #{tpu_custom_call.1} parent=1 // pred_fallthru
      _
    // Predicated region
    $region10: #{tpu_custom_call.1} parent=1 // pred_check
      _
    $region11: #{tpu_custom_call.1} parent=1 // pred_check_branch
      %29 = sbr.rel (0) target = $region13
    $region12: #{tpu_custom_call.1} parent=1 // pred_region
      _
    $region13: #{tpu_custom_call.1} parent=1 // pred_fallthru
      _
    // Predicated region
    $region14: #{tpu_custom_call.1} parent=1 // pred_check
      _
    $region15: #{tpu_custom_call.1} parent=1 // pred_check_branch
      %31 = sbr.rel (0) target = $region17
    $region16: #{tpu_custom_call.1} parent=1 // pred_region
      _
    $region17: #{tpu_custom_call.1} parent=1 // pred_fallthru
      _
    // Predicated region
    $region18: #{tpu_custom_call.1} parent=1 // pred_check
      _
    $region19: #{tpu_custom_call.1} parent=1 // pred_check_branch
      %33 = sbr.rel (0) target = $region21
    $region20: #{tpu_custom_call.1} parent=1 // pred_region
      _
    $region21: #{tpu_custom_call.1} parent=1 // pred_fallthru
      _
    // Predicated region
    $region22: #{tpu_custom_call.1} parent=1 // pred_check
      _
    $region23: #{tpu_custom_call.1} parent=1 // pred_check_branch
      %35 = sbr.rel (0) target = $region25
    $region24: #{tpu_custom_call.1} parent=1 // pred_region
      _
    $region25: #{tpu_custom_call.1} parent=1 // pred_fallthru
      _
    // Predicated region
    $region26: #{tpu_custom_call.1} parent=1 // pred_check
      _
    $region27: #{tpu_custom_call.1} parent=1 // pred_check_branch
      %37 = sbr.rel (0) target = $region29
    $region28: #{tpu_custom_call.1} parent=1 // pred_region
      _
    $region29: #{tpu_custom_call.1} parent=1 // pred_fallthru
      _
    // Predicated region
    $region30: #{tpu_custom_call.1} parent=1 // pred_check
      _
    $region31: #{tpu_custom_call.1} parent=1 // pred_check_branch
      %39 = sbr.rel (0) target = $region33
    $region32: #{tpu_custom_call.1} parent=1 // pred_region
      %40 = dma.done [#allocation3], 128
    $region33: #{tpu_custom_call.1} parent=1 // pred_fallthru
      _
    %v42 = vld [vmem:[#allocation2] sm:$0xf]
    %v43 = vld [vmem:[#allocation2 + $0x4] sm:$0xf]
    %v44 = vunpack.c.l.bf16 %v42
    %v45 = vunpack.c.l.bf16 %v43
    %v46 = vld [vmem:[%s1] sm:$0x1]
    %v47 = vld [vmem:[%s1 + $0x1] sm:$0x1]
    %v48 = vld [vmem:[%s6] sm:$0xff]
    %v49 = vld [vmem:[%s6 + $0x8] sm:$0x3]
    %vm50 = vcmask 261120
    %v51 = vsel %vm50, %v44, 0.0
    %52 = vadd.xlane.f32.xlu0 %v51
    %v53 = vpop.xlane.xlu0 %52
    %v54 = vsel %vm50, %v45, 0.0
    %55 = vadd.xlane.f32.xlu0 %v54
    %v56 = vpop.xlane.xlu0 %55
    %v57 = vrcp.pop 32.0
    %v58 = vmul.f32 %v53, %v57
    %v59 = vmul.f32 %v56, %v57
    %v60 = vsub.f32 %v44, %v58
    %v61 = vsub.f32 %v45, %v59
    %v62 = vmul.f32 %v60, %v60
    %v63 = vmul.f32 %v61, %v61
    %v64 = vsel %vm50, %v62, 0.0
    %65 = vadd.xlane.f32.xlu0 %v64
    %v66 = vpop.xlane.xlu0 %65
    %v67 = vsel %vm50, %v63, 0.0
    %68 = vadd.xlane.f32.xlu0 %v67
    %v69 = vpop.xlane.xlu0 %68
    %v70 = vmul.f32 %v66, %v57
    %v71 = vmul.f32 %v69, %v57
    %v72 = vadd.f32 %v70, 1e-05
    %v73 = vadd.f32 %v71, 1e-05
    %v74 = vrsqrt.pop %v72
    %v75 = vrsqrt.pop %v73
    %v76 = vmul.f32 %v60, %v74
    %v77 = vmul.f32 %v61, %v75
    %v78 = vlaneseq
    %v79 = vshrl.u32 %v78, 7
    %v80 = vsub.s32 4, %v79
    %v81 = vrot.slane %v48, %v80
    %v82 = vmul.f32 %v76, %v81
    %v83 = vmul.f32 %v77, %v81
    %v84 = vlaneseq
    %v85 = vshrl.u32 %v84, 7
    %v86 = vsub.s32 5, %v85
    %v87 = vrot.slane %v48, %v86
    %v88 = vadd.f32 %v82, %v87
    %v89 = vadd.f32 %v83, %v87
    %v90 = vpack.c.bf16 %v89, %v88
    %v91 = vld [vmem:[%s2] sm:$0xf]
    %v92 = vld [vmem:[%s2 + $0x4] sm:$0xf]
    %v93 = vld [vmem:[%s2 + $0x8] sm:$0xf]
    %v94 = vld [vmem:[%s2 + $0xc] sm:$0xf]
    %v95 = vlaneseq
    %v96 = vshrl.u32 %v95, 7
    %v97 = vsub.s32 0, %v96
    %v98 = vrot.slane %v48, %v97
    %v103 = vunpack.c.l.b16 %v91
    %v104 = vunpack.c.l.b16 %v92
    %v105 = vunpack.c.l.b16 %v93
    %v106 = vunpack.c.l.b16 %v94
    %v107 = vpack.c.b16 %v104, %v103
    %v108 = vpack.c.b16 %v106, %v105
    %v110 = vsel %vm50, %v90, 0
    %v113 = vsel %vm50, %v107, 0
    %v116 = vsel %vm50, %v108, 0
    %118 = vmatprep.subr.bf16.mxu0 0
    %119 = vmatpush1.bf16.xpose.msra.mxu0 %v113
    %120 = vmatprep.subr.bf16.mxu0 0
    %121 = vmatpush1.bf16.xpose.msra.mxu0 %v116
    %122 = vmatprep.subr.bf16.mxu0 0
    %123 = vmatpush1.bf16.xpose.msra.mxu0 0
    %124 = vmatprep.subr.bf16.mxu0 0
    %125 = vmatpush1.bf16.xpose.msra.mxu0 0
    %126 = vmatprep.subr.bf16.mxu0 0
    %127 = vmatpush1.bf16.xpose.msra.mxu0 0
    %128 = vmatprep.subr.bf16.mxu0 0
    %129 = vmatpush1.bf16.xpose.msra.mxu0 0
    %130 = vmatprep.subr.bf16.mxu0 0
    %131 = vmatpush1.bf16.xpose.msra.mxu0 0
    %132 = vmatprep.subr.bf16.mxu0 0
    %133 = vmatpush1.bf16.xpose.msra.mxu0 0
    %134 = vmatprep.subr.bf16.mxu0 0
    %135 = vmatpush1.bf16.xpose.msra.mxu0 0
    %136 = vmatprep.subr.bf16.mxu0 0
    %137 = vmatpush1.bf16.xpose.msra.mxu0 0
    %138 = vmatprep.subr.bf16.mxu0 0
    %139 = vmatpush1.bf16.xpose.msra.mxu0 0
    %140 = vmatprep.subr.bf16.mxu0 0
    %141 = vmatpush1.bf16.xpose.msra.mxu0 0
    %142 = vmatprep.subr.bf16.mxu0 0
    %143 = vmatpush1.bf16.xpose.msra.mxu0 0
    %144 = vmatprep.subr.bf16.mxu0 0
    %145 = vmatpush1.bf16.xpose.msra.mxu0 0
    %146 = vmatprep.subr.bf16.mxu0 0
    %147 = vmatpush1.bf16.xpose.msra.mxu0 0
    %148 = vmatprep.subr.bf16.mxu0 0
    %149 = vmatpush1.bf16.xpose.msra.mxu0 0
    %150 = vmatprep.mubr.bf16.mxu0 0
    %151 = vmatmul.mubr.bf16.gmra.mrb[0].mxu0 %v110
    %v152 = vpop.f32.mrb[0].mxu0
    %v153 = vadd.f32 %v98, %v152
    %v154 = vpop.f32.mrb[0].mxu0
    %v155 = vpop.f32.mrb[0].mxu0
    %v156 = vadd.f32 %v98, %v155
    %v157 = vpop.f32.mrb[0].mxu0
    %158 = vdwg.mxu0
    %s159 = scalar_lea.vmem %s2, 16
    %v160 = vld [vmem:[%s159] sm:$0xf]
    %v161 = vld [vmem:[%s159 + $0x4] sm:$0xf]
    %v162 = vld [vmem:[%s159 + $0x8] sm:$0xf]
    %v163 = vld [vmem:[%s159 + $0xc] sm:$0xf]
    %v164 = vlaneseq
    %v165 = vshrl.u32 %v164, 7
    %v166 = vsub.s32 1, %v165
    %v167 = vrot.slane %v48, %v166
    %v172 = vunpack.c.l.b16 %v160
    %v173 = vunpack.c.l.b16 %v161
    %v174 = vunpack.c.l.b16 %v162
    %v175 = vunpack.c.l.b16 %v163
    %v176 = vpack.c.b16 %v173, %v172
    %v177 = vpack.c.b16 %v175, %v174
    %v179 = vsel %vm50, %v176, 0
    %v182 = vsel %vm50, %v177, 0
    %184 = vmatprep.subr.bf16.mxu0 0
    %185 = vmatpush1.bf16.xpose.msra.mxu0 %v179
    %186 = vmatprep.subr.bf16.mxu0 0
    %187 = vmatpush1.bf16.xpose.msra.mxu0 %v182
    %188 = vmatprep.subr.bf16.mxu0 0
    %189 = vmatpush1.bf16.xpose.msra.mxu0 0
    %190 = vmatprep.subr.bf16.mxu0 0
    %191 = vmatpush1.bf16.xpose.msra.mxu0 0
    %192 = vmatprep.subr.bf16.mxu0 0
    %193 = vmatpush1.bf16.xpose.msra.mxu0 0
    %194 = vmatprep.subr.bf16.mxu0 0
    %195 = vmatpush1.bf16.xpose.msra.mxu0 0
    %196 = vmatprep.subr.bf16.mxu0 0
    %197 = vmatpush1.bf16.xpose.msra.mxu0 0
    %198 = vmatprep.subr.bf16.mxu0 0
    %199 = vmatpush1.bf16.xpose.msra.mxu0 0
    %200 = vmatprep.subr.bf16.mxu0 0
    %201 = vmatpush1.bf16.xpose.msra.mxu0 0
    %202 = vmatprep.subr.bf16.mxu0 0
    %203 = vmatpush1.bf16.xpose.msra.mxu0 0
    %204 = vmatprep.subr.bf16.mxu0 0
    %205 = vmatpush1.bf16.xpose.msra.mxu0 0
    %206 = vmatprep.subr.bf16.mxu0 0
    %207 = vmatpush1.bf16.xpose.msra.mxu0 0
    %208 = vmatprep.subr.bf16.mxu0 0
    %209 = vmatpush1.bf16.xpose.msra.mxu0 0
    %210 = vmatprep.subr.bf16.mxu0 0
    %211 = vmatpush1.bf16.xpose.msra.mxu0 0
    %212 = vmatprep.subr.bf16.mxu0 0
    %213 = vmatpush1.bf16.xpose.msra.mxu0 0
    %214 = vmatprep.subr.bf16.mxu0 0
    %215 = vmatpush1.bf16.xpose.msra.mxu0 0
    %216 = vmatprep.mubr.bf16.mxu0 0
    %217 = vmatmul.mubr.bf16.gmra.mrb[0].mxu0 %v110
    %v218 = vpop.f32.mrb[0].mxu0
    %v219 = vadd.f32 %v167, %v218
    %v220 = vpop.f32.mrb[0].mxu0
    %v221 = vpop.f32.mrb[0].mxu0
    %v222 = vadd.f32 %v167, %v221
    %v223 = vpop.f32.mrb[0].mxu0
    %224 = vdwg.mxu0
    %s225 = scalar_lea.vmem %s2, 32
    %v226 = vld [vmem:[%s225] sm:$0xf]
    %v227 = vld [vmem:[%s225 + $0x4] sm:$0xf]
    %v228 = vld [vmem:[%s225 + $0x8] sm:$0xf]
    %v229 = vld [vmem:[%s225 + $0xc] sm:$0xf]
    %v230 = vlaneseq
    %v231 = vshrl.u32 %v230, 7
    %v232 = vsub.s32 2, %v231
    %v233 = vrot.slane %v48, %v232
    %v238 = vunpack.c.l.b16 %v226
    %v239 = vunpack.c.l.b16 %v227
    %v240 = vunpack.c.l.b16 %v228
    %v241 = vunpack.c.l.b16 %v229
    %v242 = vpack.c.b16 %v239, %v238
    %v243 = vpack.c.b16 %v241, %v240
    %v245 = vsel %vm50, %v242, 0
    %v248 = vsel %vm50, %v243, 0
    %250 = vmatprep.subr.bf16.mxu0 0
    %251 = vmatpush1.bf16.xpose.msra.mxu0 %v245
    %252 = vmatprep.subr.bf16.mxu0 0
    %253 = vmatpush1.bf16.xpose.msra.mxu0 %v248
    %254 = vmatprep.subr.bf16.mxu0 0
    %255 = vmatpush1.bf16.xpose.msra.mxu0 0
    %256 = vmatprep.subr.bf16.mxu0 0
    %257 = vmatpush1.bf16.xpose.msra.mxu0 0
    %258 = vmatprep.subr.bf16.mxu0 0
    %259 = vmatpush1.bf16.xpose.msra.mxu0 0
    %260 = vmatprep.subr.bf16.mxu0 0
    %261 = vmatpush1.bf16.xpose.msra.mxu0 0
    %262 = vmatprep.subr.bf16.mxu0 0
    %263 = vmatpush1.bf16.xpose.msra.mxu0 0
    %264 = vmatprep.subr.bf16.mxu0 0
    %265 = vmatpush1.bf16.xpose.msra.mxu0 0
    %266 = vmatprep.subr.bf16.mxu0 0
    %267 = vmatpush1.bf16.xpose.msra.mxu0 0
    %268 = vmatprep.subr.bf16.mxu0 0
    %269 = vmatpush1.bf16.xpose.msra.mxu0 0
    %270 = vmatprep.subr.bf16.mxu0 0
    %271 = vmatpush1.bf16.xpose.msra.mxu0 0
    %272 = vmatprep.subr.bf16.mxu0 0
    %273 = vmatpush1.bf16.xpose.msra.mxu0 0
    %274 = vmatprep.subr.bf16.mxu0 0
    %275 = vmatpush1.bf16.xpose.msra.mxu0 0
    %276 = vmatprep.subr.bf16.mxu0 0
    %277 = vmatpush1.bf16.xpose.msra.mxu0 0
    %278 = vmatprep.subr.bf16.mxu0 0
    %279 = vmatpush1.bf16.xpose.msra.mxu0 0
    %280 = vmatprep.subr.bf16.mxu0 0
    %281 = vmatpush1.bf16.xpose.msra.mxu0 0
    %282 = vmatprep.mubr.bf16.mxu0 0
    %283 = vmatmul.mubr.bf16.gmra.mrb[0].mxu0 %v110
    %v284 = vpop.f32.mrb[0].mxu0
    %v285 = vadd.f32 %v233, %v284
    %v286 = vpop.f32.mrb[0].mxu0
    %v287 = vpop.f32.mrb[0].mxu0
    %v288 = vadd.f32 %v233, %v287
    %v289 = vpop.f32.mrb[0].mxu0
    %290 = vdwg.mxu0
    %293 = vrot.lane.b32.xlu0 %v153, 120
    %v294 = vpop.permute.xlu0 %293
    %295 = vrot.lane.b32.xlu0 %v156, 120
    %v296 = vpop.permute.xlu0 %295
    %299 = vrot.lane.b32.xlu0 %v153, 112
    %v300 = vpop.permute.xlu0 %299
    %301 = vrot.lane.b32.xlu0 %v156, 112
    %v302 = vpop.permute.xlu0 %301
    %305 = vrot.lane.b32.xlu0 %v153, 104
    %v306 = vpop.permute.xlu0 %305
    %307 = vrot.lane.b32.xlu0 %v156, 104
    %v308 = vpop.permute.xlu0 %307
    %v311 = vcombine.low %v153, %v300
    %v312 = vcombine.high %v153, %v300
    %v314 = vunpack.c.l.s4 1983009808
    %v315 = vunpack.c.0.s8 %v314
    %v316 = vlaneseq
    %v317 = vshrl.u32 %v316, 7
    %v318 = vsub.s32 %v315, %v317
    %v319 = vrot.slane %v311, %v318
    %v321 = vunpack.c.l.s4 1983009808
    %v322 = vunpack.c.0.s8 %v321
    %v323 = vlaneseq
    %v324 = vshrl.u32 %v323, 7
    %v325 = vsub.s32 %v322, %v324
    %v326 = vrot.slane %v312, %v325
    %v327 = vcombine.low %v294, %v306
    %v328 = vcombine.high %v294, %v306
    %v330 = vunpack.c.l.s4 1983009808
    %v331 = vunpack.c.0.s8 %v330
    %v332 = vlaneseq
    %v333 = vshrl.u32 %v332, 7
    %v334 = vsub.s32 %v331, %v333
    %v335 = vrot.slane %v327, %v334
    %v337 = vunpack.c.l.s4 1983009808
    %v338 = vunpack.c.0.s8 %v337
    %v339 = vlaneseq
    %v340 = vshrl.u32 %v339, 7
    %v341 = vsub.s32 %v338, %v340
    %v342 = vrot.slane %v328, %v341
    %v343 = vcombine.low %v319, %v335
    %v344 = vcombine.high %v319, %v335
    %v346 = vunpack.c.l.s4 1934713408
    %v347 = vunpack.c.0.s8 %v346
    %v348 = vlaneseq
    %v349 = vshrl.u32 %v348, 7
    %v350 = vsub.s32 %v347, %v349
    %v351 = vrot.slane %v343, %v350
    %v353 = vunpack.c.l.s4 1934713408
    %v354 = vunpack.c.0.s8 %v353
    %v355 = vlaneseq
    %v356 = vshrl.u32 %v355, 7
    %v357 = vsub.s32 %v354, %v356
    %v358 = vrot.slane %v344, %v357
    %v359 = vcombine.low %v326, %v342
    %v360 = vcombine.high %v326, %v342
    %v362 = vunpack.c.l.s4 1934713408
    %v363 = vunpack.c.0.s8 %v362
    %v364 = vlaneseq
    %v365 = vshrl.u32 %v364, 7
    %v366 = vsub.s32 %v363, %v365
    %v367 = vrot.slane %v359, %v366
    %v369 = vunpack.c.l.s4 1934713408
    %v370 = vunpack.c.0.s8 %v369
    %v371 = vlaneseq
    %v372 = vshrl.u32 %v371, 7
    %v373 = vsub.s32 %v370, %v372
    %v374 = vrot.slane %v360, %v373
    %v375 = vcombine.high %v351, 0.0
    %v376 = vcombine.high %v358, 0.0
    %v377 = vcombine.high %v367, 0.0
    %v378 = vcombine.high %v374, 0.0
    %v379 = vcombine.low %v156, %v302
    %v380 = vcombine.high %v156, %v302
    %v382 = vunpack.c.l.s4 1983009808
    %v383 = vunpack.c.0.s8 %v382
    %v384 = vlaneseq
    %v385 = vshrl.u32 %v384, 7
    %v386 = vsub.s32 %v383, %v385
    %v387 = vrot.slane %v379, %v386
    %v389 = vunpack.c.l.s4 1983009808
    %v390 = vunpack.c.0.s8 %v389
    %v391 = vlaneseq
    %v392 = vshrl.u32 %v391, 7
    %v393 = vsub.s32 %v390, %v392
    %v394 = vrot.slane %v380, %v393
    %v395 = vcombine.low %v296, %v308
    %v396 = vcombine.high %v296, %v308
    %v398 = vunpack.c.l.s4 1983009808
    %v399 = vunpack.c.0.s8 %v398
    %v400 = vlaneseq
    %v401 = vshrl.u32 %v400, 7
    %v402 = vsub.s32 %v399, %v401
    %v403 = vrot.slane %v395, %v402
    %v405 = vunpack.c.l.s4 1983009808
    %v406 = vunpack.c.0.s8 %v405
    %v407 = vlaneseq
    %v408 = vshrl.u32 %v407, 7
    %v409 = vsub.s32 %v406, %v408
    %v410 = vrot.slane %v396, %v409
    %v411 = vcombine.low %v387, %v403
    %v412 = vcombine.high %v387, %v403
    %v414 = vunpack.c.l.s4 1934713408
    %v415 = vunpack.c.0.s8 %v414
    %v416 = vlaneseq
    %v417 = vshrl.u32 %v416, 7
    %v418 = vsub.s32 %v415, %v417
    %v419 = vrot.slane %v411, %v418
    %v421 = vunpack.c.l.s4 1934713408
    %v422 = vunpack.c.0.s8 %v421
    %v423 = vlaneseq
    %v424 = vshrl.u32 %v423, 7
    %v425 = vsub.s32 %v422, %v424
    %v426 = vrot.slane %v412, %v425
    %v427 = vcombine.low %v394, %v410
    %v428 = vcombine.high %v394, %v410
    %v430 = vunpack.c.l.s4 1934713408
    %v431 = vunpack.c.0.s8 %v430
    %v432 = vlaneseq
    %v433 = vshrl.u32 %v432, 7
    %v434 = vsub.s32 %v431, %v433
    %v435 = vrot.slane %v427, %v434
    %v437 = vunpack.c.l.s4 1934713408
    %v438 = vunpack.c.0.s8 %v437
    %v439 = vlaneseq
    %v440 = vshrl.u32 %v439, 7
    %v441 = vsub.s32 %v438, %v440
    %v442 = vrot.slane %v428, %v441
    %v443 = vcombine.high %v419, 0.0
    %v444 = vcombine.high %v426, 0.0
    %v445 = vcombine.high %v435, 0.0
    %v446 = vcombine.high %v442, 0.0
    %v447 = vcombine.low %v351, %v358
    %v449 = vunpack.c.l.s4 1983009808
    %v450 = vunpack.c.0.s8 %v449
    %v451 = vlaneseq
    %v452 = vshrl.u32 %v451, 7
    %v453 = vsub.s32 %v450, %v452
    %v454 = vrot.slane %v447, %v453
    %v455 = vcombine.low %v375, %v376
    %v457 = vunpack.c.l.s4 1983009808
    %v458 = vunpack.c.0.s8 %v457
    %v459 = vlaneseq
    %v460 = vshrl.u32 %v459, 7
    %v461 = vsub.s32 %v458, %v460
    %v462 = vrot.slane %v455, %v461
    %v463 = vcombine.low %v367, %v374
    %v465 = vunpack.c.l.s4 1983009808
    %v466 = vunpack.c.0.s8 %v465
    %v467 = vlaneseq
    %v468 = vshrl.u32 %v467, 7
    %v469 = vsub.s32 %v466, %v468
    %v470 = vrot.slane %v463, %v469
    %v471 = vcombine.low %v377, %v378
    %v473 = vunpack.c.l.s4 1983009808
    %v474 = vunpack.c.0.s8 %v473
    %v475 = vlaneseq
    %v476 = vshrl.u32 %v475, 7
    %v477 = vsub.s32 %v474, %v476
    %v478 = vrot.slane %v471, %v477
    %v479 = vcombine.low %v454, %v462
    %v480 = vcombine.high %v454, %v462
    %v482 = vunpack.c.l.s4 1934713408
    %v483 = vunpack.c.0.s8 %v482
    %v484 = vlaneseq
    %v485 = vshrl.u32 %v484, 7
    %v486 = vsub.s32 %v483, %v485
    %v487 = vrot.slane %v479, %v486
    %v489 = vunpack.c.l.s4 1934713408
    %v490 = vunpack.c.0.s8 %v489
    %v491 = vlaneseq
    %v492 = vshrl.u32 %v491, 7
    %v493 = vsub.s32 %v490, %v492
    %v494 = vrot.slane %v480, %v493
    %v495 = vcombine.low %v470, %v478
    %v496 = vcombine.high %v470, %v478
    %v498 = vunpack.c.l.s4 1934713408
    %v499 = vunpack.c.0.s8 %v498
    %v500 = vlaneseq
    %v501 = vshrl.u32 %v500, 7
    %v502 = vsub.s32 %v499, %v501
    %v503 = vrot.slane %v495, %v502
    %v505 = vunpack.c.l.s4 1934713408
    %v506 = vunpack.c.0.s8 %v505
    %v507 = vlaneseq
    %v508 = vshrl.u32 %v507, 7
    %v509 = vsub.s32 %v506, %v508
    %v510 = vrot.slane %v496, %v509
    %v511 = vcombine.low %v487, %v503
    %v512 = vcombine.high %v487, %v503
    %v513 = vcombine.low %v494, %v510
    %v514 = vcombine.high %v494, %v510
    %v515 = vcombine.low %v419, %v426
    %v517 = vunpack.c.l.s4 1983009808
    %v518 = vunpack.c.0.s8 %v517
    %v519 = vlaneseq
    %v520 = vshrl.u32 %v519, 7
    %v521 = vsub.s32 %v518, %v520
    %v522 = vrot.slane %v515, %v521
    %v523 = vcombine.low %v443, %v444
    %v525 = vunpack.c.l.s4 1983009808
    %v526 = vunpack.c.0.s8 %v525
    %v527 = vlaneseq
    %v528 = vshrl.u32 %v527, 7
    %v529 = vsub.s32 %v526, %v528
    %v530 = vrot.slane %v523, %v529
    %v531 = vcombine.low %v435, %v442
    %v533 = vunpack.c.l.s4 1983009808
    %v534 = vunpack.c.0.s8 %v533
    %v535 = vlaneseq
    %v536 = vshrl.u32 %v535, 7
    %v537 = vsub.s32 %v534, %v536
    %v538 = vrot.slane %v531, %v537
    %v539 = vcombine.low %v445, %v446
    %v541 = vunpack.c.l.s4 1983009808
    %v542 = vunpack.c.0.s8 %v541
    %v543 = vlaneseq
    %v544 = vshrl.u32 %v543, 7
    %v545 = vsub.s32 %v542, %v544
    %v546 = vrot.slane %v539, %v545
    %v547 = vcombine.low %v522, %v530
    %v548 = vcombine.high %v522, %v530
    %v550 = vunpack.c.l.s4 1934713408
    %v551 = vunpack.c.0.s8 %v550
    %v552 = vlaneseq
    %v553 = vshrl.u32 %v552, 7
    %v554 = vsub.s32 %v551, %v553
    %v555 = vrot.slane %v547, %v554
    %v557 = vunpack.c.l.s4 1934713408
    %v558 = vunpack.c.0.s8 %v557
    %v559 = vlaneseq
    %v560 = vshrl.u32 %v559, 7
    %v561 = vsub.s32 %v558, %v560
    %v562 = vrot.slane %v548, %v561
    %v563 = vcombine.low %v538, %v546
    %v564 = vcombine.high %v538, %v546
    %v566 = vunpack.c.l.s4 1934713408
    %v567 = vunpack.c.0.s8 %v566
    %v568 = vlaneseq
    %v569 = vshrl.u32 %v568, 7
    %v570 = vsub.s32 %v567, %v569
    %v571 = vrot.slane %v563, %v570
    %v573 = vunpack.c.l.s4 1934713408
    %v574 = vunpack.c.0.s8 %v573
    %v575 = vlaneseq
    %v576 = vshrl.u32 %v575, 7
    %v577 = vsub.s32 %v574, %v576
    %v578 = vrot.slane %v564, %v577
    %v579 = vcombine.low %v555, %v571
    %v580 = vcombine.high %v555, %v571
    %v581 = vcombine.low %v562, %v578
    %v582 = vcombine.high %v562, %v578
    %v583 = vpack.c.bf16 %v511, %v511
    %v584 = vpack.c.bf16 %v512, %v512
    %v585 = vpack.c.bf16 %v513, %v513
    %v586 = vpack.c.bf16 %v514, %v514
    %v587 = vpack.c.bf16 %v579, %v579
    %v588 = vpack.c.bf16 %v580, %v580
    %v589 = vpack.c.bf16 %v581, %v581
    %v590 = vpack.c.bf16 %v582, %v582
    %593 = vrot.lane.b32.xlu0 %v219, 120
    %v594 = vpop.permute.xlu0 %593
    %595 = vrot.lane.b32.xlu0 %v222, 120
    %v596 = vpop.permute.xlu0 %595
    %599 = vrot.lane.b32.xlu0 %v219, 112
    %v600 = vpop.permute.xlu0 %599
    %601 = vrot.lane.b32.xlu0 %v222, 112
    %v602 = vpop.permute.xlu0 %601
    %605 = vrot.lane.b32.xlu0 %v219, 104
    %v606 = vpop.permute.xlu0 %605
    %607 = vrot.lane.b32.xlu0 %v222, 104
    %v608 = vpop.permute.xlu0 %607
    %v611 = vcombine.low %v219, %v600
    %v612 = vcombine.high %v219, %v600
    %v614 = vunpack.c.l.s4 1983009808
    %v615 = vunpack.c.0.s8 %v614
    %v616 = vlaneseq
    %v617 = vshrl.u32 %v616, 7
    %v618 = vsub.s32 %v615, %v617
    %v619 = vrot.slane %v611, %v618
    %v621 = vunpack.c.l.s4 1983009808
    %v622 = vunpack.c.0.s8 %v621
    %v623 = vlaneseq
    %v624 = vshrl.u32 %v623, 7
    %v625 = vsub.s32 %v622, %v624
    %v626 = vrot.slane %v612, %v625
    %v627 = vcombine.low %v594, %v606
    %v628 = vcombine.high %v594, %v606
    %v630 = vunpack.c.l.s4 1983009808
    %v631 = vunpack.c.0.s8 %v630
    %v632 = vlaneseq
    %v633 = vshrl.u32 %v632, 7
    %v634 = vsub.s32 %v631, %v633
    %v635 = vrot.slane %v627, %v634
    %v637 = vunpack.c.l.s4 1983009808
    %v638 = vunpack.c.0.s8 %v637
    %v639 = vlaneseq
    %v640 = vshrl.u32 %v639, 7
    %v641 = vsub.s32 %v638, %v640
    %v642 = vrot.slane %v628, %v641
    %v643 = vcombine.low %v619, %v635
    %v644 = vcombine.high %v619, %v635
    %v646 = vunpack.c.l.s4 1934713408
    %v647 = vunpack.c.0.s8 %v646
    %v648 = vlaneseq
    %v649 = vshrl.u32 %v648, 7
    %v650 = vsub.s32 %v647, %v649
    %v651 = vrot.slane %v643, %v650
    %v653 = vunpack.c.l.s4 1934713408
    %v654 = vunpack.c.0.s8 %v653
    %v655 = vlaneseq
    %v656 = vshrl.u32 %v655, 7
    %v657 = vsub.s32 %v654, %v656
    %v658 = vrot.slane %v644, %v657
    %v659 = vcombine.low %v626, %v642
    %v660 = vcombine.high %v626, %v642
    %v662 = vunpack.c.l.s4 1934713408
    %v663 = vunpack.c.0.s8 %v662
    %v664 = vlaneseq
    %v665 = vshrl.u32 %v664, 7
    %v666 = vsub.s32 %v663, %v665
    %v667 = vrot.slane %v659, %v666
    %v669 = vunpack.c.l.s4 1934713408
    %v670 = vunpack.c.0.s8 %v669
    %v671 = vlaneseq
    %v672 = vshrl.u32 %v671, 7
    %v673 = vsub.s32 %v670, %v672
    %v674 = vrot.slane %v660, %v673
    %v675 = vcombine.high %v651, 0.0
    %v676 = vcombine.high %v658, 0.0
    %v677 = vcombine.high %v667, 0.0
    %v678 = vcombine.high %v674, 0.0
    %v679 = vcombine.low %v222, %v602
    %v680 = vcombine.high %v222, %v602
    %v682 = vunpack.c.l.s4 1983009808
    %v683 = vunpack.c.0.s8 %v682
    %v684 = vlaneseq
    %v685 = vshrl.u32 %v684, 7
    %v686 = vsub.s32 %v683, %v685
    %v687 = vrot.slane %v679, %v686
    %v689 = vunpack.c.l.s4 1983009808
    %v690 = vunpack.c.0.s8 %v689
    %v691 = vlaneseq
    %v692 = vshrl.u32 %v691, 7
    %v693 = vsub.s32 %v690, %v692
    %v694 = vrot.slane %v680, %v693
    %v695 = vcombine.low %v596, %v608
    %v696 = vcombine.high %v596, %v608
    %v698 = vunpack.c.l.s4 1983009808
    %v699 = vunpack.c.0.s8 %v698
    %v700 = vlaneseq
    %v701 = vshrl.u32 %v700, 7
    %v702 = vsub.s32 %v699, %v701
    %v703 = vrot.slane %v695, %v702
    %v705 = vunpack.c.l.s4 1983009808
    %v706 = vunpack.c.0.s8 %v705
    %v707 = vlaneseq
    %v708 = vshrl.u32 %v707, 7
    %v709 = vsub.s32 %v706, %v708
    %v710 = vrot.slane %v696, %v709
    %v711 = vcombine.low %v687, %v703
    %v712 = vcombine.high %v687, %v703
    %v714 = vunpack.c.l.s4 1934713408
    %v715 = vunpack.c.0.s8 %v714
    %v716 = vlaneseq
    %v717 = vshrl.u32 %v716, 7
    %v718 = vsub.s32 %v715, %v717
    %v719 = vrot.slane %v711, %v718
    %v721 = vunpack.c.l.s4 1934713408
    %v722 = vunpack.c.0.s8 %v721
    %v723 = vlaneseq
    %v724 = vshrl.u32 %v723, 7
    %v725 = vsub.s32 %v722, %v724
    %v726 = vrot.slane %v712, %v725
    %v727 = vcombine.low %v694, %v710
    %v728 = vcombine.high %v694, %v710
    %v730 = vunpack.c.l.s4 1934713408
    %v731 = vunpack.c.0.s8 %v730
    %v732 = vlaneseq
    %v733 = vshrl.u32 %v732, 7
    %v734 = vsub.s32 %v731, %v733
    %v735 = vrot.slane %v727, %v734
    %v737 = vunpack.c.l.s4 1934713408
    %v738 = vunpack.c.0.s8 %v737
    %v739 = vlaneseq
    %v740 = vshrl.u32 %v739, 7
    %v741 = vsub.s32 %v738, %v740
    %v742 = vrot.slane %v728, %v741
    %v743 = vcombine.high %v719, 0.0
    %v744 = vcombine.high %v726, 0.0
    %v745 = vcombine.high %v735, 0.0
    %v746 = vcombine.high %v742, 0.0
    %v747 = vcombine.low %v651, %v658
    %v749 = vunpack.c.l.s4 1983009808
    %v750 = vunpack.c.0.s8 %v749
    %v751 = vlaneseq
    %v752 = vshrl.u32 %v751, 7
    %v753 = vsub.s32 %v750, %v752
    %v754 = vrot.slane %v747, %v753
    %v755 = vcombine.low %v675, %v676
    %v757 = vunpack.c.l.s4 1983009808
    %v758 = vunpack.c.0.s8 %v757
    %v759 = vlaneseq
    %v760 = vshrl.u32 %v759, 7
    %v761 = vsub.s32 %v758, %v760
    %v762 = vrot.slane %v755, %v761
    %v763 = vcombine.low %v667, %v674
    %v765 = vunpack.c.l.s4 1983009808
    %v766 = vunpack.c.0.s8 %v765
    %v767 = vlaneseq
    %v768 = vshrl.u32 %v767, 7
    %v769 = vsub.s32 %v766, %v768
    %v770 = vrot.slane %v763, %v769
    %v771 = vcombine.low %v677, %v678
    %v773 = vunpack.c.l.s4 1983009808
    %v774 = vunpack.c.0.s8 %v773
    %v775 = vlaneseq
    %v776 = vshrl.u32 %v775, 7
    %v777 = vsub.s32 %v774, %v776
    %v778 = vrot.slane %v771, %v777
    %v779 = vcombine.low %v754, %v762
    %v780 = vcombine.high %v754, %v762
    %v782 = vunpack.c.l.s4 1934713408
    %v783 = vunpack.c.0.s8 %v782
    %v784 = vlaneseq
    %v785 = vshrl.u32 %v784, 7
    %v786 = vsub.s32 %v783, %v785
    %v787 = vrot.slane %v779, %v786
    %v789 = vunpack.c.l.s4 1934713408
    %v790 = vunpack.c.0.s8 %v789
    %v791 = vlaneseq
    %v792 = vshrl.u32 %v791, 7
    %v793 = vsub.s32 %v790, %v792
    %v794 = vrot.slane %v780, %v793
    %v795 = vcombine.low %v770, %v778
    %v796 = vcombine.high %v770, %v778
    %v798 = vunpack.c.l.s4 1934713408
    %v799 = vunpack.c.0.s8 %v798
    %v800 = vlaneseq
    %v801 = vshrl.u32 %v800, 7
    %v802 = vsub.s32 %v799, %v801
    %v803 = vrot.slane %v795, %v802
    %v805 = vunpack.c.l.s4 1934713408
    %v806 = vunpack.c.0.s8 %v805
    %v807 = vlaneseq
    %v808 = vshrl.u32 %v807, 7
    %v809 = vsub.s32 %v806, %v808
    %v810 = vrot.slane %v796, %v809
    %v811 = vcombine.low %v787, %v803
    %v812 = vcombine.high %v787, %v803
    %v813 = vcombine.low %v794, %v810
    %v814 = vcombine.high %v794, %v810
    %v815 = vcombine.low %v719, %v726
    %v817 = vunpack.c.l.s4 1983009808
    %v818 = vunpack.c.0.s8 %v817
    %v819 = vlaneseq
    %v820 = vshrl.u32 %v819, 7
    %v821 = vsub.s32 %v818, %v820
    %v822 = vrot.slane %v815, %v821
    %v823 = vcombine.low %v743, %v744
    %v825 = vunpack.c.l.s4 1983009808
    %v826 = vunpack.c.0.s8 %v825
    %v827 = vlaneseq
    %v828 = vshrl.u32 %v827, 7
    %v829 = vsub.s32 %v826, %v828
    %v830 = vrot.slane %v823, %v829
    %v831 = vcombine.low %v735, %v742
    %v833 = vunpack.c.l.s4 1983009808
    %v834 = vunpack.c.0.s8 %v833
    %v835 = vlaneseq
    %v836 = vshrl.u32 %v835, 7
    %v837 = vsub.s32 %v834, %v836
    %v838 = vrot.slane %v831, %v837
    %v839 = vcombine.low %v745, %v746
    %v841 = vunpack.c.l.s4 1983009808
    %v842 = vunpack.c.0.s8 %v841
    %v843 = vlaneseq
    %v844 = vshrl.u32 %v843, 7
    %v845 = vsub.s32 %v842, %v844
    %v846 = vrot.slane %v839, %v845
    %v847 = vcombine.low %v822, %v830
    %v848 = vcombine.high %v822, %v830
    %v850 = vunpack.c.l.s4 1934713408
    %v851 = vunpack.c.0.s8 %v850
    %v852 = vlaneseq
    %v853 = vshrl.u32 %v852, 7
    %v854 = vsub.s32 %v851, %v853
    %v855 = vrot.slane %v847, %v854
    %v857 = vunpack.c.l.s4 1934713408
    %v858 = vunpack.c.0.s8 %v857
    %v859 = vlaneseq
    %v860 = vshrl.u32 %v859, 7
    %v861 = vsub.s32 %v858, %v860
    %v862 = vrot.slane %v848, %v861
    %v863 = vcombine.low %v838, %v846
    %v864 = vcombine.high %v838, %v846
    %v866 = vunpack.c.l.s4 1934713408
    %v867 = vunpack.c.0.s8 %v866
    %v868 = vlaneseq
    %v869 = vshrl.u32 %v868, 7
    %v870 = vsub.s32 %v867, %v869
    %v871 = vrot.slane %v863, %v870
    %v873 = vunpack.c.l.s4 1934713408
    %v874 = vunpack.c.0.s8 %v873
    %v875 = vlaneseq
    %v876 = vshrl.u32 %v875, 7
    %v877 = vsub.s32 %v874, %v876
    %v878 = vrot.slane %v864, %v877
    %v879 = vcombine.low %v855, %v871
    %v880 = vcombine.high %v855, %v871
    %v881 = vcombine.low %v862, %v878
    %v882 = vcombine.high %v862, %v878
    %v883 = vpack.c.bf16 %v811, %v811
    %v884 = vpack.c.bf16 %v812, %v812
    %v885 = vpack.c.bf16 %v813, %v813
    %v886 = vpack.c.bf16 %v814, %v814
    %v887 = vpack.c.bf16 %v879, %v879
    %v888 = vpack.c.bf16 %v880, %v880
    %v889 = vpack.c.bf16 %v881, %v881
    %v890 = vpack.c.bf16 %v882, %v882
    %893 = vrot.lane.b32.xlu0 %v285, 120
    %v894 = vpop.permute.xlu0 %893
    %895 = vrot.lane.b32.xlu0 %v288, 120
    %v896 = vpop.permute.xlu0 %895
    %899 = vrot.lane.b32.xlu0 %v285, 112
    %v900 = vpop.permute.xlu0 %899
    %901 = vrot.lane.b32.xlu0 %v288, 112
    %v902 = vpop.permute.xlu0 %901
    %905 = vrot.lane.b32.xlu0 %v285, 104
    %v906 = vpop.permute.xlu0 %905
    %907 = vrot.lane.b32.xlu0 %v288, 104
    %v908 = vpop.permute.xlu0 %907
    %v911 = vcombine.low %v285, %v900
    %v912 = vcombine.high %v285, %v900
    %v914 = vunpack.c.l.s4 1983009808
    %v915 = vunpack.c.0.s8 %v914
    %v916 = vlaneseq
    %v917 = vshrl.u32 %v916, 7
    %v918 = vsub.s32 %v915, %v917
    %v919 = vrot.slane %v911, %v918
    %v921 = vunpack.c.l.s4 1983009808
    %v922 = vunpack.c.0.s8 %v921
    %v923 = vlaneseq
    %v924 = vshrl.u32 %v923, 7
    %v925 = vsub.s32 %v922, %v924
    %v926 = vrot.slane %v912, %v925
    %v927 = vcombine.low %v894, %v906
    %v928 = vcombine.high %v894, %v906
    %v930 = vunpack.c.l.s4 1983009808
    %v931 = vunpack.c.0.s8 %v930
    %v932 = vlaneseq
    %v933 = vshrl.u32 %v932, 7
    %v934 = vsub.s32 %v931, %v933
    %v935 = vrot.slane %v927, %v934
    %v937 = vunpack.c.l.s4 1983009808
    %v938 = vunpack.c.0.s8 %v937
    %v939 = vlaneseq
    %v940 = vshrl.u32 %v939, 7
    %v941 = vsub.s32 %v938, %v940
    %v942 = vrot.slane %v928, %v941
    %v943 = vcombine.low %v919, %v935
    %v944 = vcombine.high %v919, %v935
    %v946 = vunpack.c.l.s4 1934713408
    %v947 = vunpack.c.0.s8 %v946
    %v948 = vlaneseq
    %v949 = vshrl.u32 %v948, 7
    %v950 = vsub.s32 %v947, %v949
    %v951 = vrot.slane %v943, %v950
    %v953 = vunpack.c.l.s4 1934713408
    %v954 = vunpack.c.0.s8 %v953
    %v955 = vlaneseq
    %v956 = vshrl.u32 %v955, 7
    %v957 = vsub.s32 %v954, %v956
    %v958 = vrot.slane %v944, %v957
    %v959 = vcombine.low %v926, %v942
    %v960 = vcombine.high %v926, %v942
    %v962 = vunpack.c.l.s4 1934713408
    %v963 = vunpack.c.0.s8 %v962
    %v964 = vlaneseq
    %v965 = vshrl.u32 %v964, 7
    %v966 = vsub.s32 %v963, %v965
    %v967 = vrot.slane %v959, %v966
    %v969 = vunpack.c.l.s4 1934713408
    %v970 = vunpack.c.0.s8 %v969
    %v971 = vlaneseq
    %v972 = vshrl.u32 %v971, 7
    %v973 = vsub.s32 %v970, %v972
    %v974 = vrot.slane %v960, %v973
    %v975 = vcombine.high %v951, 0.0
    %v976 = vcombine.high %v958, 0.0
    %v977 = vcombine.high %v967, 0.0
    %v978 = vcombine.high %v974, 0.0
    %v979 = vcombine.low %v288, %v902
    %v980 = vcombine.high %v288, %v902
    %v982 = vunpack.c.l.s4 1983009808
    %v983 = vunpack.c.0.s8 %v982
    %v984 = vlaneseq
    %v985 = vshrl.u32 %v984, 7
    %v986 = vsub.s32 %v983, %v985
    %v987 = vrot.slane %v979, %v986
    %v989 = vunpack.c.l.s4 1983009808
    %v990 = vunpack.c.0.s8 %v989
    %v991 = vlaneseq
    %v992 = vshrl.u32 %v991, 7
    %v993 = vsub.s32 %v990, %v992
    %v994 = vrot.slane %v980, %v993
    %v995 = vcombine.low %v896, %v908
    %v996 = vcombine.high %v896, %v908
    %v998 = vunpack.c.l.s4 1983009808
    %v999 = vunpack.c.0.s8 %v998
    %v1000 = vlaneseq
    %v1001 = vshrl.u32 %v1000, 7
    %v1002 = vsub.s32 %v999, %v1001
    %v1003 = vrot.slane %v995, %v1002
    %v1005 = vunpack.c.l.s4 1983009808
    %v1006 = vunpack.c.0.s8 %v1005
    %v1007 = vlaneseq
    %v1008 = vshrl.u32 %v1007, 7
    %v1009 = vsub.s32 %v1006, %v1008
    %v1010 = vrot.slane %v996, %v1009
    %v1011 = vcombine.low %v987, %v1003
    %v1012 = vcombine.high %v987, %v1003
    %v1014 = vunpack.c.l.s4 1934713408
    %v1015 = vunpack.c.0.s8 %v1014
    %v1016 = vlaneseq
    %v1017 = vshrl.u32 %v1016, 7
    %v1018 = vsub.s32 %v1015, %v1017
    %v1019 = vrot.slane %v1011, %v1018
    %v1021 = vunpack.c.l.s4 1934713408
    %v1022 = vunpack.c.0.s8 %v1021
    %v1023 = vlaneseq
    %v1024 = vshrl.u32 %v1023, 7
    %v1025 = vsub.s32 %v1022, %v1024
    %v1026 = vrot.slane %v1012, %v1025
    %v1027 = vcombine.low %v994, %v1010
    %v1028 = vcombine.high %v994, %v1010
    %v1030 = vunpack.c.l.s4 1934713408
    %v1031 = vunpack.c.0.s8 %v1030
    %v1032 = vlaneseq
    %v1033 = vshrl.u32 %v1032, 7
    %v1034 = vsub.s32 %v1031, %v1033
    %v1035 = vrot.slane %v1027, %v1034
    %v1037 = vunpack.c.l.s4 1934713408
    %v1038 = vunpack.c.0.s8 %v1037
    %v1039 = vlaneseq
    %v1040 = vshrl.u32 %v1039, 7
    %v1041 = vsub.s32 %v1038, %v1040
    %v1042 = vrot.slane %v1028, %v1041
    %v1043 = vcombine.high %v1019, 0.0
    %v1044 = vcombine.high %v1026, 0.0
    %v1045 = vcombine.high %v1035, 0.0
    %v1046 = vcombine.high %v1042, 0.0
    %v1047 = vcombine.low %v951, %v958
    %v1049 = vunpack.c.l.s4 1983009808
    %v1050 = vunpack.c.0.s8 %v1049
    %v1051 = vlaneseq
    %v1052 = vshrl.u32 %v1051, 7
    %v1053 = vsub.s32 %v1050, %v1052
    %v1054 = vrot.slane %v1047, %v1053
    %v1055 = vcombine.low %v975, %v976
    %v1057 = vunpack.c.l.s4 1983009808
    %v1058 = vunpack.c.0.s8 %v1057
    %v1059 = vlaneseq
    %v1060 = vshrl.u32 %v1059, 7
    %v1061 = vsub.s32 %v1058, %v1060
    %v1062 = vrot.slane %v1055, %v1061
    %v1063 = vcombine.low %v967, %v974
    %v1065 = vunpack.c.l.s4 1983009808
    %v1066 = vunpack.c.0.s8 %v1065
    %v1067 = vlaneseq
    %v1068 = vshrl.u32 %v1067, 7
    %v1069 = vsub.s32 %v1066, %v1068
    %v1070 = vrot.slane %v1063, %v1069
    %v1071 = vcombine.low %v977, %v978
    %v1073 = vunpack.c.l.s4 1983009808
    %v1074 = vunpack.c.0.s8 %v1073
    %v1075 = vlaneseq
    %v1076 = vshrl.u32 %v1075, 7
    %v1077 = vsub.s32 %v1074, %v1076
    %v1078 = vrot.slane %v1071, %v1077
    %v1079 = vcombine.low %v1054, %v1062
    %v1080 = vcombine.high %v1054, %v1062
    %v1082 = vunpack.c.l.s4 1934713408
    %v1083 = vunpack.c.0.s8 %v1082
    %v1084 = vlaneseq
    %v1085 = vshrl.u32 %v1084, 7
    %v1086 = vsub.s32 %v1083, %v1085
    %v1087 = vrot.slane %v1079, %v1086
    %v1089 = vunpack.c.l.s4 1934713408
    %v1090 = vunpack.c.0.s8 %v1089
    %v1091 = vlaneseq
    %v1092 = vshrl.u32 %v1091, 7
    %v1093 = vsub.s32 %v1090, %v1092
    %v1094 = vrot.slane %v1080, %v1093
    %v1095 = vcombine.low %v1070, %v1078
    %v1096 = vcombine.high %v1070, %v1078
    %v1098 = vunpack.c.l.s4 1934713408
    %v1099 = vunpack.c.0.s8 %v1098
    %v1100 = vlaneseq
    %v1101 = vshrl.u32 %v1100, 7
    %v1102 = vsub.s32 %v1099, %v1101
    %v1103 = vrot.slane %v1095, %v1102
    %v1105 = vunpack.c.l.s4 1934713408
    %v1106 = vunpack.c.0.s8 %v1105
    %v1107 = vlaneseq
    %v1108 = vshrl.u32 %v1107, 7
    %v1109 = vsub.s32 %v1106, %v1108
    %v1110 = vrot.slane %v1096, %v1109
    %v1111 = vcombine.low %v1087, %v1103
    %v1112 = vcombine.high %v1087, %v1103
    %v1113 = vcombine.low %v1094, %v1110
    %v1114 = vcombine.high %v1094, %v1110
    %v1115 = vcombine.low %v1019, %v1026
    %v1117 = vunpack.c.l.s4 1983009808
    %v1118 = vunpack.c.0.s8 %v1117
    %v1119 = vlaneseq
    %v1120 = vshrl.u32 %v1119, 7
    %v1121 = vsub.s32 %v1118, %v1120
    %v1122 = vrot.slane %v1115, %v1121
    %v1123 = vcombine.low %v1043, %v1044
    %v1125 = vunpack.c.l.s4 1983009808
    %v1126 = vunpack.c.0.s8 %v1125
    %v1127 = vlaneseq
    %v1128 = vshrl.u32 %v1127, 7
    %v1129 = vsub.s32 %v1126, %v1128
    %v1130 = vrot.slane %v1123, %v1129
    %v1131 = vcombine.low %v1035, %v1042
    %v1133 = vunpack.c.l.s4 1983009808
    %v1134 = vunpack.c.0.s8 %v1133
    %v1135 = vlaneseq
    %v1136 = vshrl.u32 %v1135, 7
    %v1137 = vsub.s32 %v1134, %v1136
    %v1138 = vrot.slane %v1131, %v1137
    %v1139 = vcombine.low %v1045, %v1046
    %v1141 = vunpack.c.l.s4 1983009808
    %v1142 = vunpack.c.0.s8 %v1141
    %v1143 = vlaneseq
    %v1144 = vshrl.u32 %v1143, 7
    %v1145 = vsub.s32 %v1142, %v1144
    %v1146 = vrot.slane %v1139, %v1145
    %v1147 = vcombine.low %v1122, %v1130
    %v1148 = vcombine.high %v1122, %v1130
    %v1150 = vunpack.c.l.s4 1934713408
    %v1151 = vunpack.c.0.s8 %v1150
    %v1152 = vlaneseq
    %v1153 = vshrl.u32 %v1152, 7
    %v1154 = vsub.s32 %v1151, %v1153
    %v1155 = vrot.slane %v1147, %v1154
    %v1157 = vunpack.c.l.s4 1934713408
    %v1158 = vunpack.c.0.s8 %v1157
    %v1159 = vlaneseq
    %v1160 = vshrl.u32 %v1159, 7
    %v1161 = vsub.s32 %v1158, %v1160
    %v1162 = vrot.slane %v1148, %v1161
    %v1163 = vcombine.low %v1138, %v1146
    %v1164 = vcombine.high %v1138, %v1146
    %v1166 = vunpack.c.l.s4 1934713408
    %v1167 = vunpack.c.0.s8 %v1166
    %v1168 = vlaneseq
    %v1169 = vshrl.u32 %v1168, 7
    %v1170 = vsub.s32 %v1167, %v1169
    %v1171 = vrot.slane %v1163, %v1170
    %v1173 = vunpack.c.l.s4 1934713408
    %v1174 = vunpack.c.0.s8 %v1173
    %v1175 = vlaneseq
    %v1176 = vshrl.u32 %v1175, 7
    %v1177 = vsub.s32 %v1174, %v1176
    %v1178 = vrot.slane %v1164, %v1177
    %v1179 = vcombine.low %v1155, %v1171
    %v1180 = vcombine.high %v1155, %v1171
    %v1181 = vcombine.low %v1162, %v1178
    %v1182 = vcombine.high %v1162, %v1178
    %v1183 = vpack.c.bf16 %v1111, %v1111
    %v1184 = vpack.c.bf16 %v1112, %v1112
    %v1185 = vpack.c.bf16 %v1113, %v1113
    %v1186 = vpack.c.bf16 %v1114, %v1114
    %v1187 = vpack.c.bf16 %v1179, %v1179
    %v1188 = vpack.c.bf16 %v1180, %v1180
    %v1189 = vpack.c.bf16 %v1181, %v1181
    %v1190 = vpack.c.bf16 %v1182, %v1182
    %v1193 = vlaneseq
    %v1194 = vshrl.u32 %v1193, 7
    %v1195 = vsub.s32 0, %v1194
    %v1196 = vrot.slane %v46, %v1195
    %v1197 = vlaneseq
    %v1198 = vshrl.u32 %v1197, 7
    %v1199 = vsub.s32 0, %v1198
    %v1200 = vrot.slane %v47, %v1199
    %vm1203 = vcmask 64512
    %v1205 = vsel %vm1203, %v583, 0
    %v1208 = vsel %vm1203, %v883, 0
    %1210 = vmatprep.subr.bf16.mxu0 0
    %1211 = vmatpush1.bf16.xpose.msra.mxu0 %v1208
    %1212 = vmatprep.subr.bf16.mxu0 0
    %1213 = vmatpush1.bf16.xpose.msra.mxu0 0
    %1214 = vmatprep.subr.bf16.mxu0 0
    %1215 = vmatpush1.bf16.xpose.msra.mxu0 0
    %1216 = vmatprep.subr.bf16.mxu0 0
    %1217 = vmatpush1.bf16.xpose.msra.mxu0 0
    %1218 = vmatprep.subr.bf16.mxu0 0
    %1219 = vmatpush1.bf16.xpose.msra.mxu0 0
    %1220 = vmatprep.subr.bf16.mxu0 0
    %1221 = vmatpush1.bf16.xpose.msra.mxu0 0
    %1222 = vmatprep.subr.bf16.mxu0 0
    %1223 = vmatpush1.bf16.xpose.msra.mxu0 0
    %1224 = vmatprep.subr.bf16.mxu0 0
    %1225 = vmatpush1.bf16.xpose.msra.mxu0 0
    %1226 = vmatprep.subr.bf16.mxu0 0
    %1227 = vmatpush1.bf16.xpose.msra.mxu0 0
    %1228 = vmatprep.subr.bf16.mxu0 0
    %1229 = vmatpush1.bf16.xpose.msra.mxu0 0
    %1230 = vmatprep.subr.bf16.mxu0 0
    %1231 = vmatpush1.bf16.xpose.msra.mxu0 0
    %1232 = vmatprep.subr.bf16.mxu0 0
    %1233 = vmatpush1.bf16.xpose.msra.mxu0 0
    %1234 = vmatprep.subr.bf16.mxu0 0
    %1235 = vmatpush1.bf16.xpose.msra.mxu0 0
    %1236 = vmatprep.subr.bf16.mxu0 0
    %1237 = vmatpush1.bf16.xpose.msra.mxu0 0
    %1238 = vmatprep.subr.bf16.mxu0 0
    %1239 = vmatpush1.bf16.xpose.msra.mxu0 0
    %1240 = vmatprep.subr.bf16.mxu0 0
    %1241 = vmatpush1.bf16.xpose.msra.mxu0 0
    %1242 = vmatprep.mubr.bf16.mxu0 0
    %1243 = vmatmul.mubr.bf16.gmra.mrb[0].mxu0 %v1205
    %v1244 = vpop.f32.mrb[0].mxu0
    %v1245 = vadd.f32 %v1196, %v1244
    %v1246 = vpop.f32.mrb[0].mxu0
    %v1247 = vpop.f32.mrb[0].mxu0
    %v1248 = vpop.f32.mrb[0].mxu0
    %1249 = vdwg.mxu0
    %v1251 = vsel %vm1203, %v584, 0
    %v1254 = vsel %vm1203, %v884, 0
    %1256 = vmatprep.subr.bf16.mxu0 0
    %1257 = vmatpush1.bf16.xpose.msra.mxu0 %v1254
    %1258 = vmatprep.subr.bf16.mxu0 0
    %1259 = vmatpush1.bf16.xpose.msra.mxu0 0
    %1260 = vmatprep.subr.bf16.mxu0 0
    %1261 = vmatpush1.bf16.xpose.msra.mxu0 0
    %1262 = vmatprep.subr.bf16.mxu0 0
    %1263 = vmatpush1.bf16.xpose.msra.mxu0 0
    %1264 = vmatprep.subr.bf16.mxu0 0
    %1265 = vmatpush1.bf16.xpose.msra.mxu0 0
    %1266 = vmatprep.subr.bf16.mxu0 0
    %1267 = vmatpush1.bf16.xpose.msra.mxu0 0
    %1268 = vmatprep.subr.bf16.mxu0 0
    %1269 = vmatpush1.bf16.xpose.msra.mxu0 0
    %1270 = vmatprep.subr.bf16.mxu0 0
    %1271 = vmatpush1.bf16.xpose.msra.mxu0 0
    %1272 = vmatprep.subr.bf16.mxu0 0
    %1273 = vmatpush1.bf16.xpose.msra.mxu0 0
    %1274 = vmatprep.subr.bf16.mxu0 0
    %1275 = vmatpush1.bf16.xpose.msra.mxu0 0
    %1276 = vmatprep.subr.bf16.mxu0 0
    %1277 = vmatpush1.bf16.xpose.msra.mxu0 0
    %1278 = vmatprep.subr.bf16.mxu0 0
    %1279 = vmatpush1.bf16.xpose.msra.mxu0 0
    %1280 = vmatprep.subr.bf16.mxu0 0
    %1281 = vmatpush1.bf16.xpose.msra.mxu0 0
    %1282 = vmatprep.subr.bf16.mxu0 0
    %1283 = vmatpush1.bf16.xpose.msra.mxu0 0
    %1284 = vmatprep.subr.bf16.mxu0 0
    %1285 = vmatpush1.bf16.xpose.msra.mxu0 0
    %1286 = vmatprep.subr.bf16.mxu0 0
    %1287 = vmatpush1.bf16.xpose.msra.mxu0 0
    %1288 = vmatprep.mubr.bf16.mxu0 0
    %1289 = vmatmul.mubr.bf16.gmra.mrb[0].mxu0 %v1251
    %v1290 = vpop.f32.mrb[0].mxu0
    %v1291 = vadd.f32 %v1196, %v1290
    %v1292 = vpop.f32.mrb[0].mxu0
    %v1293 = vpop.f32.mrb[0].mxu0
    %v1294 = vpop.f32.mrb[0].mxu0
    %1295 = vdwg.mxu0
    %v1297 = vsel %vm1203, %v585, 0
    %v1300 = vsel %vm1203, %v885, 0
    %1302 = vmatprep.subr.bf16.mxu0 0
    %1303 = vmatpush1.bf16.xpose.msra.mxu0 %v1300
    %1304 = vmatprep.subr.bf16.mxu0 0
    %1305 = vmatpush1.bf16.xpose.msra.mxu0 0
    %1306 = vmatprep.subr.bf16.mxu0 0
    %1307 = vmatpush1.bf16.xpose.msra.mxu0 0
    %1308 = vmatprep.subr.bf16.mxu0 0
    %1309 = vmatpush1.bf16.xpose.msra.mxu0 0
    %1310 = vmatprep.subr.bf16.mxu0 0
    %1311 = vmatpush1.bf16.xpose.msra.mxu0 0
    %1312 = vmatprep.subr.bf16.mxu0 0
    %1313 = vmatpush1.bf16.xpose.msra.mxu0 0
    %1314 = vmatprep.subr.bf16.mxu0 0
    %1315 = vmatpush1.bf16.xpose.msra.mxu0 0
    %1316 = vmatprep.subr.bf16.mxu0 0
    %1317 = vmatpush1.bf16.xpose.msra.mxu0 0
    %1318 = vmatprep.subr.bf16.mxu0 0
    %1319 = vmatpush1.bf16.xpose.msra.mxu0 0
    %1320 = vmatprep.subr.bf16.mxu0 0
    %1321 = vmatpush1.bf16.xpose.msra.mxu0 0
    %1322 = vmatprep.subr.bf16.mxu0 0
    %1323 = vmatpush1.bf16.xpose.msra.mxu0 0
    %1324 = vmatprep.subr.bf16.mxu0 0
    %1325 = vmatpush1.bf16.xpose.msra.mxu0 0
    %1326 = vmatprep.subr.bf16.mxu0 0
    %1327 = vmatpush1.bf16.xpose.msra.mxu0 0
    %1328 = vmatprep.subr.bf16.mxu0 0
    %1329 = vmatpush1.bf16.xpose.msra.mxu0 0
    %1330 = vmatprep.subr.bf16.mxu0 0
    %1331 = vmatpush1.bf16.xpose.msra.mxu0 0
    %1332 = vmatprep.subr.bf16.mxu0 0
    %1333 = vmatpush1.bf16.xpose.msra.mxu0 0
    %1334 = vmatprep.mubr.bf16.mxu0 0
    %1335 = vmatmul.mubr.bf16.gmra.mrb[0].mxu0 %v1297
    %v1336 = vpop.f32.mrb[0].mxu0
    %v1337 = vadd.f32 %v1196, %v1336
    %v1338 = vpop.f32.mrb[0].mxu0
    %v1339 = vpop.f32.mrb[0].mxu0
    %v1340 = vpop.f32.mrb[0].mxu0
    %1341 = vdwg.mxu0
    %v1343 = vsel %vm1203, %v586, 0
    %v1346 = vsel %vm1203, %v886, 0
    %1348 = vmatprep.subr.bf16.mxu0 0
    %1349 = vmatpush1.bf16.xpose.msra.mxu0 %v1346
    %1350 = vmatprep.subr.bf16.mxu0 0
    %1351 = vmatpush1.bf16.xpose.msra.mxu0 0
    %1352 = vmatprep.subr.bf16.mxu0 0
    %1353 = vmatpush1.bf16.xpose.msra.mxu0 0
    %1354 = vmatprep.subr.bf16.mxu0 0
    %1355 = vmatpush1.bf16.xpose.msra.mxu0 0
    %1356 = vmatprep.subr.bf16.mxu0 0
    %1357 = vmatpush1.bf16.xpose.msra.mxu0 0
    %1358 = vmatprep.subr.bf16.mxu0 0
    %1359 = vmatpush1.bf16.xpose.msra.mxu0 0
    %1360 = vmatprep.subr.bf16.mxu0 0
    %1361 = vmatpush1.bf16.xpose.msra.mxu0 0
    %1362 = vmatprep.subr.bf16.mxu0 0
    %1363 = vmatpush1.bf16.xpose.msra.mxu0 0
    %1364 = vmatprep.subr.bf16.mxu0 0
    %1365 = vmatpush1.bf16.xpose.msra.mxu0 0
    %1366 = vmatprep.subr.bf16.mxu0 0
    %1367 = vmatpush1.bf16.xpose.msra.mxu0 0
    %1368 = vmatprep.subr.bf16.mxu0 0
    %1369 = vmatpush1.bf16.xpose.msra.mxu0 0
    %1370 = vmatprep.subr.bf16.mxu0 0
    %1371 = vmatpush1.bf16.xpose.msra.mxu0 0
    %1372 = vmatprep.subr.bf16.mxu0 0
    %1373 = vmatpush1.bf16.xpose.msra.mxu0 0
    %1374 = vmatprep.subr.bf16.mxu0 0
    %1375 = vmatpush1.bf16.xpose.msra.mxu0 0
    %1376 = vmatprep.subr.bf16.mxu0 0
    %1377 = vmatpush1.bf16.xpose.msra.mxu0 0
    %1378 = vmatprep.subr.bf16.mxu0 0
    %1379 = vmatpush1.bf16.xpose.msra.mxu0 0
    %1380 = vmatprep.mubr.bf16.mxu0 0
    %1381 = vmatmul.mubr.bf16.gmra.mrb[0].mxu0 %v1343
    %v1382 = vpop.f32.mrb[0].mxu0
    %v1383 = vadd.f32 %v1196, %v1382
    %v1384 = vpop.f32.mrb[0].mxu0
    %v1385 = vpop.f32.mrb[0].mxu0
    %v1386 = vpop.f32.mrb[0].mxu0
    %1387 = vdwg.mxu0
    %v1389 = vsel %vm1203, %v587, 0
    %v1392 = vsel %vm1203, %v887, 0
    %1394 = vmatprep.subr.bf16.mxu0 0
    %1395 = vmatpush1.bf16.xpose.msra.mxu0 %v1392
    %1396 = vmatprep.subr.bf16.mxu0 0
    %1397 = vmatpush1.bf16.xpose.msra.mxu0 0
    %1398 = vmatprep.subr.bf16.mxu0 0
    %1399 = vmatpush1.bf16.xpose.msra.mxu0 0
    %1400 = vmatprep.subr.bf16.mxu0 0
    %1401 = vmatpush1.bf16.xpose.msra.mxu0 0
    %1402 = vmatprep.subr.bf16.mxu0 0
    %1403 = vmatpush1.bf16.xpose.msra.mxu0 0
    %1404 = vmatprep.subr.bf16.mxu0 0
    %1405 = vmatpush1.bf16.xpose.msra.mxu0 0
    %1406 = vmatprep.subr.bf16.mxu0 0
    %1407 = vmatpush1.bf16.xpose.msra.mxu0 0
    %1408 = vmatprep.subr.bf16.mxu0 0
    %1409 = vmatpush1.bf16.xpose.msra.mxu0 0
    %1410 = vmatprep.subr.bf16.mxu0 0
    %1411 = vmatpush1.bf16.xpose.msra.mxu0 0
    %1412 = vmatprep.subr.bf16.mxu0 0
    %1413 = vmatpush1.bf16.xpose.msra.mxu0 0
    %1414 = vmatprep.subr.bf16.mxu0 0
    %1415 = vmatpush1.bf16.xpose.msra.mxu0 0
    %1416 = vmatprep.subr.bf16.mxu0 0
    %1417 = vmatpush1.bf16.xpose.msra.mxu0 0
    %1418 = vmatprep.subr.bf16.mxu0 0
    %1419 = vmatpush1.bf16.xpose.msra.mxu0 0
    %1420 = vmatprep.subr.bf16.mxu0 0
    %1421 = vmatpush1.bf16.xpose.msra.mxu0 0
    %1422 = vmatprep.subr.bf16.mxu0 0
    %1423 = vmatpush1.bf16.xpose.msra.mxu0 0
    %1424 = vmatprep.subr.bf16.mxu0 0
    %1425 = vmatpush1.bf16.xpose.msra.mxu0 0
    %1426 = vmatprep.mubr.bf16.mxu0 0
    %1427 = vmatmul.mubr.bf16.gmra.mrb[0].mxu0 %v1389
    %v1428 = vpop.f32.mrb[0].mxu0
    %v1429 = vadd.f32 %v1200, %v1428
    %v1430 = vpop.f32.mrb[0].mxu0
    %v1431 = vpop.f32.mrb[0].mxu0
    %v1432 = vpop.f32.mrb[0].mxu0
    %1433 = vdwg.mxu0
    %v1435 = vsel %vm1203, %v588, 0
    %v1438 = vsel %vm1203, %v888, 0
    %1440 = vmatprep.subr.bf16.mxu0 0
    %1441 = vmatpush1.bf16.xpose.msra.mxu0 %v1438
    %1442 = vmatprep.subr.bf16.mxu0 0
    %1443 = vmatpush1.bf16.xpose.msra.mxu0 0
    %1444 = vmatprep.subr.bf16.mxu0 0
    %1445 = vmatpush1.bf16.xpose.msra.mxu0 0
    %1446 = vmatprep.subr.bf16.mxu0 0
    %1447 = vmatpush1.bf16.xpose.msra.mxu0 0
    %1448 = vmatprep.subr.bf16.mxu0 0
    %1449 = vmatpush1.bf16.xpose.msra.mxu0 0
    %1450 = vmatprep.subr.bf16.mxu0 0
    %1451 = vmatpush1.bf16.xpose.msra.mxu0 0
    %1452 = vmatprep.subr.bf16.mxu0 0
    %1453 = vmatpush1.bf16.xpose.msra.mxu0 0
    %1454 = vmatprep.subr.bf16.mxu0 0
    %1455 = vmatpush1.bf16.xpose.msra.mxu0 0
    %1456 = vmatprep.subr.bf16.mxu0 0
    %1457 = vmatpush1.bf16.xpose.msra.mxu0 0
    %1458 = vmatprep.subr.bf16.mxu0 0
    %1459 = vmatpush1.bf16.xpose.msra.mxu0 0
    %1460 = vmatprep.subr.bf16.mxu0 0
    %1461 = vmatpush1.bf16.xpose.msra.mxu0 0
    %1462 = vmatprep.subr.bf16.mxu0 0
    %1463 = vmatpush1.bf16.xpose.msra.mxu0 0
    %1464 = vmatprep.subr.bf16.mxu0 0
    %1465 = vmatpush1.bf16.xpose.msra.mxu0 0
    %1466 = vmatprep.subr.bf16.mxu0 0
    %1467 = vmatpush1.bf16.xpose.msra.mxu0 0
    %1468 = vmatprep.subr.bf16.mxu0 0
    %1469 = vmatpush1.bf16.xpose.msra.mxu0 0
    %1470 = vmatprep.subr.bf16.mxu0 0
    %1471 = vmatpush1.bf16.xpose.msra.mxu0 0
    %1472 = vmatprep.mubr.bf16.mxu0 0
    %1473 = vmatmul.mubr.bf16.gmra.mrb[0].mxu0 %v1435
    %v1474 = vpop.f32.mrb[0].mxu0
    %v1475 = vadd.f32 %v1200, %v1474
    %v1476 = vpop.f32.mrb[0].mxu0
    %v1477 = vpop.f32.mrb[0].mxu0
    %v1478 = vpop.f32.mrb[0].mxu0
    %1479 = vdwg.mxu0
    %v1481 = vsel %vm1203, %v589, 0
    %v1484 = vsel %vm1203, %v889, 0
    %1486 = vmatprep.subr.bf16.mxu0 0
    %1487 = vmatpush1.bf16.xpose.msra.mxu0 %v1484
    %1488 = vmatprep.subr.bf16.mxu0 0
    %1489 = vmatpush1.bf16.xpose.msra.mxu0 0
    %1490 = vmatprep.subr.bf16.mxu0 0
    %1491 = vmatpush1.bf16.xpose.msra.mxu0 0
    %1492 = vmatprep.subr.bf16.mxu0 0
    %1493 = vmatpush1.bf16.xpose.msra.mxu0 0
    %1494 = vmatprep.subr.bf16.mxu0 0
    %1495 = vmatpush1.bf16.xpose.msra.mxu0 0
    %1496 = vmatprep.subr.bf16.mxu0 0
    %1497 = vmatpush1.bf16.xpose.msra.mxu0 0
    %1498 = vmatprep.subr.bf16.mxu0 0
    %1499 = vmatpush1.bf16.xpose.msra.mxu0 0
    %1500 = vmatprep.subr.bf16.mxu0 0
    %1501 = vmatpush1.bf16.xpose.msra.mxu0 0
    %1502 = vmatprep.subr.bf16.mxu0 0
    %1503 = vmatpush1.bf16.xpose.msra.mxu0 0
    %1504 = vmatprep.subr.bf16.mxu0 0
    %1505 = vmatpush1.bf16.xpose.msra.mxu0 0
    %1506 = vmatprep.subr.bf16.mxu0 0
    %1507 = vmatpush1.bf16.xpose.msra.mxu0 0
    %1508 = vmatprep.subr.bf16.mxu0 0
    %1509 = vmatpush1.bf16.xpose.msra.mxu0 0
    %1510 = vmatprep.subr.bf16.mxu0 0
    %1511 = vmatpush1.bf16.xpose.msra.mxu0 0
    %1512 = vmatprep.subr.bf16.mxu0 0
    %1513 = vmatpush1.bf16.xpose.msra.mxu0 0
    %1514 = vmatprep.subr.bf16.mxu0 0
    %1515 = vmatpush1.bf16.xpose.msra.mxu0 0
    %1516 = vmatprep.subr.bf16.mxu0 0
    %1517 = vmatpush1.bf16.xpose.msra.mxu0 0
    %1518 = vmatprep.mubr.bf16.mxu0 0
    %1519 = vmatmul.mubr.bf16.gmra.mrb[0].mxu0 %v1481
    %v1520 = vpop.f32.mrb[0].mxu0
    %v1521 = vadd.f32 %v1200, %v1520
    %v1522 = vpop.f32.mrb[0].mxu0
    %v1523 = vpop.f32.mrb[0].mxu0
    %v1524 = vpop.f32.mrb[0].mxu0
    %1525 = vdwg.mxu0
    %v1527 = vsel %vm1203, %v590, 0
    %v1530 = vsel %vm1203, %v890, 0
    %1532 = vmatprep.subr.bf16.mxu0 0
    %1533 = vmatpush1.bf16.xpose.msra.mxu0 %v1530
    %1534 = vmatprep.subr.bf16.mxu0 0
    %1535 = vmatpush1.bf16.xpose.msra.mxu0 0
    %1536 = vmatprep.subr.bf16.mxu0 0
    %1537 = vmatpush1.bf16.xpose.msra.mxu0 0
    %1538 = vmatprep.subr.bf16.mxu0 0
    %1539 = vmatpush1.bf16.xpose.msra.mxu0 0
    %1540 = vmatprep.subr.bf16.mxu0 0
    %1541 = vmatpush1.bf16.xpose.msra.mxu0 0
    %1542 = vmatprep.subr.bf16.mxu0 0
    %1543 = vmatpush1.bf16.xpose.msra.mxu0 0
    %1544 = vmatprep.subr.bf16.mxu0 0
    %1545 = vmatpush1.bf16.xpose.msra.mxu0 0
    %1546 = vmatprep.subr.bf16.mxu0 0
    %1547 = vmatpush1.bf16.xpose.msra.mxu0 0
    %1548 = vmatprep.subr.bf16.mxu0 0
    %1549 = vmatpush1.bf16.xpose.msra.mxu0 0
    %1550 = vmatprep.subr.bf16.mxu0 0
    %1551 = vmatpush1.bf16.xpose.msra.mxu0 0
    %1552 = vmatprep.subr.bf16.mxu0 0
    %1553 = vmatpush1.bf16.xpose.msra.mxu0 0
    %1554 = vmatprep.subr.bf16.mxu0 0
    %1555 = vmatpush1.bf16.xpose.msra.mxu0 0
    %1556 = vmatprep.subr.bf16.mxu0 0
    %1557 = vmatpush1.bf16.xpose.msra.mxu0 0
    %1558 = vmatprep.subr.bf16.mxu0 0
    %1559 = vmatpush1.bf16.xpose.msra.mxu0 0
    %1560 = vmatprep.subr.bf16.mxu0 0
    %1561 = vmatpush1.bf16.xpose.msra.mxu0 0
    %1562 = vmatprep.subr.bf16.mxu0 0
    %1563 = vmatpush1.bf16.xpose.msra.mxu0 0
    %1564 = vmatprep.mubr.bf16.mxu0 0
    %1565 = vmatmul.mubr.bf16.gmra.mrb[0].mxu0 %v1527
    %v1566 = vpop.f32.mrb[0].mxu0
    %v1567 = vadd.f32 %v1200, %v1566
    %v1568 = vpop.f32.mrb[0].mxu0
    %v1569 = vpop.f32.mrb[0].mxu0
    %v1570 = vpop.f32.mrb[0].mxu0
    %1571 = vdwg.mxu0
    %v1572 = vsel %vm1203, %v1245, -inf
    %1573 = vmax.xlane.f32.xlu0 %v1572
    %v1574 = vpop.xlane.xlu0 %1573
    %v1575 = vsel %vm1203, %v1291, -inf
    %1576 = vmax.xlane.f32.xlu0 %v1575
    %v1577 = vpop.xlane.xlu0 %1576
    %v1578 = vsel %vm1203, %v1337, -inf
    %1579 = vmax.xlane.f32.xlu0 %v1578
    %v1580 = vpop.xlane.xlu0 %1579
    %v1581 = vsel %vm1203, %v1383, -inf
    %1582 = vmax.xlane.f32.xlu0 %v1581
    %v1583 = vpop.xlane.xlu0 %1582
    %v1584 = vsel %vm1203, %v1429, -inf
    %1585 = vmax.xlane.f32.xlu0 %v1584
    %v1586 = vpop.xlane.xlu0 %1585
    %v1587 = vsel %vm1203, %v1475, -inf
    %1588 = vmax.xlane.f32.xlu0 %v1587
    %v1589 = vpop.xlane.xlu0 %1588
    %v1590 = vsel %vm1203, %v1521, -inf
    %1591 = vmax.xlane.f32.xlu0 %v1590
    %v1592 = vpop.xlane.xlu0 %1591
    %v1593 = vsel %vm1203, %v1567, -inf
    %1594 = vmax.xlane.f32.xlu0 %v1593
    %v1595 = vpop.xlane.xlu0 %1594
    %v1596 = vsub.f32 %v1245, %v1574
    %v1597 = vsub.f32 %v1291, %v1577
    %v1598 = vsub.f32 %v1337, %v1580
    %v1599 = vsub.f32 %v1383, %v1583
    %v1600 = vsub.f32 %v1429, %v1586
    %v1601 = vsub.f32 %v1475, %v1589
    %v1602 = vsub.f32 %v1521, %v1592
    %v1603 = vsub.f32 %v1567, %v1595
    %v1604 = vmul.f32 %v1596, 1.442695
    %v1605 = vpow.pop %v1604
    %v1606 = vmul.f32 %v1597, 1.442695
    %v1607 = vpow.pop %v1606
    %v1608 = vmul.f32 %v1598, 1.442695
    %v1609 = vpow.pop %v1608
    %v1610 = vmul.f32 %v1599, 1.442695
    %v1611 = vpow.pop %v1610
    %v1612 = vmul.f32 %v1600, 1.442695
    %v1613 = vpow.pop %v1612
    %v1614 = vmul.f32 %v1601, 1.442695
    %v1615 = vpow.pop %v1614
    %v1616 = vmul.f32 %v1602, 1.442695
    %v1617 = vpow.pop %v1616
    %v1618 = vmul.f32 %v1603, 1.442695
    %v1619 = vpow.pop %v1618
    %v1620 = vsel %vm1203, %v1605, 0.0
    %1621 = vadd.xlane.f32.xlu0 %v1620
    %v1622 = vpop.xlane.xlu0 %1621
    %v1623 = vsel %vm1203, %v1607, 0.0
    %1624 = vadd.xlane.f32.xlu0 %v1623
    %v1625 = vpop.xlane.xlu0 %1624
    %v1626 = vsel %vm1203, %v1609, 0.0
    %1627 = vadd.xlane.f32.xlu0 %v1626
    %v1628 = vpop.xlane.xlu0 %1627
    %v1629 = vsel %vm1203, %v1611, 0.0
    %1630 = vadd.xlane.f32.xlu0 %v1629
    %v1631 = vpop.xlane.xlu0 %1630
    %v1632 = vsel %vm1203, %v1613, 0.0
    %1633 = vadd.xlane.f32.xlu0 %v1632
    %v1634 = vpop.xlane.xlu0 %1633
    %v1635 = vsel %vm1203, %v1615, 0.0
    %1636 = vadd.xlane.f32.xlu0 %v1635
    %v1637 = vpop.xlane.xlu0 %1636
    %v1638 = vsel %vm1203, %v1617, 0.0
    %1639 = vadd.xlane.f32.xlu0 %v1638
    %v1640 = vpop.xlane.xlu0 %1639
    %v1641 = vsel %vm1203, %v1619, 0.0
    %1642 = vadd.xlane.f32.xlu0 %v1641
    %v1643 = vpop.xlane.xlu0 %1642
    %v1644 = vmax.f32 %v1622, 1e-30
    %v1645 = vmax.f32 %v1625, 1e-30
    %v1646 = vmax.f32 %v1628, 1e-30
    %v1647 = vmax.f32 %v1631, 1e-30
    %v1648 = vmax.f32 %v1634, 1e-30
    %v1649 = vmax.f32 %v1637, 1e-30
    %v1650 = vmax.f32 %v1640, 1e-30
    %v1651 = vmax.f32 %v1643, 1e-30
    %v1652 = vrcp.pop %v1644
    %v1653 = vrcp.pop %v1645
    %v1654 = vrcp.pop %v1646
    %v1655 = vrcp.pop %v1647
    %v1656 = vrcp.pop %v1648
    %v1657 = vrcp.pop %v1649
    %v1658 = vrcp.pop %v1650
    %v1659 = vrcp.pop %v1651
    %v1660 = vmul.f32 %v1605, %v1652
    %v1661 = vmul.f32 %v1607, %v1653
    %v1662 = vmul.f32 %v1609, %v1654
    %v1663 = vmul.f32 %v1611, %v1655
    %v1664 = vmul.f32 %v1613, %v1656
    %v1665 = vmul.f32 %v1615, %v1657
    %v1666 = vmul.f32 %v1617, %v1658
    %v1667 = vmul.f32 %v1619, %v1659
    %v1668 = vpack.c.bf16 %v1660, %v1660
    %v1669 = vpack.c.bf16 %v1661, %v1661
    %v1670 = vpack.c.bf16 %v1662, %v1662
    %v1671 = vpack.c.bf16 %v1663, %v1663
    %v1672 = vpack.c.bf16 %v1664, %v1664
    %v1673 = vpack.c.bf16 %v1665, %v1665
    %v1674 = vpack.c.bf16 %v1666, %v1666
    %v1675 = vpack.c.bf16 %v1667, %v1667
    %v1677 = vsel %vm1203, %v1668, 0
    %vm1679 = vcmask 1043456
    %v1681 = vsel %vm1679, %v1183, 0
    %1683 = vmatprep.subr.bf16.mxu0 0
    %1684 = vmatpush1.bf16.msra.mxu0 %v1681
    %1685 = vmatprep.subr.bf16.mxu0 0
    %1686 = vmatpush1.bf16.msra.mxu0 0
    %1687 = vmatprep.subr.bf16.mxu0 0
    %1688 = vmatpush1.bf16.msra.mxu0 0
    %1689 = vmatprep.subr.bf16.mxu0 0
    %1690 = vmatpush1.bf16.msra.mxu0 0
    %1691 = vmatprep.subr.bf16.mxu0 0
    %1692 = vmatpush1.bf16.msra.mxu0 0
    %1693 = vmatprep.subr.bf16.mxu0 0
    %1694 = vmatpush1.bf16.msra.mxu0 0
    %1695 = vmatprep.subr.bf16.mxu0 0
    %1696 = vmatpush1.bf16.msra.mxu0 0
    %1697 = vmatprep.subr.bf16.mxu0 0
    %1698 = vmatpush1.bf16.msra.mxu0 0
    %1699 = vmatprep.subr.bf16.mxu0 0
    %1700 = vmatpush1.bf16.msra.mxu0 0
    %1701 = vmatprep.subr.bf16.mxu0 0
    %1702 = vmatpush1.bf16.msra.mxu0 0
    %1703 = vmatprep.subr.bf16.mxu0 0
    %1704 = vmatpush1.bf16.msra.mxu0 0
    %1705 = vmatprep.subr.bf16.mxu0 0
    %1706 = vmatpush1.bf16.msra.mxu0 0
    %1707 = vmatprep.subr.bf16.mxu0 0
    %1708 = vmatpush1.bf16.msra.mxu0 0
    %1709 = vmatprep.subr.bf16.mxu0 0
    %1710 = vmatpush1.bf16.msra.mxu0 0
    %1711 = vmatprep.subr.bf16.mxu0 0
    %1712 = vmatpush1.bf16.msra.mxu0 0
    %1713 = vmatprep.subr.bf16.mxu0 0
    %1714 = vmatpush1.bf16.msra.mxu0 0
    %1715 = vmatprep.mubr.bf16.mxu0 0
    %1716 = vmatmul.mubr.bf16.gmra.mrb[0].mxu0 %v1677
    %v1717 = vpop.f32.mrb[0].mxu0
    %v1718 = vadd.f32 0.0, %v1717
    %v1719 = vpop.f32.mrb[0].mxu0
    %v1720 = vpop.f32.mrb[0].mxu0
    %v1721 = vpop.f32.mrb[0].mxu0
    %1722 = vdwg.mxu0
    %v1724 = vsel %vm1203, %v1669, 0
    %v1727 = vsel %vm1679, %v1184, 0
    %1729 = vmatprep.subr.bf16.mxu0 0
    %1730 = vmatpush1.bf16.msra.mxu0 %v1727
    %1731 = vmatprep.subr.bf16.mxu0 0
    %1732 = vmatpush1.bf16.msra.mxu0 0
    %1733 = vmatprep.subr.bf16.mxu0 0
    %1734 = vmatpush1.bf16.msra.mxu0 0
    %1735 = vmatprep.subr.bf16.mxu0 0
    %1736 = vmatpush1.bf16.msra.mxu0 0
    %1737 = vmatprep.subr.bf16.mxu0 0
    %1738 = vmatpush1.bf16.msra.mxu0 0
    %1739 = vmatprep.subr.bf16.mxu0 0
    %1740 = vmatpush1.bf16.msra.mxu0 0
    %1741 = vmatprep.subr.bf16.mxu0 0
    %1742 = vmatpush1.bf16.msra.mxu0 0
    %1743 = vmatprep.subr.bf16.mxu0 0
    %1744 = vmatpush1.bf16.msra.mxu0 0
    %1745 = vmatprep.subr.bf16.mxu0 0
    %1746 = vmatpush1.bf16.msra.mxu0 0
    %1747 = vmatprep.subr.bf16.mxu0 0
    %1748 = vmatpush1.bf16.msra.mxu0 0
    %1749 = vmatprep.subr.bf16.mxu0 0
    %1750 = vmatpush1.bf16.msra.mxu0 0
    %1751 = vmatprep.subr.bf16.mxu0 0
    %1752 = vmatpush1.bf16.msra.mxu0 0
    %1753 = vmatprep.subr.bf16.mxu0 0
    %1754 = vmatpush1.bf16.msra.mxu0 0
    %1755 = vmatprep.subr.bf16.mxu0 0
    %1756 = vmatpush1.bf16.msra.mxu0 0
    %1757 = vmatprep.subr.bf16.mxu0 0
    %1758 = vmatpush1.bf16.msra.mxu0 0
    %1759 = vmatprep.subr.bf16.mxu0 0
    %1760 = vmatpush1.bf16.msra.mxu0 0
    %1761 = vmatprep.mubr.bf16.mxu0 0
    %1762 = vmatmul.mubr.bf16.gmra.mrb[0].mxu0 %v1724
    %v1763 = vpop.f32.mrb[0].mxu0
    %v1764 = vadd.f32 0.0, %v1763
    %v1765 = vpop.f32.mrb[0].mxu0
    %v1766 = vpop.f32.mrb[0].mxu0
    %v1767 = vpop.f32.mrb[0].mxu0
    %1768 = vdwg.mxu0
    %v1770 = vsel %vm1203, %v1670, 0
    %v1773 = vsel %vm1679, %v1185, 0
    %1775 = vmatprep.subr.bf16.mxu0 0
    %1776 = vmatpush1.bf16.msra.mxu0 %v1773
    %1777 = vmatprep.subr.bf16.mxu0 0
    %1778 = vmatpush1.bf16.msra.mxu0 0
    %1779 = vmatprep.subr.bf16.mxu0 0
    %1780 = vmatpush1.bf16.msra.mxu0 0
    %1781 = vmatprep.subr.bf16.mxu0 0
    %1782 = vmatpush1.bf16.msra.mxu0 0
    %1783 = vmatprep.subr.bf16.mxu0 0
    %1784 = vmatpush1.bf16.msra.mxu0 0
    %1785 = vmatprep.subr.bf16.mxu0 0
    %1786 = vmatpush1.bf16.msra.mxu0 0
    %1787 = vmatprep.subr.bf16.mxu0 0
    %1788 = vmatpush1.bf16.msra.mxu0 0
    %1789 = vmatprep.subr.bf16.mxu0 0
    %1790 = vmatpush1.bf16.msra.mxu0 0
    %1791 = vmatprep.subr.bf16.mxu0 0
    %1792 = vmatpush1.bf16.msra.mxu0 0
    %1793 = vmatprep.subr.bf16.mxu0 0
    %1794 = vmatpush1.bf16.msra.mxu0 0
    %1795 = vmatprep.subr.bf16.mxu0 0
    %1796 = vmatpush1.bf16.msra.mxu0 0
    %1797 = vmatprep.subr.bf16.mxu0 0
    %1798 = vmatpush1.bf16.msra.mxu0 0
    %1799 = vmatprep.subr.bf16.mxu0 0
    %1800 = vmatpush1.bf16.msra.mxu0 0
    %1801 = vmatprep.subr.bf16.mxu0 0
    %1802 = vmatpush1.bf16.msra.mxu0 0
    %1803 = vmatprep.subr.bf16.mxu0 0
    %1804 = vmatpush1.bf16.msra.mxu0 0
    %1805 = vmatprep.subr.bf16.mxu0 0
    %1806 = vmatpush1.bf16.msra.mxu0 0
    %1807 = vmatprep.mubr.bf16.mxu0 0
    %1808 = vmatmul.mubr.bf16.gmra.mrb[0].mxu0 %v1770
    %v1809 = vpop.f32.mrb[0].mxu0
    %v1810 = vadd.f32 0.0, %v1809
    %v1811 = vpop.f32.mrb[0].mxu0
    %v1812 = vpop.f32.mrb[0].mxu0
    %v1813 = vpop.f32.mrb[0].mxu0
    %1814 = vdwg.mxu0
    %v1816 = vsel %vm1203, %v1671, 0
    %v1819 = vsel %vm1679, %v1186, 0
    %1821 = vmatprep.subr.bf16.mxu0 0
    %1822 = vmatpush1.bf16.msra.mxu0 %v1819
    %1823 = vmatprep.subr.bf16.mxu0 0
    %1824 = vmatpush1.bf16.msra.mxu0 0
    %1825 = vmatprep.subr.bf16.mxu0 0
    %1826 = vmatpush1.bf16.msra.mxu0 0
    %1827 = vmatprep.subr.bf16.mxu0 0
    %1828 = vmatpush1.bf16.msra.mxu0 0
    %1829 = vmatprep.subr.bf16.mxu0 0
    %1830 = vmatpush1.bf16.msra.mxu0 0
    %1831 = vmatprep.subr.bf16.mxu0 0
    %1832 = vmatpush1.bf16.msra.mxu0 0
    %1833 = vmatprep.subr.bf16.mxu0 0
    %1834 = vmatpush1.bf16.msra.mxu0 0
    %1835 = vmatprep.subr.bf16.mxu0 0
    %1836 = vmatpush1.bf16.msra.mxu0 0
    %1837 = vmatprep.subr.bf16.mxu0 0
    %1838 = vmatpush1.bf16.msra.mxu0 0
    %1839 = vmatprep.subr.bf16.mxu0 0
    %1840 = vmatpush1.bf16.msra.mxu0 0
    %1841 = vmatprep.subr.bf16.mxu0 0
    %1842 = vmatpush1.bf16.msra.mxu0 0
    %1843 = vmatprep.subr.bf16.mxu0 0
    %1844 = vmatpush1.bf16.msra.mxu0 0
    %1845 = vmatprep.subr.bf16.mxu0 0
    %1846 = vmatpush1.bf16.msra.mxu0 0
    %1847 = vmatprep.subr.bf16.mxu0 0
    %1848 = vmatpush1.bf16.msra.mxu0 0
    %1849 = vmatprep.subr.bf16.mxu0 0
    %1850 = vmatpush1.bf16.msra.mxu0 0
    %1851 = vmatprep.subr.bf16.mxu0 0
    %1852 = vmatpush1.bf16.msra.mxu0 0
    %1853 = vmatprep.mubr.bf16.mxu0 0
    %1854 = vmatmul.mubr.bf16.gmra.mrb[0].mxu0 %v1816
    %v1855 = vpop.f32.mrb[0].mxu0
    %v1856 = vadd.f32 0.0, %v1855
    %v1857 = vpop.f32.mrb[0].mxu0
    %v1858 = vpop.f32.mrb[0].mxu0
    %v1859 = vpop.f32.mrb[0].mxu0
    %1860 = vdwg.mxu0
    %v1862 = vsel %vm1203, %v1672, 0
    %v1865 = vsel %vm1679, %v1187, 0
    %1867 = vmatprep.subr.bf16.mxu0 0
    %1868 = vmatpush1.bf16.msra.mxu0 %v1865
    %1869 = vmatprep.subr.bf16.mxu0 0
    %1870 = vmatpush1.bf16.msra.mxu0 0
    %1871 = vmatprep.subr.bf16.mxu0 0
    %1872 = vmatpush1.bf16.msra.mxu0 0
    %1873 = vmatprep.subr.bf16.mxu0 0
    %1874 = vmatpush1.bf16.msra.mxu0 0
    %1875 = vmatprep.subr.bf16.mxu0 0
    %1876 = vmatpush1.bf16.msra.mxu0 0
    %1877 = vmatprep.subr.bf16.mxu0 0
    %1878 = vmatpush1.bf16.msra.mxu0 0
    %1879 = vmatprep.subr.bf16.mxu0 0
    %1880 = vmatpush1.bf16.msra.mxu0 0
    %1881 = vmatprep.subr.bf16.mxu0 0
    %1882 = vmatpush1.bf16.msra.mxu0 0
    %1883 = vmatprep.subr.bf16.mxu0 0
    %1884 = vmatpush1.bf16.msra.mxu0 0
    %1885 = vmatprep.subr.bf16.mxu0 0
    %1886 = vmatpush1.bf16.msra.mxu0 0
    %1887 = vmatprep.subr.bf16.mxu0 0
    %1888 = vmatpush1.bf16.msra.mxu0 0
    %1889 = vmatprep.subr.bf16.mxu0 0
    %1890 = vmatpush1.bf16.msra.mxu0 0
    %1891 = vmatprep.subr.bf16.mxu0 0
    %1892 = vmatpush1.bf16.msra.mxu0 0
    %1893 = vmatprep.subr.bf16.mxu0 0
    %1894 = vmatpush1.bf16.msra.mxu0 0
    %1895 = vmatprep.subr.bf16.mxu0 0
    %1896 = vmatpush1.bf16.msra.mxu0 0
    %1897 = vmatprep.subr.bf16.mxu0 0
    %1898 = vmatpush1.bf16.msra.mxu0 0
    %1899 = vmatprep.mubr.bf16.mxu0 0
    %1900 = vmatmul.mubr.bf16.gmra.mrb[0].mxu0 %v1862
    %v1901 = vpop.f32.mrb[0].mxu0
    %v1902 = vadd.f32 0.0, %v1901
    %v1903 = vpop.f32.mrb[0].mxu0
    %v1904 = vpop.f32.mrb[0].mxu0
    %v1905 = vpop.f32.mrb[0].mxu0
    %1906 = vdwg.mxu0
    %v1908 = vsel %vm1203, %v1673, 0
    %v1911 = vsel %vm1679, %v1188, 0
    %1913 = vmatprep.subr.bf16.mxu0 0
    %1914 = vmatpush1.bf16.msra.mxu0 %v1911
    %1915 = vmatprep.subr.bf16.mxu0 0
    %1916 = vmatpush1.bf16.msra.mxu0 0
    %1917 = vmatprep.subr.bf16.mxu0 0
    %1918 = vmatpush1.bf16.msra.mxu0 0
    %1919 = vmatprep.subr.bf16.mxu0 0
    %1920 = vmatpush1.bf16.msra.mxu0 0
    %1921 = vmatprep.subr.bf16.mxu0 0
    %1922 = vmatpush1.bf16.msra.mxu0 0
    %1923 = vmatprep.subr.bf16.mxu0 0
    %1924 = vmatpush1.bf16.msra.mxu0 0
    %1925 = vmatprep.subr.bf16.mxu0 0
    %1926 = vmatpush1.bf16.msra.mxu0 0
    %1927 = vmatprep.subr.bf16.mxu0 0
    %1928 = vmatpush1.bf16.msra.mxu0 0
    %1929 = vmatprep.subr.bf16.mxu0 0
    %1930 = vmatpush1.bf16.msra.mxu0 0
    %1931 = vmatprep.subr.bf16.mxu0 0
    %1932 = vmatpush1.bf16.msra.mxu0 0
    %1933 = vmatprep.subr.bf16.mxu0 0
    %1934 = vmatpush1.bf16.msra.mxu0 0
    %1935 = vmatprep.subr.bf16.mxu0 0
    %1936 = vmatpush1.bf16.msra.mxu0 0
    %1937 = vmatprep.subr.bf16.mxu0 0
    %1938 = vmatpush1.bf16.msra.mxu0 0
    %1939 = vmatprep.subr.bf16.mxu0 0
    %1940 = vmatpush1.bf16.msra.mxu0 0
    %1941 = vmatprep.subr.bf16.mxu0 0
    %1942 = vmatpush1.bf16.msra.mxu0 0
    %1943 = vmatprep.subr.bf16.mxu0 0
    %1944 = vmatpush1.bf16.msra.mxu0 0
    %1945 = vmatprep.mubr.bf16.mxu0 0
    %1946 = vmatmul.mubr.bf16.gmra.mrb[0].mxu0 %v1908
    %v1947 = vpop.f32.mrb[0].mxu0
    %v1948 = vadd.f32 0.0, %v1947
    %v1949 = vpop.f32.mrb[0].mxu0
    %v1950 = vpop.f32.mrb[0].mxu0
    %v1951 = vpop.f32.mrb[0].mxu0
    %1952 = vdwg.mxu0
    %v1954 = vsel %vm1203, %v1674, 0
    %v1957 = vsel %vm1679, %v1189, 0
    %1959 = vmatprep.subr.bf16.mxu0 0
    %1960 = vmatpush1.bf16.msra.mxu0 %v1957
    %1961 = vmatprep.subr.bf16.mxu0 0
    %1962 = vmatpush1.bf16.msra.mxu0 0
    %1963 = vmatprep.subr.bf16.mxu0 0
    %1964 = vmatpush1.bf16.msra.mxu0 0
    %1965 = vmatprep.subr.bf16.mxu0 0
    %1966 = vmatpush1.bf16.msra.mxu0 0
    %1967 = vmatprep.subr.bf16.mxu0 0
    %1968 = vmatpush1.bf16.msra.mxu0 0
    %1969 = vmatprep.subr.bf16.mxu0 0
    %1970 = vmatpush1.bf16.msra.mxu0 0
    %1971 = vmatprep.subr.bf16.mxu0 0
    %1972 = vmatpush1.bf16.msra.mxu0 0
    %1973 = vmatprep.subr.bf16.mxu0 0
    %1974 = vmatpush1.bf16.msra.mxu0 0
    %1975 = vmatprep.subr.bf16.mxu0 0
    %1976 = vmatpush1.bf16.msra.mxu0 0
    %1977 = vmatprep.subr.bf16.mxu0 0
    %1978 = vmatpush1.bf16.msra.mxu0 0
    %1979 = vmatprep.subr.bf16.mxu0 0
    %1980 = vmatpush1.bf16.msra.mxu0 0
    %1981 = vmatprep.subr.bf16.mxu0 0
    %1982 = vmatpush1.bf16.msra.mxu0 0
    %1983 = vmatprep.subr.bf16.mxu0 0
    %1984 = vmatpush1.bf16.msra.mxu0 0
    %1985 = vmatprep.subr.bf16.mxu0 0
    %1986 = vmatpush1.bf16.msra.mxu0 0
    %1987 = vmatprep.subr.bf16.mxu0 0
    %1988 = vmatpush1.bf16.msra.mxu0 0
    %1989 = vmatprep.subr.bf16.mxu0 0
    %1990 = vmatpush1.bf16.msra.mxu0 0
    %1991 = vmatprep.mubr.bf16.mxu0 0
    %1992 = vmatmul.mubr.bf16.gmra.mrb[0].mxu0 %v1954
    %v1993 = vpop.f32.mrb[0].mxu0
    %v1994 = vadd.f32 0.0, %v1993
    %v1995 = vpop.f32.mrb[0].mxu0
    %v1996 = vpop.f32.mrb[0].mxu0
    %v1997 = vpop.f32.mrb[0].mxu0
    %1998 = vdwg.mxu0
    %v2000 = vsel %vm1203, %v1675, 0
    %v2003 = vsel %vm1679, %v1190, 0
    %2005 = vmatprep.subr.bf16.mxu0 0
    %2006 = vmatpush1.bf16.msra.mxu0 %v2003
    %2007 = vmatprep.subr.bf16.mxu0 0
    %2008 = vmatpush1.bf16.msra.mxu0 0
    %2009 = vmatprep.subr.bf16.mxu0 0
    %2010 = vmatpush1.bf16.msra.mxu0 0
    %2011 = vmatprep.subr.bf16.mxu0 0
    %2012 = vmatpush1.bf16.msra.mxu0 0
    %2013 = vmatprep.subr.bf16.mxu0 0
    %2014 = vmatpush1.bf16.msra.mxu0 0
    %2015 = vmatprep.subr.bf16.mxu0 0
    %2016 = vmatpush1.bf16.msra.mxu0 0
    %2017 = vmatprep.subr.bf16.mxu0 0
    %2018 = vmatpush1.bf16.msra.mxu0 0
    %2019 = vmatprep.subr.bf16.mxu0 0
    %2020 = vmatpush1.bf16.msra.mxu0 0
    %2021 = vmatprep.subr.bf16.mxu0 0
    %2022 = vmatpush1.bf16.msra.mxu0 0
    %2023 = vmatprep.subr.bf16.mxu0 0
    %2024 = vmatpush1.bf16.msra.mxu0 0
    %2025 = vmatprep.subr.bf16.mxu0 0
    %2026 = vmatpush1.bf16.msra.mxu0 0
    %2027 = vmatprep.subr.bf16.mxu0 0
    %2028 = vmatpush1.bf16.msra.mxu0 0
    %2029 = vmatprep.subr.bf16.mxu0 0
    %2030 = vmatpush1.bf16.msra.mxu0 0
    %2031 = vmatprep.subr.bf16.mxu0 0
    %2032 = vmatpush1.bf16.msra.mxu0 0
    %2033 = vmatprep.subr.bf16.mxu0 0
    %2034 = vmatpush1.bf16.msra.mxu0 0
    %2035 = vmatprep.subr.bf16.mxu0 0
    %2036 = vmatpush1.bf16.msra.mxu0 0
    %2037 = vmatprep.mubr.bf16.mxu0 0
    %2038 = vmatmul.mubr.bf16.gmra.mrb[0].mxu0 %v2000
    %v2039 = vpop.f32.mrb[0].mxu0
    %v2040 = vadd.f32 0.0, %v2039
    %v2041 = vpop.f32.mrb[0].mxu0
    %v2042 = vpop.f32.mrb[0].mxu0
    %v2043 = vpop.f32.mrb[0].mxu0
    %2044 = vdwg.mxu0
    %v2045 = vcombine.low %v1718, %v1810
    %v2046 = vcombine.high %v1718, %v1810
    %v2048 = vunpack.c.l.s4 1983009808
    %v2049 = vunpack.c.0.s8 %v2048
    %v2050 = vlaneseq
    %v2051 = vshrl.u32 %v2050, 7
    %v2052 = vsub.s32 %v2049, %v2051
    %v2053 = vrot.slane %v2045, %v2052
    %v2055 = vunpack.c.l.s4 1983009808
    %v2056 = vunpack.c.0.s8 %v2055
    %v2057 = vlaneseq
    %v2058 = vshrl.u32 %v2057, 7
    %v2059 = vsub.s32 %v2056, %v2058
    %v2060 = vrot.slane %v2046, %v2059
    %v2061 = vcombine.low %v1764, %v1856
    %v2062 = vcombine.high %v1764, %v1856
    %v2064 = vunpack.c.l.s4 1983009808
    %v2065 = vunpack.c.0.s8 %v2064
    %v2066 = vlaneseq
    %v2067 = vshrl.u32 %v2066, 7
    %v2068 = vsub.s32 %v2065, %v2067
    %v2069 = vrot.slane %v2061, %v2068
    %v2071 = vunpack.c.l.s4 1983009808
    %v2072 = vunpack.c.0.s8 %v2071
    %v2073 = vlaneseq
    %v2074 = vshrl.u32 %v2073, 7
    %v2075 = vsub.s32 %v2072, %v2074
    %v2076 = vrot.slane %v2062, %v2075
    %v2077 = vcombine.low %v2053, %v2069
    %v2078 = vcombine.high %v2053, %v2069
    %v2080 = vunpack.c.l.s4 1934713408
    %v2081 = vunpack.c.0.s8 %v2080
    %v2082 = vlaneseq
    %v2083 = vshrl.u32 %v2082, 7
    %v2084 = vsub.s32 %v2081, %v2083
    %v2085 = vrot.slane %v2077, %v2084
    %v2087 = vunpack.c.l.s4 1934713408
    %v2088 = vunpack.c.0.s8 %v2087
    %v2089 = vlaneseq
    %v2090 = vshrl.u32 %v2089, 7
    %v2091 = vsub.s32 %v2088, %v2090
    %v2092 = vrot.slane %v2078, %v2091
    %v2093 = vcombine.low %v2060, %v2076
    %v2094 = vcombine.high %v2060, %v2076
    %v2096 = vunpack.c.l.s4 1934713408
    %v2097 = vunpack.c.0.s8 %v2096
    %v2098 = vlaneseq
    %v2099 = vshrl.u32 %v2098, 7
    %v2100 = vsub.s32 %v2097, %v2099
    %v2101 = vrot.slane %v2093, %v2100
    %v2103 = vunpack.c.l.s4 1934713408
    %v2104 = vunpack.c.0.s8 %v2103
    %v2105 = vlaneseq
    %v2106 = vshrl.u32 %v2105, 7
    %v2107 = vsub.s32 %v2104, %v2106
    %v2108 = vrot.slane %v2094, %v2107
    %v2109 = vcombine.high %v2085, 0.0
    %v2110 = vcombine.high %v2092, 0.0
    %v2111 = vcombine.high %v2101, 0.0
    %v2112 = vcombine.high %v2108, 0.0
    %v2113 = vcombine.low %v1902, %v1994
    %v2114 = vcombine.high %v1902, %v1994
    %v2116 = vunpack.c.l.s4 1983009808
    %v2117 = vunpack.c.0.s8 %v2116
    %v2118 = vlaneseq
    %v2119 = vshrl.u32 %v2118, 7
    %v2120 = vsub.s32 %v2117, %v2119
    %v2121 = vrot.slane %v2113, %v2120
    %v2123 = vunpack.c.l.s4 1983009808
    %v2124 = vunpack.c.0.s8 %v2123
    %v2125 = vlaneseq
    %v2126 = vshrl.u32 %v2125, 7
    %v2127 = vsub.s32 %v2124, %v2126
    %v2128 = vrot.slane %v2114, %v2127
    %v2129 = vcombine.low %v1948, %v2040
    %v2130 = vcombine.high %v1948, %v2040
    %v2132 = vunpack.c.l.s4 1983009808
    %v2133 = vunpack.c.0.s8 %v2132
    %v2134 = vlaneseq
    %v2135 = vshrl.u32 %v2134, 7
    %v2136 = vsub.s32 %v2133, %v2135
    %v2137 = vrot.slane %v2129, %v2136
    %v2139 = vunpack.c.l.s4 1983009808
    %v2140 = vunpack.c.0.s8 %v2139
    %v2141 = vlaneseq
    %v2142 = vshrl.u32 %v2141, 7
    %v2143 = vsub.s32 %v2140, %v2142
    %v2144 = vrot.slane %v2130, %v2143
    %v2145 = vcombine.low %v2121, %v2137
    %v2146 = vcombine.high %v2121, %v2137
    %v2148 = vunpack.c.l.s4 1934713408
    %v2149 = vunpack.c.0.s8 %v2148
    %v2150 = vlaneseq
    %v2151 = vshrl.u32 %v2150, 7
    %v2152 = vsub.s32 %v2149, %v2151
    %v2153 = vrot.slane %v2145, %v2152
    %v2155 = vunpack.c.l.s4 1934713408
    %v2156 = vunpack.c.0.s8 %v2155
    %v2157 = vlaneseq
    %v2158 = vshrl.u32 %v2157, 7
    %v2159 = vsub.s32 %v2156, %v2158
    %v2160 = vrot.slane %v2146, %v2159
    %v2161 = vcombine.low %v2128, %v2144
    %v2162 = vcombine.high %v2128, %v2144
    %v2164 = vunpack.c.l.s4 1934713408
    %v2165 = vunpack.c.0.s8 %v2164
    %v2166 = vlaneseq
    %v2167 = vshrl.u32 %v2166, 7
    %v2168 = vsub.s32 %v2165, %v2167
    %v2169 = vrot.slane %v2161, %v2168
    %v2171 = vunpack.c.l.s4 1934713408
    %v2172 = vunpack.c.0.s8 %v2171
    %v2173 = vlaneseq
    %v2174 = vshrl.u32 %v2173, 7
    %v2175 = vsub.s32 %v2172, %v2174
    %v2176 = vrot.slane %v2162, %v2175
    %v2177 = vcombine.high %v2153, 0.0
    %v2178 = vcombine.high %v2160, 0.0
    %v2179 = vcombine.high %v2169, 0.0
    %v2180 = vcombine.high %v2176, 0.0
    %v2181 = vcombine.low %v2085, %v2092
    %v2183 = vunpack.c.l.s4 1983009808
    %v2184 = vunpack.c.0.s8 %v2183
    %v2185 = vlaneseq
    %v2186 = vshrl.u32 %v2185, 7
    %v2187 = vsub.s32 %v2184, %v2186
    %v2188 = vrot.slane %v2181, %v2187
    %v2189 = vcombine.low %v2109, %v2110
    %v2191 = vunpack.c.l.s4 1983009808
    %v2192 = vunpack.c.0.s8 %v2191
    %v2193 = vlaneseq
    %v2194 = vshrl.u32 %v2193, 7
    %v2195 = vsub.s32 %v2192, %v2194
    %v2196 = vrot.slane %v2189, %v2195
    %v2197 = vcombine.low %v2101, %v2108
    %v2199 = vunpack.c.l.s4 1983009808
    %v2200 = vunpack.c.0.s8 %v2199
    %v2201 = vlaneseq
    %v2202 = vshrl.u32 %v2201, 7
    %v2203 = vsub.s32 %v2200, %v2202
    %v2204 = vrot.slane %v2197, %v2203
    %v2205 = vcombine.low %v2111, %v2112
    %v2207 = vunpack.c.l.s4 1983009808
    %v2208 = vunpack.c.0.s8 %v2207
    %v2209 = vlaneseq
    %v2210 = vshrl.u32 %v2209, 7
    %v2211 = vsub.s32 %v2208, %v2210
    %v2212 = vrot.slane %v2205, %v2211
    %v2213 = vcombine.low %v2188, %v2196
    %v2214 = vcombine.high %v2188, %v2196
    %v2216 = vunpack.c.l.s4 1934713408
    %v2217 = vunpack.c.0.s8 %v2216
    %v2218 = vlaneseq
    %v2219 = vshrl.u32 %v2218, 7
    %v2220 = vsub.s32 %v2217, %v2219
    %v2221 = vrot.slane %v2213, %v2220
    %v2223 = vunpack.c.l.s4 1934713408
    %v2224 = vunpack.c.0.s8 %v2223
    %v2225 = vlaneseq
    %v2226 = vshrl.u32 %v2225, 7
    %v2227 = vsub.s32 %v2224, %v2226
    %v2228 = vrot.slane %v2214, %v2227
    %v2229 = vcombine.low %v2204, %v2212
    %v2230 = vcombine.high %v2204, %v2212
    %v2232 = vunpack.c.l.s4 1934713408
    %v2233 = vunpack.c.0.s8 %v2232
    %v2234 = vlaneseq
    %v2235 = vshrl.u32 %v2234, 7
    %v2236 = vsub.s32 %v2233, %v2235
    %v2237 = vrot.slane %v2229, %v2236
    %v2239 = vunpack.c.l.s4 1934713408
    %v2240 = vunpack.c.0.s8 %v2239
    %v2241 = vlaneseq
    %v2242 = vshrl.u32 %v2241, 7
    %v2243 = vsub.s32 %v2240, %v2242
    %v2244 = vrot.slane %v2230, %v2243
    %v2245 = vcombine.low %v2221, %v2237
    %v2246 = vcombine.high %v2221, %v2237
    %v2247 = vcombine.low %v2228, %v2244
    %v2248 = vcombine.high %v2228, %v2244
    %v2249 = vcombine.low %v2153, %v2160
    %v2251 = vunpack.c.l.s4 1983009808
    %v2252 = vunpack.c.0.s8 %v2251
    %v2253 = vlaneseq
    %v2254 = vshrl.u32 %v2253, 7
    %v2255 = vsub.s32 %v2252, %v2254
    %v2256 = vrot.slane %v2249, %v2255
    %v2257 = vcombine.low %v2177, %v2178
    %v2259 = vunpack.c.l.s4 1983009808
    %v2260 = vunpack.c.0.s8 %v2259
    %v2261 = vlaneseq
    %v2262 = vshrl.u32 %v2261, 7
    %v2263 = vsub.s32 %v2260, %v2262
    %v2264 = vrot.slane %v2257, %v2263
    %v2265 = vcombine.low %v2169, %v2176
    %v2267 = vunpack.c.l.s4 1983009808
    %v2268 = vunpack.c.0.s8 %v2267
    %v2269 = vlaneseq
    %v2270 = vshrl.u32 %v2269, 7
    %v2271 = vsub.s32 %v2268, %v2270
    %v2272 = vrot.slane %v2265, %v2271
    %v2273 = vcombine.low %v2179, %v2180
    %v2275 = vunpack.c.l.s4 1983009808
    %v2276 = vunpack.c.0.s8 %v2275
    %v2277 = vlaneseq
    %v2278 = vshrl.u32 %v2277, 7
    %v2279 = vsub.s32 %v2276, %v2278
    %v2280 = vrot.slane %v2273, %v2279
    %v2281 = vcombine.low %v2256, %v2264
    %v2282 = vcombine.high %v2256, %v2264
    %v2284 = vunpack.c.l.s4 1934713408
    %v2285 = vunpack.c.0.s8 %v2284
    %v2286 = vlaneseq
    %v2287 = vshrl.u32 %v2286, 7
    %v2288 = vsub.s32 %v2285, %v2287
    %v2289 = vrot.slane %v2281, %v2288
    %v2291 = vunpack.c.l.s4 1934713408
    %v2292 = vunpack.c.0.s8 %v2291
    %v2293 = vlaneseq
    %v2294 = vshrl.u32 %v2293, 7
    %v2295 = vsub.s32 %v2292, %v2294
    %v2296 = vrot.slane %v2282, %v2295
    %v2297 = vcombine.low %v2272, %v2280
    %v2298 = vcombine.high %v2272, %v2280
    %v2300 = vunpack.c.l.s4 1934713408
    %v2301 = vunpack.c.0.s8 %v2300
    %v2302 = vlaneseq
    %v2303 = vshrl.u32 %v2302, 7
    %v2304 = vsub.s32 %v2301, %v2303
    %v2305 = vrot.slane %v2297, %v2304
    %v2307 = vunpack.c.l.s4 1934713408
    %v2308 = vunpack.c.0.s8 %v2307
    %v2309 = vlaneseq
    %v2310 = vshrl.u32 %v2309, 7
    %v2311 = vsub.s32 %v2308, %v2310
    %v2312 = vrot.slane %v2298, %v2311
    %v2313 = vcombine.low %v2289, %v2305
    %v2314 = vcombine.high %v2289, %v2305
    %v2315 = vcombine.low %v2296, %v2312
    %v2316 = vcombine.high %v2296, %v2312
    %2319 = vrot.lane.b32.xlu0 %v2246, 8
    %v2320 = vpop.permute.xlu0 %2319
    %2321 = vrot.lane.b32.xlu0 %v2314, 8
    %v2322 = vpop.permute.xlu0 %2321
    %2327 = vrot.lane.b32.xlu0 %v2247, 16
    %v2328 = vpop.permute.xlu0 %2327
    %2329 = vrot.lane.b32.xlu0 %v2315, 16
    %v2330 = vpop.permute.xlu0 %2329
    %2335 = vrot.lane.b32.xlu0 %v2248, 24
    %v2336 = vpop.permute.xlu0 %2335
    %2337 = vrot.lane.b32.xlu0 %v2316, 24
    %v2338 = vpop.permute.xlu0 %2337
    %v2341 = vsel %vm1203, %v2245, %v2320
    %v2342 = vsel %vm1203, %v2313, %v2322
    %vm2343 = vcmask 130048
    %v2344 = vsel %vm2343, %v2341, %v2328
    %v2345 = vsel %vm2343, %v2342, %v2330
    %vm2346 = vcmask 195584
    %v2347 = vsel %vm2346, %v2344, %v2336
    %v2348 = vsel %vm2346, %v2345, %v2338
    %v2349 = vpack.c.bf16 %v2348, %v2347
    %v2350 = vld [vmem:[%s3] sm:$0xf]
    %v2351 = vld [vmem:[%s3 + $0x4] sm:$0xf]
    %v2352 = vld [vmem:[%s3 + $0x8] sm:$0xf]
    %v2353 = vld [vmem:[%s3 + $0xc] sm:$0xf]
    %v2358 = vunpack.c.l.b16 %v2350
    %v2359 = vunpack.c.l.b16 %v2351
    %v2360 = vunpack.c.l.b16 %v2352
    %v2361 = vunpack.c.l.b16 %v2353
    %v2362 = vpack.c.b16 %v2359, %v2358
    %v2363 = vpack.c.b16 %v2361, %v2360
    %v2365 = vsel %vm50, %v2349, 0
    %v2368 = vsel %vm50, %v2362, 0
    %v2371 = vsel %vm50, %v2363, 0
    %2373 = vmatprep.subr.bf16.mxu0 0
    %2374 = vmatpush1.bf16.xpose.msra.mxu0 %v2368
    %2375 = vmatprep.subr.bf16.mxu0 0
    %2376 = vmatpush1.bf16.xpose.msra.mxu0 %v2371
    %2377 = vmatprep.subr.bf16.mxu0 0
    %2378 = vmatpush1.bf16.xpose.msra.mxu0 0
    %2379 = vmatprep.subr.bf16.mxu0 0
    %2380 = vmatpush1.bf16.xpose.msra.mxu0 0
    %2381 = vmatprep.subr.bf16.mxu0 0
    %2382 = vmatpush1.bf16.xpose.msra.mxu0 0
    %2383 = vmatprep.subr.bf16.mxu0 0
    %2384 = vmatpush1.bf16.xpose.msra.mxu0 0
    %2385 = vmatprep.subr.bf16.mxu0 0
    %2386 = vmatpush1.bf16.xpose.msra.mxu0 0
    %2387 = vmatprep.subr.bf16.mxu0 0
    %2388 = vmatpush1.bf16.xpose.msra.mxu0 0
    %2389 = vmatprep.subr.bf16.mxu0 0
    %2390 = vmatpush1.bf16.xpose.msra.mxu0 0
    %2391 = vmatprep.subr.bf16.mxu0 0
    %2392 = vmatpush1.bf16.xpose.msra.mxu0 0
    %2393 = vmatprep.subr.bf16.mxu0 0
    %2394 = vmatpush1.bf16.xpose.msra.mxu0 0
    %2395 = vmatprep.subr.bf16.mxu0 0
    %2396 = vmatpush1.bf16.xpose.msra.mxu0 0
    %2397 = vmatprep.subr.bf16.mxu0 0
    %2398 = vmatpush1.bf16.xpose.msra.mxu0 0
    %2399 = vmatprep.subr.bf16.mxu0 0
    %2400 = vmatpush1.bf16.xpose.msra.mxu0 0
    %2401 = vmatprep.subr.bf16.mxu0 0
    %2402 = vmatpush1.bf16.xpose.msra.mxu0 0
    %2403 = vmatprep.subr.bf16.mxu0 0
    %2404 = vmatpush1.bf16.xpose.msra.mxu0 0
    %2405 = vmatprep.mubr.bf16.mxu0 0
    %2406 = vmatmul.mubr.bf16.gmra.mrb[0].mxu0 %v2365
    %v2407 = vpop.f32.mrb[0].mxu0
    %v2408 = vadd.f32 0.0, %v2407
    %v2409 = vpop.f32.mrb[0].mxu0
    %v2410 = vpop.f32.mrb[0].mxu0
    %v2411 = vadd.f32 0.0, %v2410
    %v2412 = vpop.f32.mrb[0].mxu0
    %2413 = vdwg.mxu0
    %v2414 = vadd.f32 %v44, %v2408
    %v2415 = vadd.f32 %v45, %v2411
    %v2416 = vlaneseq
    %v2417 = vshrl.u32 %v2416, 7
    %v2418 = vsub.s32 3, %v2417
    %v2419 = vrot.slane %v48, %v2418
    %v2420 = vadd.f32 %v2414, %v2419
    %v2421 = vadd.f32 %v2415, %v2419
    %v2422 = vsel %vm50, %v2420, 0.0
    %2423 = vadd.xlane.f32.xlu0 %v2422
    %v2424 = vpop.xlane.xlu0 %2423
    %v2425 = vsel %vm50, %v2421, 0.0
    %2426 = vadd.xlane.f32.xlu0 %v2425
    %v2427 = vpop.xlane.xlu0 %2426
    %v2428 = vmul.f32 %v2424, %v57
    %v2429 = vmul.f32 %v2427, %v57
    %v2430 = vsub.f32 %v2420, %v2428
    %v2431 = vsub.f32 %v2421, %v2429
    %v2432 = vmul.f32 %v2430, %v2430
    %v2433 = vmul.f32 %v2431, %v2431
    %v2434 = vsel %vm50, %v2432, 0.0
    %2435 = vadd.xlane.f32.xlu0 %v2434
    %v2436 = vpop.xlane.xlu0 %2435
    %v2437 = vsel %vm50, %v2433, 0.0
    %2438 = vadd.xlane.f32.xlu0 %v2437
    %v2439 = vpop.xlane.xlu0 %2438
    %v2440 = vmul.f32 %v2436, %v57
    %v2441 = vmul.f32 %v2439, %v57
    %v2442 = vadd.f32 %v2440, 1e-05
    %v2443 = vadd.f32 %v2441, 1e-05
    %v2444 = vrsqrt.pop %v2442
    %v2445 = vrsqrt.pop %v2443
    %v2446 = vmul.f32 %v2430, %v2444
    %v2447 = vmul.f32 %v2431, %v2445
    %v2448 = vlaneseq
    %v2449 = vshrl.u32 %v2448, 7
    %v2450 = vsub.s32 6, %v2449
    %v2451 = vrot.slane %v48, %v2450
    %v2452 = vmul.f32 %v2446, %v2451
    %v2453 = vmul.f32 %v2447, %v2451
    %v2454 = vlaneseq
    %v2455 = vshrl.u32 %v2454, 7
    %v2456 = vsub.s32 7, %v2455
    %v2457 = vrot.slane %v48, %v2456
    %v2458 = vadd.f32 %v2452, %v2457
    %v2459 = vadd.f32 %v2453, %v2457
    %v2460 = vpack.c.bf16 %v2459, %v2458
    %v2461 = vld [vmem:[%s4] sm:$0xf]
    %v2462 = vld [vmem:[%s4 + $0x4] sm:$0xf]
    %v2463 = vld [vmem:[%s4 + $0x8] sm:$0xf]
    %v2464 = vld [vmem:[%s4 + $0xc] sm:$0xf]
    %v2465 = vld [vmem:[%s4 + $0x10] sm:$0xf]
    %v2466 = vld [vmem:[%s4 + $0x14] sm:$0xf]
    %v2467 = vld [vmem:[%s4 + $0x18] sm:$0xf]
    %v2468 = vld [vmem:[%s4 + $0x1c] sm:$0xf]
    %v2469 = vlaneseq
    %v2470 = vshrl.u32 %v2469, 7
    %v2471 = vsub.s32 1, %v2470
    %v2472 = vrot.slane %v49, %v2471
    %v2481 = vunpack.c.l.b16 %v2461
    %v2482 = vunpack.c.l.b16 %v2462
    %v2483 = vunpack.c.l.b16 %v2463
    %v2484 = vunpack.c.l.b16 %v2464
    %v2485 = vunpack.c.l.b16 %v2465
    %v2486 = vunpack.c.l.b16 %v2466
    %v2487 = vunpack.c.l.b16 %v2467
    %v2488 = vunpack.c.l.b16 %v2468
    %v2489 = vpack.c.b16 %v2482, %v2481
    %v2490 = vpack.c.b16 %v2484, %v2483
    %v2491 = vpack.c.b16 %v2486, %v2485
    %v2492 = vpack.c.b16 %v2488, %v2487
    %v2494 = vsel %vm50, %v2460, 0
    %v2497 = vsel %vm50, %v2489, 0
    %v2500 = vsel %vm50, %v2490, 0
    %v2503 = vsel %vm50, %v2491, 0
    %v2506 = vsel %vm50, %v2492, 0
    %2508 = vmatprep.subr.bf16.mxu0 0
    %2509 = vmatpush1.bf16.xpose.msra.mxu0 %v2497
    %2510 = vmatprep.subr.bf16.mxu0 0
    %2511 = vmatpush1.bf16.xpose.msra.mxu0 %v2500
    %2512 = vmatprep.subr.bf16.mxu0 0
    %2513 = vmatpush1.bf16.xpose.msra.mxu0 %v2503
    %2514 = vmatprep.subr.bf16.mxu0 0
    %2515 = vmatpush1.bf16.xpose.msra.mxu0 %v2506
    %2516 = vmatprep.subr.bf16.mxu0 0
    %2517 = vmatpush1.bf16.xpose.msra.mxu0 0
    %2518 = vmatprep.subr.bf16.mxu0 0
    %2519 = vmatpush1.bf16.xpose.msra.mxu0 0
    %2520 = vmatprep.subr.bf16.mxu0 0
    %2521 = vmatpush1.bf16.xpose.msra.mxu0 0
    %2522 = vmatprep.subr.bf16.mxu0 0
    %2523 = vmatpush1.bf16.xpose.msra.mxu0 0
    %2524 = vmatprep.subr.bf16.mxu0 0
    %2525 = vmatpush1.bf16.xpose.msra.mxu0 0
    %2526 = vmatprep.subr.bf16.mxu0 0
    %2527 = vmatpush1.bf16.xpose.msra.mxu0 0
    %2528 = vmatprep.subr.bf16.mxu0 0
    %2529 = vmatpush1.bf16.xpose.msra.mxu0 0
    %2530 = vmatprep.subr.bf16.mxu0 0
    %2531 = vmatpush1.bf16.xpose.msra.mxu0 0
    %2532 = vmatprep.subr.bf16.mxu0 0
    %2533 = vmatpush1.bf16.xpose.msra.mxu0 0
    %2534 = vmatprep.subr.bf16.mxu0 0
    %2535 = vmatpush1.bf16.xpose.msra.mxu0 0
    %2536 = vmatprep.subr.bf16.mxu0 0
    %2537 = vmatpush1.bf16.xpose.msra.mxu0 0
    %2538 = vmatprep.subr.bf16.mxu0 0
    %2539 = vmatpush1.bf16.xpose.msra.mxu0 0
    %2540 = vmatprep.mubr.bf16.mxu0 0
    %2541 = vmatmul.mubr.bf16.gmra.mrb[0].mxu0 %v2494
    %v2542 = vpop.f32.mrb[0].mxu0
    %v2543 = vadd.f32 %v2472, %v2542
    %v2544 = vpop.f32.mrb[0].mxu0
    %v2545 = vpop.f32.mrb[0].mxu0
    %v2546 = vadd.f32 %v2472, %v2545
    %v2547 = vpop.f32.mrb[0].mxu0
    %2548 = vdwg.mxu0
    %v2549 = vmax.f32 %v2543, 0.0
    %v2550 = vmax.f32 %v2546, 0.0
    %v2551 = vpack.c.bf16 %v2550, %v2549
    %v2552 = vld [vmem:[%s5] sm:$0xf]
    %v2553 = vld [vmem:[%s5 + $0x4] sm:$0xf]
    %v2554 = vld [vmem:[%s5 + $0x8] sm:$0xf]
    %v2555 = vld [vmem:[%s5 + $0xc] sm:$0xf]
    %v2560 = vunpack.c.l.b16 %v2552
    %v2561 = vunpack.c.l.b16 %v2553
    %v2562 = vunpack.c.l.b16 %v2554
    %v2563 = vunpack.c.l.b16 %v2555
    %v2564 = vpack.c.b16 %v2561, %v2560
    %v2565 = vpack.c.b16 %v2563, %v2562
    %vm2566 = vcmask 523264
    %v2568 = vsel %vm2566, %v2551, 0
    %v2571 = vsel %vm2566, %v2564, 0
    %v2574 = vsel %vm2566, %v2565, 0
    %2576 = vmatprep.subr.bf16.mxu0 0
    %2577 = vmatpush1.bf16.xpose.msra.mxu0 %v2571
    %2578 = vmatprep.subr.bf16.mxu0 0
    %2579 = vmatpush1.bf16.xpose.msra.mxu0 %v2574
    %2580 = vmatprep.subr.bf16.mxu0 0
    %2581 = vmatpush1.bf16.xpose.msra.mxu0 0
    %2582 = vmatprep.subr.bf16.mxu0 0
    %2583 = vmatpush1.bf16.xpose.msra.mxu0 0
    %2584 = vmatprep.subr.bf16.mxu0 0
    %2585 = vmatpush1.bf16.xpose.msra.mxu0 0
    %2586 = vmatprep.subr.bf16.mxu0 0
    %2587 = vmatpush1.bf16.xpose.msra.mxu0 0
    %2588 = vmatprep.subr.bf16.mxu0 0
    %2589 = vmatpush1.bf16.xpose.msra.mxu0 0
    %2590 = vmatprep.subr.bf16.mxu0 0
    %2591 = vmatpush1.bf16.xpose.msra.mxu0 0
    %2592 = vmatprep.subr.bf16.mxu0 0
    %2593 = vmatpush1.bf16.xpose.msra.mxu0 0
    %2594 = vmatprep.subr.bf16.mxu0 0
    %2595 = vmatpush1.bf16.xpose.msra.mxu0 0
    %2596 = vmatprep.subr.bf16.mxu0 0
    %2597 = vmatpush1.bf16.xpose.msra.mxu0 0
    %2598 = vmatprep.subr.bf16.mxu0 0
    %2599 = vmatpush1.bf16.xpose.msra.mxu0 0
    %2600 = vmatprep.subr.bf16.mxu0 0
    %2601 = vmatpush1.bf16.xpose.msra.mxu0 0
    %2602 = vmatprep.subr.bf16.mxu0 0
    %2603 = vmatpush1.bf16.xpose.msra.mxu0 0
    %2604 = vmatprep.subr.bf16.mxu0 0
    %2605 = vmatpush1.bf16.xpose.msra.mxu0 0
    %2606 = vmatprep.subr.bf16.mxu0 0
    %2607 = vmatpush1.bf16.xpose.msra.mxu0 0
    %2608 = vmatprep.mubr.bf16.mxu0 0
    %2609 = vmatmul.mubr.bf16.gmra.mrb[0].mxu0 %v2568
    %v2610 = vpop.f32.mrb[0].mxu0
    %v2611 = vadd.f32 0.0, %v2610
    %v2612 = vpop.f32.mrb[0].mxu0
    %v2613 = vpop.f32.mrb[0].mxu0
    %v2614 = vadd.f32 0.0, %v2613
    %v2615 = vpop.f32.mrb[0].mxu0
    %2616 = vdwg.mxu0
    %v2617 = vadd.f32 %v2420, %v2611
    %v2618 = vadd.f32 %v2421, %v2614
    %v2619 = vlaneseq
    %v2620 = vshrl.u32 %v2619, 7
    %v2621 = vsub.s32 0, %v2620
    %v2622 = vrot.slane %v49, %v2621
    %v2623 = vadd.f32 %v2617, %v2622
    %v2624 = vadd.f32 %v2618, %v2622
    %s2625 = scalar_lea.vmem %s6, 16
    %v2626 = vld [vmem:[%s2625] sm:$0xff]
    %v2627 = vld [vmem:[%s2625 + $0x8] sm:$0x3]
    %v2628 = vsel %vm50, %v2623, 0.0
    %2629 = vadd.xlane.f32.xlu0 %v2628
    %v2630 = vpop.xlane.xlu0 %2629
    %v2631 = vsel %vm50, %v2624, 0.0
    %2632 = vadd.xlane.f32.xlu0 %v2631
    %v2633 = vpop.xlane.xlu0 %2632
    %v2634 = vmul.f32 %v2630, %v57
    %v2635 = vmul.f32 %v2633, %v57
    %v2636 = vsub.f32 %v2623, %v2634
    %v2637 = vsub.f32 %v2624, %v2635
    %v2638 = vmul.f32 %v2636, %v2636
    %v2639 = vmul.f32 %v2637, %v2637
    %v2640 = vsel %vm50, %v2638, 0.0
    %2641 = vadd.xlane.f32.xlu0 %v2640
    %v2642 = vpop.xlane.xlu0 %2641
    %v2643 = vsel %vm50, %v2639, 0.0
    %2644 = vadd.xlane.f32.xlu0 %v2643
    %v2645 = vpop.xlane.xlu0 %2644
    %v2646 = vmul.f32 %v2642, %v57
    %v2647 = vmul.f32 %v2645, %v57
    %v2648 = vadd.f32 %v2646, 1e-05
    %v2649 = vadd.f32 %v2647, 1e-05
    %v2650 = vrsqrt.pop %v2648
    %v2651 = vrsqrt.pop %v2649
    %v2652 = vmul.f32 %v2636, %v2650
    %v2653 = vmul.f32 %v2637, %v2651
    %v2654 = vlaneseq
    %v2655 = vshrl.u32 %v2654, 7
    %v2656 = vsub.s32 4, %v2655
    %v2657 = vrot.slane %v2626, %v2656
    %v2658 = vmul.f32 %v2652, %v2657
    %v2659 = vmul.f32 %v2653, %v2657
    %v2660 = vlaneseq
    %v2661 = vshrl.u32 %v2660, 7
    %v2662 = vsub.s32 5, %v2661
    %v2663 = vrot.slane %v2626, %v2662
    %v2664 = vadd.f32 %v2658, %v2663
    %v2665 = vadd.f32 %v2659, %v2663
    %v2666 = vpack.c.bf16 %v2665, %v2664
    %s2667 = scalar_lea.vmem %s2, 48
    %v2668 = vld [vmem:[%s2667] sm:$0xf]
    %v2669 = vld [vmem:[%s2667 + $0x4] sm:$0xf]
    %v2670 = vld [vmem:[%s2667 + $0x8] sm:$0xf]
    %v2671 = vld [vmem:[%s2667 + $0xc] sm:$0xf]
    %v2672 = vlaneseq
    %v2673 = vshrl.u32 %v2672, 7
    %v2674 = vsub.s32 0, %v2673
    %v2675 = vrot.slane %v2626, %v2674
    %v2680 = vunpack.c.l.b16 %v2668
    %v2681 = vunpack.c.l.b16 %v2669
    %v2682 = vunpack.c.l.b16 %v2670
    %v2683 = vunpack.c.l.b16 %v2671
    %v2684 = vpack.c.b16 %v2681, %v2680
    %v2685 = vpack.c.b16 %v2683, %v2682
    %v2687 = vsel %vm50, %v2666, 0
    %v2690 = vsel %vm50, %v2684, 0
    %v2693 = vsel %vm50, %v2685, 0
    %2695 = vmatprep.subr.bf16.mxu0 0
    %2696 = vmatpush1.bf16.xpose.msra.mxu0 %v2690
    %2697 = vmatprep.subr.bf16.mxu0 0
    %2698 = vmatpush1.bf16.xpose.msra.mxu0 %v2693
    %2699 = vmatprep.subr.bf16.mxu0 0
    %2700 = vmatpush1.bf16.xpose.msra.mxu0 0
    %2701 = vmatprep.subr.bf16.mxu0 0
    %2702 = vmatpush1.bf16.xpose.msra.mxu0 0
    %2703 = vmatprep.subr.bf16.mxu0 0
    %2704 = vmatpush1.bf16.xpose.msra.mxu0 0
    %2705 = vmatprep.subr.bf16.mxu0 0
    %2706 = vmatpush1.bf16.xpose.msra.mxu0 0
    %2707 = vmatprep.subr.bf16.mxu0 0
    %2708 = vmatpush1.bf16.xpose.msra.mxu0 0
    %2709 = vmatprep.subr.bf16.mxu0 0
    %2710 = vmatpush1.bf16.xpose.msra.mxu0 0
    %2711 = vmatprep.subr.bf16.mxu0 0
    %2712 = vmatpush1.bf16.xpose.msra.mxu0 0
    %2713 = vmatprep.subr.bf16.mxu0 0
    %2714 = vmatpush1.bf16.xpose.msra.mxu0 0
    %2715 = vmatprep.subr.bf16.mxu0 0
    %2716 = vmatpush1.bf16.xpose.msra.mxu0 0
    %2717 = vmatprep.subr.bf16.mxu0 0
    %2718 = vmatpush1.bf16.xpose.msra.mxu0 0
    %2719 = vmatprep.subr.bf16.mxu0 0
    %2720 = vmatpush1.bf16.xpose.msra.mxu0 0
    %2721 = vmatprep.subr.bf16.mxu0 0
    %2722 = vmatpush1.bf16.xpose.msra.mxu0 0
    %2723 = vmatprep.subr.bf16.mxu0 0
    %2724 = vmatpush1.bf16.xpose.msra.mxu0 0
    %2725 = vmatprep.subr.bf16.mxu0 0
    %2726 = vmatpush1.bf16.xpose.msra.mxu0 0
    %2727 = vmatprep.mubr.bf16.mxu0 0
    %2728 = vmatmul.mubr.bf16.gmra.mrb[0].mxu0 %v2687
    %v2729 = vpop.f32.mrb[0].mxu0
    %v2730 = vadd.f32 %v2675, %v2729
    %v2731 = vpop.f32.mrb[0].mxu0
    %v2732 = vpop.f32.mrb[0].mxu0
    %v2733 = vadd.f32 %v2675, %v2732
    %v2734 = vpop.f32.mrb[0].mxu0
    %2735 = vdwg.mxu0
    %s2736 = scalar_lea.vmem %s2, 64
    %v2737 = vld [vmem:[%s2736] sm:$0xf]
    %v2738 = vld [vmem:[%s2736 + $0x4] sm:$0xf]
    %v2739 = vld [vmem:[%s2736 + $0x8] sm:$0xf]
    %v2740 = vld [vmem:[%s2736 + $0xc] sm:$0xf]
    %v2741 = vlaneseq
    %v2742 = vshrl.u32 %v2741, 7
    %v2743 = vsub.s32 1, %v2742
    %v2744 = vrot.slane %v2626, %v2743
    %v2749 = vunpack.c.l.b16 %v2737
    %v2750 = vunpack.c.l.b16 %v2738
    %v2751 = vunpack.c.l.b16 %v2739
    %v2752 = vunpack.c.l.b16 %v2740
    %v2753 = vpack.c.b16 %v2750, %v2749
    %v2754 = vpack.c.b16 %v2752, %v2751
    %v2756 = vsel %vm50, %v2753, 0
    %v2759 = vsel %vm50, %v2754, 0
    %2761 = vmatprep.subr.bf16.mxu0 0
    %2762 = vmatpush1.bf16.xpose.msra.mxu0 %v2756
    %2763 = vmatprep.subr.bf16.mxu0 0
    %2764 = vmatpush1.bf16.xpose.msra.mxu0 %v2759
    %2765 = vmatprep.subr.bf16.mxu0 0
    %2766 = vmatpush1.bf16.xpose.msra.mxu0 0
    %2767 = vmatprep.subr.bf16.mxu0 0
    %2768 = vmatpush1.bf16.xpose.msra.mxu0 0
    %2769 = vmatprep.subr.bf16.mxu0 0
    %2770 = vmatpush1.bf16.xpose.msra.mxu0 0
    %2771 = vmatprep.subr.bf16.mxu0 0
    %2772 = vmatpush1.bf16.xpose.msra.mxu0 0
    %2773 = vmatprep.subr.bf16.mxu0 0
    %2774 = vmatpush1.bf16.xpose.msra.mxu0 0
    %2775 = vmatprep.subr.bf16.mxu0 0
    %2776 = vmatpush1.bf16.xpose.msra.mxu0 0
    %2777 = vmatprep.subr.bf16.mxu0 0
    %2778 = vmatpush1.bf16.xpose.msra.mxu0 0
    %2779 = vmatprep.subr.bf16.mxu0 0
    %2780 = vmatpush1.bf16.xpose.msra.mxu0 0
    %2781 = vmatprep.subr.bf16.mxu0 0
    %2782 = vmatpush1.bf16.xpose.msra.mxu0 0
    %2783 = vmatprep.subr.bf16.mxu0 0
    %2784 = vmatpush1.bf16.xpose.msra.mxu0 0
    %2785 = vmatprep.subr.bf16.mxu0 0
    %2786 = vmatpush1.bf16.xpose.msra.mxu0 0
    %2787 = vmatprep.subr.bf16.mxu0 0
    %2788 = vmatpush1.bf16.xpose.msra.mxu0 0
    %2789 = vmatprep.subr.bf16.mxu0 0
    %2790 = vmatpush1.bf16.xpose.msra.mxu0 0
    %2791 = vmatprep.subr.bf16.mxu0 0
    %2792 = vmatpush1.bf16.xpose.msra.mxu0 0
    %2793 = vmatprep.mubr.bf16.mxu0 0
    %2794 = vmatmul.mubr.bf16.gmra.mrb[0].mxu0 %v2687
    %v2795 = vpop.f32.mrb[0].mxu0
    %v2796 = vadd.f32 %v2744, %v2795
    %v2797 = vpop.f32.mrb[0].mxu0
    %v2798 = vpop.f32.mrb[0].mxu0
    %v2799 = vadd.f32 %v2744, %v2798
    %v2800 = vpop.f32.mrb[0].mxu0
    %2801 = vdwg.mxu0
    %s2802 = scalar_lea.vmem %s2, 80
    %v2803 = vld [vmem:[%s2802] sm:$0xf]
    %v2804 = vld [vmem:[%s2802 + $0x4] sm:$0xf]
    %v2805 = vld [vmem:[%s2802 + $0x8] sm:$0xf]
    %v2806 = vld [vmem:[%s2802 + $0xc] sm:$0xf]
    %v2807 = vlaneseq
    %v2808 = vshrl.u32 %v2807, 7
    %v2809 = vsub.s32 2, %v2808
    %v2810 = vrot.slane %v2626, %v2809
    %v2815 = vunpack.c.l.b16 %v2803
    %v2816 = vunpack.c.l.b16 %v2804
    %v2817 = vunpack.c.l.b16 %v2805
    %v2818 = vunpack.c.l.b16 %v2806
    %v2819 = vpack.c.b16 %v2816, %v2815
    %v2820 = vpack.c.b16 %v2818, %v2817
    %v2822 = vsel %vm50, %v2819, 0
    %v2825 = vsel %vm50, %v2820, 0
    %2827 = vmatprep.subr.bf16.mxu0 0
    %2828 = vmatpush1.bf16.xpose.msra.mxu0 %v2822
    %2829 = vmatprep.subr.bf16.mxu0 0
    %2830 = vmatpush1.bf16.xpose.msra.mxu0 %v2825
    %2831 = vmatprep.subr.bf16.mxu0 0
    %2832 = vmatpush1.bf16.xpose.msra.mxu0 0
    %2833 = vmatprep.subr.bf16.mxu0 0
    %2834 = vmatpush1.bf16.xpose.msra.mxu0 0
    %2835 = vmatprep.subr.bf16.mxu0 0
    %2836 = vmatpush1.bf16.xpose.msra.mxu0 0
    %2837 = vmatprep.subr.bf16.mxu0 0
    %2838 = vmatpush1.bf16.xpose.msra.mxu0 0
    %2839 = vmatprep.subr.bf16.mxu0 0
    %2840 = vmatpush1.bf16.xpose.msra.mxu0 0
    %2841 = vmatprep.subr.bf16.mxu0 0
    %2842 = vmatpush1.bf16.xpose.msra.mxu0 0
    %2843 = vmatprep.subr.bf16.mxu0 0
    %2844 = vmatpush1.bf16.xpose.msra.mxu0 0
    %2845 = vmatprep.subr.bf16.mxu0 0
    %2846 = vmatpush1.bf16.xpose.msra.mxu0 0
    %2847 = vmatprep.subr.bf16.mxu0 0
    %2848 = vmatpush1.bf16.xpose.msra.mxu0 0
    %2849 = vmatprep.subr.bf16.mxu0 0
    %2850 = vmatpush1.bf16.xpose.msra.mxu0 0
    %2851 = vmatprep.subr.bf16.mxu0 0
    %2852 = vmatpush1.bf16.xpose.msra.mxu0 0
    %2853 = vmatprep.subr.bf16.mxu0 0
    %2854 = vmatpush1.bf16.xpose.msra.mxu0 0
    %2855 = vmatprep.subr.bf16.mxu0 0
    %2856 = vmatpush1.bf16.xpose.msra.mxu0 0
    %2857 = vmatprep.subr.bf16.mxu0 0
    %2858 = vmatpush1.bf16.xpose.msra.mxu0 0
    %2859 = vmatprep.mubr.bf16.mxu0 0
    %2860 = vmatmul.mubr.bf16.gmra.mrb[0].mxu0 %v2687
    %v2861 = vpop.f32.mrb[0].mxu0
    %v2862 = vadd.f32 %v2810, %v2861
    %v2863 = vpop.f32.mrb[0].mxu0
    %v2864 = vpop.f32.mrb[0].mxu0
    %v2865 = vadd.f32 %v2810, %v2864
    %v2866 = vpop.f32.mrb[0].mxu0
    %2867 = vdwg.mxu0
    %2870 = vrot.lane.b32.xlu0 %v2730, 120
    %v2871 = vpop.permute.xlu0 %2870
    %2872 = vrot.lane.b32.xlu0 %v2733, 120
    %v2873 = vpop.permute.xlu0 %2872
    %2876 = vrot.lane.b32.xlu0 %v2730, 112
    %v2877 = vpop.permute.xlu0 %2876
    %2878 = vrot.lane.b32.xlu0 %v2733, 112
    %v2879 = vpop.permute.xlu0 %2878
    %2882 = vrot.lane.b32.xlu0 %v2730, 104
    %v2883 = vpop.permute.xlu0 %2882
    %2884 = vrot.lane.b32.xlu0 %v2733, 104
    %v2885 = vpop.permute.xlu0 %2884
    %v2888 = vcombine.low %v2730, %v2877
    %v2889 = vcombine.high %v2730, %v2877
    %v2891 = vunpack.c.l.s4 1983009808
    %v2892 = vunpack.c.0.s8 %v2891
    %v2893 = vlaneseq
    %v2894 = vshrl.u32 %v2893, 7
    %v2895 = vsub.s32 %v2892, %v2894
    %v2896 = vrot.slane %v2888, %v2895
    %v2898 = vunpack.c.l.s4 1983009808
    %v2899 = vunpack.c.0.s8 %v2898
    %v2900 = vlaneseq
    %v2901 = vshrl.u32 %v2900, 7
    %v2902 = vsub.s32 %v2899, %v2901
    %v2903 = vrot.slane %v2889, %v2902
    %v2904 = vcombine.low %v2871, %v2883
    %v2905 = vcombine.high %v2871, %v2883
    %v2907 = vunpack.c.l.s4 1983009808
    %v2908 = vunpack.c.0.s8 %v2907
    %v2909 = vlaneseq
    %v2910 = vshrl.u32 %v2909, 7
    %v2911 = vsub.s32 %v2908, %v2910
    %v2912 = vrot.slane %v2904, %v2911
    %v2914 = vunpack.c.l.s4 1983009808
    %v2915 = vunpack.c.0.s8 %v2914
    %v2916 = vlaneseq
    %v2917 = vshrl.u32 %v2916, 7
    %v2918 = vsub.s32 %v2915, %v2917
    %v2919 = vrot.slane %v2905, %v2918
    %v2920 = vcombine.low %v2896, %v2912
    %v2921 = vcombine.high %v2896, %v2912
    %v2923 = vunpack.c.l.s4 1934713408
    %v2924 = vunpack.c.0.s8 %v2923
    %v2925 = vlaneseq
    %v2926 = vshrl.u32 %v2925, 7
    %v2927 = vsub.s32 %v2924, %v2926
    %v2928 = vrot.slane %v2920, %v2927
    %v2930 = vunpack.c.l.s4 1934713408
    %v2931 = vunpack.c.0.s8 %v2930
    %v2932 = vlaneseq
    %v2933 = vshrl.u32 %v2932, 7
    %v2934 = vsub.s32 %v2931, %v2933
    %v2935 = vrot.slane %v2921, %v2934
    %v2936 = vcombine.low %v2903, %v2919
    %v2937 = vcombine.high %v2903, %v2919
    %v2939 = vunpack.c.l.s4 1934713408
    %v2940 = vunpack.c.0.s8 %v2939
    %v2941 = vlaneseq
    %v2942 = vshrl.u32 %v2941, 7
    %v2943 = vsub.s32 %v2940, %v2942
    %v2944 = vrot.slane %v2936, %v2943
    %v2946 = vunpack.c.l.s4 1934713408
    %v2947 = vunpack.c.0.s8 %v2946
    %v2948 = vlaneseq
    %v2949 = vshrl.u32 %v2948, 7
    %v2950 = vsub.s32 %v2947, %v2949
    %v2951 = vrot.slane %v2937, %v2950
    %v2952 = vcombine.high %v2928, 0.0
    %v2953 = vcombine.high %v2935, 0.0
    %v2954 = vcombine.high %v2944, 0.0
    %v2955 = vcombine.high %v2951, 0.0
    %v2956 = vcombine.low %v2733, %v2879
    %v2957 = vcombine.high %v2733, %v2879
    %v2959 = vunpack.c.l.s4 1983009808
    %v2960 = vunpack.c.0.s8 %v2959
    %v2961 = vlaneseq
    %v2962 = vshrl.u32 %v2961, 7
    %v2963 = vsub.s32 %v2960, %v2962
    %v2964 = vrot.slane %v2956, %v2963
    %v2966 = vunpack.c.l.s4 1983009808
    %v2967 = vunpack.c.0.s8 %v2966
    %v2968 = vlaneseq
    %v2969 = vshrl.u32 %v2968, 7
    %v2970 = vsub.s32 %v2967, %v2969
    %v2971 = vrot.slane %v2957, %v2970
    %v2972 = vcombine.low %v2873, %v2885
    %v2973 = vcombine.high %v2873, %v2885
    %v2975 = vunpack.c.l.s4 1983009808
    %v2976 = vunpack.c.0.s8 %v2975
    %v2977 = vlaneseq
    %v2978 = vshrl.u32 %v2977, 7
    %v2979 = vsub.s32 %v2976, %v2978
    %v2980 = vrot.slane %v2972, %v2979
    %v2982 = vunpack.c.l.s4 1983009808
    %v2983 = vunpack.c.0.s8 %v2982
    %v2984 = vlaneseq
    %v2985 = vshrl.u32 %v2984, 7
    %v2986 = vsub.s32 %v2983, %v2985
    %v2987 = vrot.slane %v2973, %v2986
    %v2988 = vcombine.low %v2964, %v2980
    %v2989 = vcombine.high %v2964, %v2980
    %v2991 = vunpack.c.l.s4 1934713408
    %v2992 = vunpack.c.0.s8 %v2991
    %v2993 = vlaneseq
    %v2994 = vshrl.u32 %v2993, 7
    %v2995 = vsub.s32 %v2992, %v2994
    %v2996 = vrot.slane %v2988, %v2995
    %v2998 = vunpack.c.l.s4 1934713408
    %v2999 = vunpack.c.0.s8 %v2998
    %v3000 = vlaneseq
    %v3001 = vshrl.u32 %v3000, 7
    %v3002 = vsub.s32 %v2999, %v3001
    %v3003 = vrot.slane %v2989, %v3002
    %v3004 = vcombine.low %v2971, %v2987
    %v3005 = vcombine.high %v2971, %v2987
    %v3007 = vunpack.c.l.s4 1934713408
    %v3008 = vunpack.c.0.s8 %v3007
    %v3009 = vlaneseq
    %v3010 = vshrl.u32 %v3009, 7
    %v3011 = vsub.s32 %v3008, %v3010
    %v3012 = vrot.slane %v3004, %v3011
    %v3014 = vunpack.c.l.s4 1934713408
    %v3015 = vunpack.c.0.s8 %v3014
    %v3016 = vlaneseq
    %v3017 = vshrl.u32 %v3016, 7
    %v3018 = vsub.s32 %v3015, %v3017
    %v3019 = vrot.slane %v3005, %v3018
    %v3020 = vcombine.high %v2996, 0.0
    %v3021 = vcombine.high %v3003, 0.0
    %v3022 = vcombine.high %v3012, 0.0
    %v3023 = vcombine.high %v3019, 0.0
    %v3024 = vcombine.low %v2928, %v2935
    %v3026 = vunpack.c.l.s4 1983009808
    %v3027 = vunpack.c.0.s8 %v3026
    %v3028 = vlaneseq
    %v3029 = vshrl.u32 %v3028, 7
    %v3030 = vsub.s32 %v3027, %v3029
    %v3031 = vrot.slane %v3024, %v3030
    %v3032 = vcombine.low %v2952, %v2953
    %v3034 = vunpack.c.l.s4 1983009808
    %v3035 = vunpack.c.0.s8 %v3034
    %v3036 = vlaneseq
    %v3037 = vshrl.u32 %v3036, 7
    %v3038 = vsub.s32 %v3035, %v3037
    %v3039 = vrot.slane %v3032, %v3038
    %v3040 = vcombine.low %v2944, %v2951
    %v3042 = vunpack.c.l.s4 1983009808
    %v3043 = vunpack.c.0.s8 %v3042
    %v3044 = vlaneseq
    %v3045 = vshrl.u32 %v3044, 7
    %v3046 = vsub.s32 %v3043, %v3045
    %v3047 = vrot.slane %v3040, %v3046
    %v3048 = vcombine.low %v2954, %v2955
    %v3050 = vunpack.c.l.s4 1983009808
    %v3051 = vunpack.c.0.s8 %v3050
    %v3052 = vlaneseq
    %v3053 = vshrl.u32 %v3052, 7
    %v3054 = vsub.s32 %v3051, %v3053
    %v3055 = vrot.slane %v3048, %v3054
    %v3056 = vcombine.low %v3031, %v3039
    %v3057 = vcombine.high %v3031, %v3039
    %v3059 = vunpack.c.l.s4 1934713408
    %v3060 = vunpack.c.0.s8 %v3059
    %v3061 = vlaneseq
    %v3062 = vshrl.u32 %v3061, 7
    %v3063 = vsub.s32 %v3060, %v3062
    %v3064 = vrot.slane %v3056, %v3063
    %v3066 = vunpack.c.l.s4 1934713408
    %v3067 = vunpack.c.0.s8 %v3066
    %v3068 = vlaneseq
    %v3069 = vshrl.u32 %v3068, 7
    %v3070 = vsub.s32 %v3067, %v3069
    %v3071 = vrot.slane %v3057, %v3070
    %v3072 = vcombine.low %v3047, %v3055
    %v3073 = vcombine.high %v3047, %v3055
    %v3075 = vunpack.c.l.s4 1934713408
    %v3076 = vunpack.c.0.s8 %v3075
    %v3077 = vlaneseq
    %v3078 = vshrl.u32 %v3077, 7
    %v3079 = vsub.s32 %v3076, %v3078
    %v3080 = vrot.slane %v3072, %v3079
    %v3082 = vunpack.c.l.s4 1934713408
    %v3083 = vunpack.c.0.s8 %v3082
    %v3084 = vlaneseq
    %v3085 = vshrl.u32 %v3084, 7
    %v3086 = vsub.s32 %v3083, %v3085
    %v3087 = vrot.slane %v3073, %v3086
    %v3088 = vcombine.low %v3064, %v3080
    %v3089 = vcombine.high %v3064, %v3080
    %v3090 = vcombine.low %v3071, %v3087
    %v3091 = vcombine.high %v3071, %v3087
    %v3092 = vcombine.low %v2996, %v3003
    %v3094 = vunpack.c.l.s4 1983009808
    %v3095 = vunpack.c.0.s8 %v3094
    %v3096 = vlaneseq
    %v3097 = vshrl.u32 %v3096, 7
    %v3098 = vsub.s32 %v3095, %v3097
    %v3099 = vrot.slane %v3092, %v3098
    %v3100 = vcombine.low %v3020, %v3021
    %v3102 = vunpack.c.l.s4 1983009808
    %v3103 = vunpack.c.0.s8 %v3102
    %v3104 = vlaneseq
    %v3105 = vshrl.u32 %v3104, 7
    %v3106 = vsub.s32 %v3103, %v3105
    %v3107 = vrot.slane %v3100, %v3106
    %v3108 = vcombine.low %v3012, %v3019
    %v3110 = vunpack.c.l.s4 1983009808
    %v3111 = vunpack.c.0.s8 %v3110
    %v3112 = vlaneseq
    %v3113 = vshrl.u32 %v3112, 7
    %v3114 = vsub.s32 %v3111, %v3113
    %v3115 = vrot.slane %v3108, %v3114
    %v3116 = vcombine.low %v3022, %v3023
    %v3118 = vunpack.c.l.s4 1983009808
    %v3119 = vunpack.c.0.s8 %v3118
    %v3120 = vlaneseq
    %v3121 = vshrl.u32 %v3120, 7
    %v3122 = vsub.s32 %v3119, %v3121
    %v3123 = vrot.slane %v3116, %v3122
    %v3124 = vcombine.low %v3099, %v3107
    %v3125 = vcombine.high %v3099, %v3107
    %v3127 = vunpack.c.l.s4 1934713408
    %v3128 = vunpack.c.0.s8 %v3127
    %v3129 = vlaneseq
    %v3130 = vshrl.u32 %v3129, 7
    %v3131 = vsub.s32 %v3128, %v3130
    %v3132 = vrot.slane %v3124, %v3131
    %v3134 = vunpack.c.l.s4 1934713408
    %v3135 = vunpack.c.0.s8 %v3134
    %v3136 = vlaneseq
    %v3137 = vshrl.u32 %v3136, 7
    %v3138 = vsub.s32 %v3135, %v3137
    %v3139 = vrot.slane %v3125, %v3138
    %v3140 = vcombine.low %v3115, %v3123
    %v3141 = vcombine.high %v3115, %v3123
    %v3143 = vunpack.c.l.s4 1934713408
    %v3144 = vunpack.c.0.s8 %v3143
    %v3145 = vlaneseq
    %v3146 = vshrl.u32 %v3145, 7
    %v3147 = vsub.s32 %v3144, %v3146
    %v3148 = vrot.slane %v3140, %v3147
    %v3150 = vunpack.c.l.s4 1934713408
    %v3151 = vunpack.c.0.s8 %v3150
    %v3152 = vlaneseq
    %v3153 = vshrl.u32 %v3152, 7
    %v3154 = vsub.s32 %v3151, %v3153
    %v3155 = vrot.slane %v3141, %v3154
    %v3156 = vcombine.low %v3132, %v3148
    %v3157 = vcombine.high %v3132, %v3148
    %v3158 = vcombine.low %v3139, %v3155
    %v3159 = vcombine.high %v3139, %v3155
    %v3160 = vpack.c.bf16 %v3088, %v3088
    %v3161 = vpack.c.bf16 %v3089, %v3089
    %v3162 = vpack.c.bf16 %v3090, %v3090
    %v3163 = vpack.c.bf16 %v3091, %v3091
    %v3164 = vpack.c.bf16 %v3156, %v3156
    %v3165 = vpack.c.bf16 %v3157, %v3157
    %v3166 = vpack.c.bf16 %v3158, %v3158
    %v3167 = vpack.c.bf16 %v3159, %v3159
    %3170 = vrot.lane.b32.xlu0 %v2796, 120
    %v3171 = vpop.permute.xlu0 %3170
    %3172 = vrot.lane.b32.xlu0 %v2799, 120
    %v3173 = vpop.permute.xlu0 %3172
    %3176 = vrot.lane.b32.xlu0 %v2796, 112
    %v3177 = vpop.permute.xlu0 %3176
    %3178 = vrot.lane.b32.xlu0 %v2799, 112
    %v3179 = vpop.permute.xlu0 %3178
    %3182 = vrot.lane.b32.xlu0 %v2796, 104
    %v3183 = vpop.permute.xlu0 %3182
    %3184 = vrot.lane.b32.xlu0 %v2799, 104
    %v3185 = vpop.permute.xlu0 %3184
    %v3188 = vcombine.low %v2796, %v3177
    %v3189 = vcombine.high %v2796, %v3177
    %v3191 = vunpack.c.l.s4 1983009808
    %v3192 = vunpack.c.0.s8 %v3191
    %v3193 = vlaneseq
    %v3194 = vshrl.u32 %v3193, 7
    %v3195 = vsub.s32 %v3192, %v3194
    %v3196 = vrot.slane %v3188, %v3195
    %v3198 = vunpack.c.l.s4 1983009808
    %v3199 = vunpack.c.0.s8 %v3198
    %v3200 = vlaneseq
    %v3201 = vshrl.u32 %v3200, 7
    %v3202 = vsub.s32 %v3199, %v3201
    %v3203 = vrot.slane %v3189, %v3202
    %v3204 = vcombine.low %v3171, %v3183
    %v3205 = vcombine.high %v3171, %v3183
    %v3207 = vunpack.c.l.s4 1983009808
    %v3208 = vunpack.c.0.s8 %v3207
    %v3209 = vlaneseq
    %v3210 = vshrl.u32 %v3209, 7
    %v3211 = vsub.s32 %v3208, %v3210
    %v3212 = vrot.slane %v3204, %v3211
    %v3214 = vunpack.c.l.s4 1983009808
    %v3215 = vunpack.c.0.s8 %v3214
    %v3216 = vlaneseq
    %v3217 = vshrl.u32 %v3216, 7
    %v3218 = vsub.s32 %v3215, %v3217
    %v3219 = vrot.slane %v3205, %v3218
    %v3220 = vcombine.low %v3196, %v3212
    %v3221 = vcombine.high %v3196, %v3212
    %v3223 = vunpack.c.l.s4 1934713408
    %v3224 = vunpack.c.0.s8 %v3223
    %v3225 = vlaneseq
    %v3226 = vshrl.u32 %v3225, 7
    %v3227 = vsub.s32 %v3224, %v3226
    %v3228 = vrot.slane %v3220, %v3227
    %v3230 = vunpack.c.l.s4 1934713408
    %v3231 = vunpack.c.0.s8 %v3230
    %v3232 = vlaneseq
    %v3233 = vshrl.u32 %v3232, 7
    %v3234 = vsub.s32 %v3231, %v3233
    %v3235 = vrot.slane %v3221, %v3234
    %v3236 = vcombine.low %v3203, %v3219
    %v3237 = vcombine.high %v3203, %v3219
    %v3239 = vunpack.c.l.s4 1934713408
    %v3240 = vunpack.c.0.s8 %v3239
    %v3241 = vlaneseq
    %v3242 = vshrl.u32 %v3241, 7
    %v3243 = vsub.s32 %v3240, %v3242
    %v3244 = vrot.slane %v3236, %v3243
    %v3246 = vunpack.c.l.s4 1934713408
    %v3247 = vunpack.c.0.s8 %v3246
    %v3248 = vlaneseq
    %v3249 = vshrl.u32 %v3248, 7
    %v3250 = vsub.s32 %v3247, %v3249
    %v3251 = vrot.slane %v3237, %v3250
    %v3252 = vcombine.high %v3228, 0.0
    %v3253 = vcombine.high %v3235, 0.0
    %v3254 = vcombine.high %v3244, 0.0
    %v3255 = vcombine.high %v3251, 0.0
    %v3256 = vcombine.low %v2799, %v3179
    %v3257 = vcombine.high %v2799, %v3179
    %v3259 = vunpack.c.l.s4 1983009808
    %v3260 = vunpack.c.0.s8 %v3259
    %v3261 = vlaneseq
    %v3262 = vshrl.u32 %v3261, 7
    %v3263 = vsub.s32 %v3260, %v3262
    %v3264 = vrot.slane %v3256, %v3263
    %v3266 = vunpack.c.l.s4 1983009808
    %v3267 = vunpack.c.0.s8 %v3266
    %v3268 = vlaneseq
    %v3269 = vshrl.u32 %v3268, 7
    %v3270 = vsub.s32 %v3267, %v3269
    %v3271 = vrot.slane %v3257, %v3270
    %v3272 = vcombine.low %v3173, %v3185
    %v3273 = vcombine.high %v3173, %v3185
    %v3275 = vunpack.c.l.s4 1983009808
    %v3276 = vunpack.c.0.s8 %v3275
    %v3277 = vlaneseq
    %v3278 = vshrl.u32 %v3277, 7
    %v3279 = vsub.s32 %v3276, %v3278
    %v3280 = vrot.slane %v3272, %v3279
    %v3282 = vunpack.c.l.s4 1983009808
    %v3283 = vunpack.c.0.s8 %v3282
    %v3284 = vlaneseq
    %v3285 = vshrl.u32 %v3284, 7
    %v3286 = vsub.s32 %v3283, %v3285
    %v3287 = vrot.slane %v3273, %v3286
    %v3288 = vcombine.low %v3264, %v3280
    %v3289 = vcombine.high %v3264, %v3280
    %v3291 = vunpack.c.l.s4 1934713408
    %v3292 = vunpack.c.0.s8 %v3291
    %v3293 = vlaneseq
    %v3294 = vshrl.u32 %v3293, 7
    %v3295 = vsub.s32 %v3292, %v3294
    %v3296 = vrot.slane %v3288, %v3295
    %v3298 = vunpack.c.l.s4 1934713408
    %v3299 = vunpack.c.0.s8 %v3298
    %v3300 = vlaneseq
    %v3301 = vshrl.u32 %v3300, 7
    %v3302 = vsub.s32 %v3299, %v3301
    %v3303 = vrot.slane %v3289, %v3302
    %v3304 = vcombine.low %v3271, %v3287
    %v3305 = vcombine.high %v3271, %v3287
    %v3307 = vunpack.c.l.s4 1934713408
    %v3308 = vunpack.c.0.s8 %v3307
    %v3309 = vlaneseq
    %v3310 = vshrl.u32 %v3309, 7
    %v3311 = vsub.s32 %v3308, %v3310
    %v3312 = vrot.slane %v3304, %v3311
    %v3314 = vunpack.c.l.s4 1934713408
    %v3315 = vunpack.c.0.s8 %v3314
    %v3316 = vlaneseq
    %v3317 = vshrl.u32 %v3316, 7
    %v3318 = vsub.s32 %v3315, %v3317
    %v3319 = vrot.slane %v3305, %v3318
    %v3320 = vcombine.high %v3296, 0.0
    %v3321 = vcombine.high %v3303, 0.0
    %v3322 = vcombine.high %v3312, 0.0
    %v3323 = vcombine.high %v3319, 0.0
    %v3324 = vcombine.low %v3228, %v3235
    %v3326 = vunpack.c.l.s4 1983009808
    %v3327 = vunpack.c.0.s8 %v3326
    %v3328 = vlaneseq
    %v3329 = vshrl.u32 %v3328, 7
    %v3330 = vsub.s32 %v3327, %v3329
    %v3331 = vrot.slane %v3324, %v3330
    %v3332 = vcombine.low %v3252, %v3253
    %v3334 = vunpack.c.l.s4 1983009808
    %v3335 = vunpack.c.0.s8 %v3334
    %v3336 = vlaneseq
    %v3337 = vshrl.u32 %v3336, 7
    %v3338 = vsub.s32 %v3335, %v3337
    %v3339 = vrot.slane %v3332, %v3338
    %v3340 = vcombine.low %v3244, %v3251
    %v3342 = vunpack.c.l.s4 1983009808
    %v3343 = vunpack.c.0.s8 %v3342
    %v3344 = vlaneseq
    %v3345 = vshrl.u32 %v3344, 7
    %v3346 = vsub.s32 %v3343, %v3345
    %v3347 = vrot.slane %v3340, %v3346
    %v3348 = vcombine.low %v3254, %v3255
    %v3350 = vunpack.c.l.s4 1983009808
    %v3351 = vunpack.c.0.s8 %v3350
    %v3352 = vlaneseq
    %v3353 = vshrl.u32 %v3352, 7
    %v3354 = vsub.s32 %v3351, %v3353
    %v3355 = vrot.slane %v3348, %v3354
    %v3356 = vcombine.low %v3331, %v3339
    %v3357 = vcombine.high %v3331, %v3339
    %v3359 = vunpack.c.l.s4 1934713408
    %v3360 = vunpack.c.0.s8 %v3359
    %v3361 = vlaneseq
    %v3362 = vshrl.u32 %v3361, 7
    %v3363 = vsub.s32 %v3360, %v3362
    %v3364 = vrot.slane %v3356, %v3363
    %v3366 = vunpack.c.l.s4 1934713408
    %v3367 = vunpack.c.0.s8 %v3366
    %v3368 = vlaneseq
    %v3369 = vshrl.u32 %v3368, 7
    %v3370 = vsub.s32 %v3367, %v3369
    %v3371 = vrot.slane %v3357, %v3370
    %v3372 = vcombine.low %v3347, %v3355
    %v3373 = vcombine.high %v3347, %v3355
    %v3375 = vunpack.c.l.s4 1934713408
    %v3376 = vunpack.c.0.s8 %v3375
    %v3377 = vlaneseq
    %v3378 = vshrl.u32 %v3377, 7
    %v3379 = vsub.s32 %v3376, %v3378
    %v3380 = vrot.slane %v3372, %v3379
    %v3382 = vunpack.c.l.s4 1934713408
    %v3383 = vunpack.c.0.s8 %v3382
    %v3384 = vlaneseq
    %v3385 = vshrl.u32 %v3384, 7
    %v3386 = vsub.s32 %v3383, %v3385
    %v3387 = vrot.slane %v3373, %v3386
    %v3388 = vcombine.low %v3364, %v3380
    %v3389 = vcombine.high %v3364, %v3380
    %v3390 = vcombine.low %v3371, %v3387
    %v3391 = vcombine.high %v3371, %v3387
    %v3392 = vcombine.low %v3296, %v3303
    %v3394 = vunpack.c.l.s4 1983009808
    %v3395 = vunpack.c.0.s8 %v3394
    %v3396 = vlaneseq
    %v3397 = vshrl.u32 %v3396, 7
    %v3398 = vsub.s32 %v3395, %v3397
    %v3399 = vrot.slane %v3392, %v3398
    %v3400 = vcombine.low %v3320, %v3321
    %v3402 = vunpack.c.l.s4 1983009808
    %v3403 = vunpack.c.0.s8 %v3402
    %v3404 = vlaneseq
    %v3405 = vshrl.u32 %v3404, 7
    %v3406 = vsub.s32 %v3403, %v3405
    %v3407 = vrot.slane %v3400, %v3406
    %v3408 = vcombine.low %v3312, %v3319
    %v3410 = vunpack.c.l.s4 1983009808
    %v3411 = vunpack.c.0.s8 %v3410
    %v3412 = vlaneseq
    %v3413 = vshrl.u32 %v3412, 7
    %v3414 = vsub.s32 %v3411, %v3413
    %v3415 = vrot.slane %v3408, %v3414
    %v3416 = vcombine.low %v3322, %v3323
    %v3418 = vunpack.c.l.s4 1983009808
    %v3419 = vunpack.c.0.s8 %v3418
    %v3420 = vlaneseq
    %v3421 = vshrl.u32 %v3420, 7
    %v3422 = vsub.s32 %v3419, %v3421
    %v3423 = vrot.slane %v3416, %v3422
    %v3424 = vcombine.low %v3399, %v3407
    %v3425 = vcombine.high %v3399, %v3407
    %v3427 = vunpack.c.l.s4 1934713408
    %v3428 = vunpack.c.0.s8 %v3427
    %v3429 = vlaneseq
    %v3430 = vshrl.u32 %v3429, 7
    %v3431 = vsub.s32 %v3428, %v3430
    %v3432 = vrot.slane %v3424, %v3431
    %v3434 = vunpack.c.l.s4 1934713408
    %v3435 = vunpack.c.0.s8 %v3434
    %v3436 = vlaneseq
    %v3437 = vshrl.u32 %v3436, 7
    %v3438 = vsub.s32 %v3435, %v3437
    %v3439 = vrot.slane %v3425, %v3438
    %v3440 = vcombine.low %v3415, %v3423
    %v3441 = vcombine.high %v3415, %v3423
    %v3443 = vunpack.c.l.s4 1934713408
    %v3444 = vunpack.c.0.s8 %v3443
    %v3445 = vlaneseq
    %v3446 = vshrl.u32 %v3445, 7
    %v3447 = vsub.s32 %v3444, %v3446
    %v3448 = vrot.slane %v3440, %v3447
    %v3450 = vunpack.c.l.s4 1934713408
    %v3451 = vunpack.c.0.s8 %v3450
    %v3452 = vlaneseq
    %v3453 = vshrl.u32 %v3452, 7
    %v3454 = vsub.s32 %v3451, %v3453
    %v3455 = vrot.slane %v3441, %v3454
    %v3456 = vcombine.low %v3432, %v3448
    %v3457 = vcombine.high %v3432, %v3448
    %v3458 = vcombine.low %v3439, %v3455
    %v3459 = vcombine.high %v3439, %v3455
    %v3460 = vpack.c.bf16 %v3388, %v3388
    %v3461 = vpack.c.bf16 %v3389, %v3389
    %v3462 = vpack.c.bf16 %v3390, %v3390
    %v3463 = vpack.c.bf16 %v3391, %v3391
    %v3464 = vpack.c.bf16 %v3456, %v3456
    %v3465 = vpack.c.bf16 %v3457, %v3457
    %v3466 = vpack.c.bf16 %v3458, %v3458
    %v3467 = vpack.c.bf16 %v3459, %v3459
    %3470 = vrot.lane.b32.xlu0 %v2862, 120
    %v3471 = vpop.permute.xlu0 %3470
    %3472 = vrot.lane.b32.xlu0 %v2865, 120
    %v3473 = vpop.permute.xlu0 %3472
    %3476 = vrot.lane.b32.xlu0 %v2862, 112
    %v3477 = vpop.permute.xlu0 %3476
    %3478 = vrot.lane.b32.xlu0 %v2865, 112
    %v3479 = vpop.permute.xlu0 %3478
    %3482 = vrot.lane.b32.xlu0 %v2862, 104
    %v3483 = vpop.permute.xlu0 %3482
    %3484 = vrot.lane.b32.xlu0 %v2865, 104
    %v3485 = vpop.permute.xlu0 %3484
    %v3488 = vcombine.low %v2862, %v3477
    %v3489 = vcombine.high %v2862, %v3477
    %v3491 = vunpack.c.l.s4 1983009808
    %v3492 = vunpack.c.0.s8 %v3491
    %v3493 = vlaneseq
    %v3494 = vshrl.u32 %v3493, 7
    %v3495 = vsub.s32 %v3492, %v3494
    %v3496 = vrot.slane %v3488, %v3495
    %v3498 = vunpack.c.l.s4 1983009808
    %v3499 = vunpack.c.0.s8 %v3498
    %v3500 = vlaneseq
    %v3501 = vshrl.u32 %v3500, 7
    %v3502 = vsub.s32 %v3499, %v3501
    %v3503 = vrot.slane %v3489, %v3502
    %v3504 = vcombine.low %v3471, %v3483
    %v3505 = vcombine.high %v3471, %v3483
    %v3507 = vunpack.c.l.s4 1983009808
    %v3508 = vunpack.c.0.s8 %v3507
    %v3509 = vlaneseq
    %v3510 = vshrl.u32 %v3509, 7
    %v3511 = vsub.s32 %v3508, %v3510
    %v3512 = vrot.slane %v3504, %v3511
    %v3514 = vunpack.c.l.s4 1983009808
    %v3515 = vunpack.c.0.s8 %v3514
    %v3516 = vlaneseq
    %v3517 = vshrl.u32 %v3516, 7
    %v3518 = vsub.s32 %v3515, %v3517
    %v3519 = vrot.slane %v3505, %v3518
    %v3520 = vcombine.low %v3496, %v3512
    %v3521 = vcombine.high %v3496, %v3512
    %v3523 = vunpack.c.l.s4 1934713408
    %v3524 = vunpack.c.0.s8 %v3523
    %v3525 = vlaneseq
    %v3526 = vshrl.u32 %v3525, 7
    %v3527 = vsub.s32 %v3524, %v3526
    %v3528 = vrot.slane %v3520, %v3527
    %v3530 = vunpack.c.l.s4 1934713408
    %v3531 = vunpack.c.0.s8 %v3530
    %v3532 = vlaneseq
    %v3533 = vshrl.u32 %v3532, 7
    %v3534 = vsub.s32 %v3531, %v3533
    %v3535 = vrot.slane %v3521, %v3534
    %v3536 = vcombine.low %v3503, %v3519
    %v3537 = vcombine.high %v3503, %v3519
    %v3539 = vunpack.c.l.s4 1934713408
    %v3540 = vunpack.c.0.s8 %v3539
    %v3541 = vlaneseq
    %v3542 = vshrl.u32 %v3541, 7
    %v3543 = vsub.s32 %v3540, %v3542
    %v3544 = vrot.slane %v3536, %v3543
    %v3546 = vunpack.c.l.s4 1934713408
    %v3547 = vunpack.c.0.s8 %v3546
    %v3548 = vlaneseq
    %v3549 = vshrl.u32 %v3548, 7
    %v3550 = vsub.s32 %v3547, %v3549
    %v3551 = vrot.slane %v3537, %v3550
    %v3552 = vcombine.high %v3528, 0.0
    %v3553 = vcombine.high %v3535, 0.0
    %v3554 = vcombine.high %v3544, 0.0
    %v3555 = vcombine.high %v3551, 0.0
    %v3556 = vcombine.low %v2865, %v3479
    %v3557 = vcombine.high %v2865, %v3479
    %v3559 = vunpack.c.l.s4 1983009808
    %v3560 = vunpack.c.0.s8 %v3559
    %v3561 = vlaneseq
    %v3562 = vshrl.u32 %v3561, 7
    %v3563 = vsub.s32 %v3560, %v3562
    %v3564 = vrot.slane %v3556, %v3563
    %v3566 = vunpack.c.l.s4 1983009808
    %v3567 = vunpack.c.0.s8 %v3566
    %v3568 = vlaneseq
    %v3569 = vshrl.u32 %v3568, 7
    %v3570 = vsub.s32 %v3567, %v3569
    %v3571 = vrot.slane %v3557, %v3570
    %v3572 = vcombine.low %v3473, %v3485
    %v3573 = vcombine.high %v3473, %v3485
    %v3575 = vunpack.c.l.s4 1983009808
    %v3576 = vunpack.c.0.s8 %v3575
    %v3577 = vlaneseq
    %v3578 = vshrl.u32 %v3577, 7
    %v3579 = vsub.s32 %v3576, %v3578
    %v3580 = vrot.slane %v3572, %v3579
    %v3582 = vunpack.c.l.s4 1983009808
    %v3583 = vunpack.c.0.s8 %v3582
    %v3584 = vlaneseq
    %v3585 = vshrl.u32 %v3584, 7
    %v3586 = vsub.s32 %v3583, %v3585
    %v3587 = vrot.slane %v3573, %v3586
    %v3588 = vcombine.low %v3564, %v3580
    %v3589 = vcombine.high %v3564, %v3580
    %v3591 = vunpack.c.l.s4 1934713408
    %v3592 = vunpack.c.0.s8 %v3591
    %v3593 = vlaneseq
    %v3594 = vshrl.u32 %v3593, 7
    %v3595 = vsub.s32 %v3592, %v3594
    %v3596 = vrot.slane %v3588, %v3595
    %v3598 = vunpack.c.l.s4 1934713408
    %v3599 = vunpack.c.0.s8 %v3598
    %v3600 = vlaneseq
    %v3601 = vshrl.u32 %v3600, 7
    %v3602 = vsub.s32 %v3599, %v3601
    %v3603 = vrot.slane %v3589, %v3602
    %v3604 = vcombine.low %v3571, %v3587
    %v3605 = vcombine.high %v3571, %v3587
    %v3607 = vunpack.c.l.s4 1934713408
    %v3608 = vunpack.c.0.s8 %v3607
    %v3609 = vlaneseq
    %v3610 = vshrl.u32 %v3609, 7
    %v3611 = vsub.s32 %v3608, %v3610
    %v3612 = vrot.slane %v3604, %v3611
    %v3614 = vunpack.c.l.s4 1934713408
    %v3615 = vunpack.c.0.s8 %v3614
    %v3616 = vlaneseq
    %v3617 = vshrl.u32 %v3616, 7
    %v3618 = vsub.s32 %v3615, %v3617
    %v3619 = vrot.slane %v3605, %v3618
    %v3620 = vcombine.high %v3596, 0.0
    %v3621 = vcombine.high %v3603, 0.0
    %v3622 = vcombine.high %v3612, 0.0
    %v3623 = vcombine.high %v3619, 0.0
    %v3624 = vcombine.low %v3528, %v3535
    %v3626 = vunpack.c.l.s4 1983009808
    %v3627 = vunpack.c.0.s8 %v3626
    %v3628 = vlaneseq
    %v3629 = vshrl.u32 %v3628, 7
    %v3630 = vsub.s32 %v3627, %v3629
    %v3631 = vrot.slane %v3624, %v3630
    %v3632 = vcombine.low %v3552, %v3553
    %v3634 = vunpack.c.l.s4 1983009808
    %v3635 = vunpack.c.0.s8 %v3634
    %v3636 = vlaneseq
    %v3637 = vshrl.u32 %v3636, 7
    %v3638 = vsub.s32 %v3635, %v3637
    %v3639 = vrot.slane %v3632, %v3638
    %v3640 = vcombine.low %v3544, %v3551
    %v3642 = vunpack.c.l.s4 1983009808
    %v3643 = vunpack.c.0.s8 %v3642
    %v3644 = vlaneseq
    %v3645 = vshrl.u32 %v3644, 7
    %v3646 = vsub.s32 %v3643, %v3645
    %v3647 = vrot.slane %v3640, %v3646
    %v3648 = vcombine.low %v3554, %v3555
    %v3650 = vunpack.c.l.s4 1983009808
    %v3651 = vunpack.c.0.s8 %v3650
    %v3652 = vlaneseq
    %v3653 = vshrl.u32 %v3652, 7
    %v3654 = vsub.s32 %v3651, %v3653
    %v3655 = vrot.slane %v3648, %v3654
    %v3656 = vcombine.low %v3631, %v3639
    %v3657 = vcombine.high %v3631, %v3639
    %v3659 = vunpack.c.l.s4 1934713408
    %v3660 = vunpack.c.0.s8 %v3659
    %v3661 = vlaneseq
    %v3662 = vshrl.u32 %v3661, 7
    %v3663 = vsub.s32 %v3660, %v3662
    %v3664 = vrot.slane %v3656, %v3663
    %v3666 = vunpack.c.l.s4 1934713408
    %v3667 = vunpack.c.0.s8 %v3666
    %v3668 = vlaneseq
    %v3669 = vshrl.u32 %v3668, 7
    %v3670 = vsub.s32 %v3667, %v3669
    %v3671 = vrot.slane %v3657, %v3670
    %v3672 = vcombine.low %v3647, %v3655
    %v3673 = vcombine.high %v3647, %v3655
    %v3675 = vunpack.c.l.s4 1934713408
    %v3676 = vunpack.c.0.s8 %v3675
    %v3677 = vlaneseq
    %v3678 = vshrl.u32 %v3677, 7
    %v3679 = vsub.s32 %v3676, %v3678
    %v3680 = vrot.slane %v3672, %v3679
    %v3682 = vunpack.c.l.s4 1934713408
    %v3683 = vunpack.c.0.s8 %v3682
    %v3684 = vlaneseq
    %v3685 = vshrl.u32 %v3684, 7
    %v3686 = vsub.s32 %v3683, %v3685
    %v3687 = vrot.slane %v3673, %v3686
    %v3688 = vcombine.low %v3664, %v3680
    %v3689 = vcombine.high %v3664, %v3680
    %v3690 = vcombine.low %v3671, %v3687
    %v3691 = vcombine.high %v3671, %v3687
    %v3692 = vcombine.low %v3596, %v3603
    %v3694 = vunpack.c.l.s4 1983009808
    %v3695 = vunpack.c.0.s8 %v3694
    %v3696 = vlaneseq
    %v3697 = vshrl.u32 %v3696, 7
    %v3698 = vsub.s32 %v3695, %v3697
    %v3699 = vrot.slane %v3692, %v3698
    %v3700 = vcombine.low %v3620, %v3621
    %v3702 = vunpack.c.l.s4 1983009808
    %v3703 = vunpack.c.0.s8 %v3702
    %v3704 = vlaneseq
    %v3705 = vshrl.u32 %v3704, 7
    %v3706 = vsub.s32 %v3703, %v3705
    %v3707 = vrot.slane %v3700, %v3706
    %v3708 = vcombine.low %v3612, %v3619
    %v3710 = vunpack.c.l.s4 1983009808
    %v3711 = vunpack.c.0.s8 %v3710
    %v3712 = vlaneseq
    %v3713 = vshrl.u32 %v3712, 7
    %v3714 = vsub.s32 %v3711, %v3713
    %v3715 = vrot.slane %v3708, %v3714
    %v3716 = vcombine.low %v3622, %v3623
    %v3718 = vunpack.c.l.s4 1983009808
    %v3719 = vunpack.c.0.s8 %v3718
    %v3720 = vlaneseq
    %v3721 = vshrl.u32 %v3720, 7
    %v3722 = vsub.s32 %v3719, %v3721
    %v3723 = vrot.slane %v3716, %v3722
    %v3724 = vcombine.low %v3699, %v3707
    %v3725 = vcombine.high %v3699, %v3707
    %v3727 = vunpack.c.l.s4 1934713408
    %v3728 = vunpack.c.0.s8 %v3727
    %v3729 = vlaneseq
    %v3730 = vshrl.u32 %v3729, 7
    %v3731 = vsub.s32 %v3728, %v3730
    %v3732 = vrot.slane %v3724, %v3731
    %v3734 = vunpack.c.l.s4 1934713408
    %v3735 = vunpack.c.0.s8 %v3734
    %v3736 = vlaneseq
    %v3737 = vshrl.u32 %v3736, 7
    %v3738 = vsub.s32 %v3735, %v3737
    %v3739 = vrot.slane %v3725, %v3738
    %v3740 = vcombine.low %v3715, %v3723
    %v3741 = vcombine.high %v3715, %v3723
    %v3743 = vunpack.c.l.s4 1934713408
    %v3744 = vunpack.c.0.s8 %v3743
    %v3745 = vlaneseq
    %v3746 = vshrl.u32 %v3745, 7
    %v3747 = vsub.s32 %v3744, %v3746
    %v3748 = vrot.slane %v3740, %v3747
    %v3750 = vunpack.c.l.s4 1934713408
    %v3751 = vunpack.c.0.s8 %v3750
    %v3752 = vlaneseq
    %v3753 = vshrl.u32 %v3752, 7
    %v3754 = vsub.s32 %v3751, %v3753
    %v3755 = vrot.slane %v3741, %v3754
    %v3756 = vcombine.low %v3732, %v3748
    %v3757 = vcombine.high %v3732, %v3748
    %v3758 = vcombine.low %v3739, %v3755
    %v3759 = vcombine.high %v3739, %v3755
    %v3760 = vpack.c.bf16 %v3688, %v3688
    %v3761 = vpack.c.bf16 %v3689, %v3689
    %v3762 = vpack.c.bf16 %v3690, %v3690
    %v3763 = vpack.c.bf16 %v3691, %v3691
    %v3764 = vpack.c.bf16 %v3756, %v3756
    %v3765 = vpack.c.bf16 %v3757, %v3757
    %v3766 = vpack.c.bf16 %v3758, %v3758
    %v3767 = vpack.c.bf16 %v3759, %v3759
    %v3769 = vsel %vm1203, %v3160, 0
    %v3772 = vsel %vm1203, %v3460, 0
    %3774 = vmatprep.subr.bf16.mxu0 0
    %3775 = vmatpush1.bf16.xpose.msra.mxu0 %v3772
    %3776 = vmatprep.subr.bf16.mxu0 0
    %3777 = vmatpush1.bf16.xpose.msra.mxu0 0
    %3778 = vmatprep.subr.bf16.mxu0 0
    %3779 = vmatpush1.bf16.xpose.msra.mxu0 0
    %3780 = vmatprep.subr.bf16.mxu0 0
    %3781 = vmatpush1.bf16.xpose.msra.mxu0 0
    %3782 = vmatprep.subr.bf16.mxu0 0
    %3783 = vmatpush1.bf16.xpose.msra.mxu0 0
    %3784 = vmatprep.subr.bf16.mxu0 0
    %3785 = vmatpush1.bf16.xpose.msra.mxu0 0
    %3786 = vmatprep.subr.bf16.mxu0 0
    %3787 = vmatpush1.bf16.xpose.msra.mxu0 0
    %3788 = vmatprep.subr.bf16.mxu0 0
    %3789 = vmatpush1.bf16.xpose.msra.mxu0 0
    %3790 = vmatprep.subr.bf16.mxu0 0
    %3791 = vmatpush1.bf16.xpose.msra.mxu0 0
    %3792 = vmatprep.subr.bf16.mxu0 0
    %3793 = vmatpush1.bf16.xpose.msra.mxu0 0
    %3794 = vmatprep.subr.bf16.mxu0 0
    %3795 = vmatpush1.bf16.xpose.msra.mxu0 0
    %3796 = vmatprep.subr.bf16.mxu0 0
    %3797 = vmatpush1.bf16.xpose.msra.mxu0 0
    %3798 = vmatprep.subr.bf16.mxu0 0
    %3799 = vmatpush1.bf16.xpose.msra.mxu0 0
    %3800 = vmatprep.subr.bf16.mxu0 0
    %3801 = vmatpush1.bf16.xpose.msra.mxu0 0
    %3802 = vmatprep.subr.bf16.mxu0 0
    %3803 = vmatpush1.bf16.xpose.msra.mxu0 0
    %3804 = vmatprep.subr.bf16.mxu0 0
    %3805 = vmatpush1.bf16.xpose.msra.mxu0 0
    %3806 = vmatprep.mubr.bf16.mxu0 0
    %3807 = vmatmul.mubr.bf16.gmra.mrb[0].mxu0 %v3769
    %v3808 = vpop.f32.mrb[0].mxu0
    %v3809 = vadd.f32 %v1196, %v3808
    %v3810 = vpop.f32.mrb[0].mxu0
    %v3811 = vpop.f32.mrb[0].mxu0
    %v3812 = vpop.f32.mrb[0].mxu0
    %3813 = vdwg.mxu0
    %v3815 = vsel %vm1203, %v3161, 0
    %v3818 = vsel %vm1203, %v3461, 0
    %3820 = vmatprep.subr.bf16.mxu0 0
    %3821 = vmatpush1.bf16.xpose.msra.mxu0 %v3818
    %3822 = vmatprep.subr.bf16.mxu0 0
    %3823 = vmatpush1.bf16.xpose.msra.mxu0 0
    %3824 = vmatprep.subr.bf16.mxu0 0
    %3825 = vmatpush1.bf16.xpose.msra.mxu0 0
    %3826 = vmatprep.subr.bf16.mxu0 0
    %3827 = vmatpush1.bf16.xpose.msra.mxu0 0
    %3828 = vmatprep.subr.bf16.mxu0 0
    %3829 = vmatpush1.bf16.xpose.msra.mxu0 0
    %3830 = vmatprep.subr.bf16.mxu0 0
    %3831 = vmatpush1.bf16.xpose.msra.mxu0 0
    %3832 = vmatprep.subr.bf16.mxu0 0
    %3833 = vmatpush1.bf16.xpose.msra.mxu0 0
    %3834 = vmatprep.subr.bf16.mxu0 0
    %3835 = vmatpush1.bf16.xpose.msra.mxu0 0
    %3836 = vmatprep.subr.bf16.mxu0 0
    %3837 = vmatpush1.bf16.xpose.msra.mxu0 0
    %3838 = vmatprep.subr.bf16.mxu0 0
    %3839 = vmatpush1.bf16.xpose.msra.mxu0 0
    %3840 = vmatprep.subr.bf16.mxu0 0
    %3841 = vmatpush1.bf16.xpose.msra.mxu0 0
    %3842 = vmatprep.subr.bf16.mxu0 0
    %3843 = vmatpush1.bf16.xpose.msra.mxu0 0
    %3844 = vmatprep.subr.bf16.mxu0 0
    %3845 = vmatpush1.bf16.xpose.msra.mxu0 0
    %3846 = vmatprep.subr.bf16.mxu0 0
    %3847 = vmatpush1.bf16.xpose.msra.mxu0 0
    %3848 = vmatprep.subr.bf16.mxu0 0
    %3849 = vmatpush1.bf16.xpose.msra.mxu0 0
    %3850 = vmatprep.subr.bf16.mxu0 0
    %3851 = vmatpush1.bf16.xpose.msra.mxu0 0
    %3852 = vmatprep.mubr.bf16.mxu0 0
    %3853 = vmatmul.mubr.bf16.gmra.mrb[0].mxu0 %v3815
    %v3854 = vpop.f32.mrb[0].mxu0
    %v3855 = vadd.f32 %v1196, %v3854
    %v3856 = vpop.f32.mrb[0].mxu0
    %v3857 = vpop.f32.mrb[0].mxu0
    %v3858 = vpop.f32.mrb[0].mxu0
    %3859 = vdwg.mxu0
    %v3861 = vsel %vm1203, %v3162, 0
    %v3864 = vsel %vm1203, %v3462, 0
    %3866 = vmatprep.subr.bf16.mxu0 0
    %3867 = vmatpush1.bf16.xpose.msra.mxu0 %v3864
    %3868 = vmatprep.subr.bf16.mxu0 0
    %3869 = vmatpush1.bf16.xpose.msra.mxu0 0
    %3870 = vmatprep.subr.bf16.mxu0 0
    %3871 = vmatpush1.bf16.xpose.msra.mxu0 0
    %3872 = vmatprep.subr.bf16.mxu0 0
    %3873 = vmatpush1.bf16.xpose.msra.mxu0 0
    %3874 = vmatprep.subr.bf16.mxu0 0
    %3875 = vmatpush1.bf16.xpose.msra.mxu0 0
    %3876 = vmatprep.subr.bf16.mxu0 0
    %3877 = vmatpush1.bf16.xpose.msra.mxu0 0
    %3878 = vmatprep.subr.bf16.mxu0 0
    %3879 = vmatpush1.bf16.xpose.msra.mxu0 0
    %3880 = vmatprep.subr.bf16.mxu0 0
    %3881 = vmatpush1.bf16.xpose.msra.mxu0 0
    %3882 = vmatprep.subr.bf16.mxu0 0
    %3883 = vmatpush1.bf16.xpose.msra.mxu0 0
    %3884 = vmatprep.subr.bf16.mxu0 0
    %3885 = vmatpush1.bf16.xpose.msra.mxu0 0
    %3886 = vmatprep.subr.bf16.mxu0 0
    %3887 = vmatpush1.bf16.xpose.msra.mxu0 0
    %3888 = vmatprep.subr.bf16.mxu0 0
    %3889 = vmatpush1.bf16.xpose.msra.mxu0 0
    %3890 = vmatprep.subr.bf16.mxu0 0
    %3891 = vmatpush1.bf16.xpose.msra.mxu0 0
    %3892 = vmatprep.subr.bf16.mxu0 0
    %3893 = vmatpush1.bf16.xpose.msra.mxu0 0
    %3894 = vmatprep.subr.bf16.mxu0 0
    %3895 = vmatpush1.bf16.xpose.msra.mxu0 0
    %3896 = vmatprep.subr.bf16.mxu0 0
    %3897 = vmatpush1.bf16.xpose.msra.mxu0 0
    %3898 = vmatprep.mubr.bf16.mxu0 0
    %3899 = vmatmul.mubr.bf16.gmra.mrb[0].mxu0 %v3861
    %v3900 = vpop.f32.mrb[0].mxu0
    %v3901 = vadd.f32 %v1196, %v3900
    %v3902 = vpop.f32.mrb[0].mxu0
    %v3903 = vpop.f32.mrb[0].mxu0
    %v3904 = vpop.f32.mrb[0].mxu0
    %3905 = vdwg.mxu0
    %v3907 = vsel %vm1203, %v3163, 0
    %v3910 = vsel %vm1203, %v3463, 0
    %3912 = vmatprep.subr.bf16.mxu0 0
    %3913 = vmatpush1.bf16.xpose.msra.mxu0 %v3910
    %3914 = vmatprep.subr.bf16.mxu0 0
    %3915 = vmatpush1.bf16.xpose.msra.mxu0 0
    %3916 = vmatprep.subr.bf16.mxu0 0
    %3917 = vmatpush1.bf16.xpose.msra.mxu0 0
    %3918 = vmatprep.subr.bf16.mxu0 0
    %3919 = vmatpush1.bf16.xpose.msra.mxu0 0
    %3920 = vmatprep.subr.bf16.mxu0 0
    %3921 = vmatpush1.bf16.xpose.msra.mxu0 0
    %3922 = vmatprep.subr.bf16.mxu0 0
    %3923 = vmatpush1.bf16.xpose.msra.mxu0 0
    %3924 = vmatprep.subr.bf16.mxu0 0
    %3925 = vmatpush1.bf16.xpose.msra.mxu0 0
    %3926 = vmatprep.subr.bf16.mxu0 0
    %3927 = vmatpush1.bf16.xpose.msra.mxu0 0
    %3928 = vmatprep.subr.bf16.mxu0 0
    %3929 = vmatpush1.bf16.xpose.msra.mxu0 0
    %3930 = vmatprep.subr.bf16.mxu0 0
    %3931 = vmatpush1.bf16.xpose.msra.mxu0 0
    %3932 = vmatprep.subr.bf16.mxu0 0
    %3933 = vmatpush1.bf16.xpose.msra.mxu0 0
    %3934 = vmatprep.subr.bf16.mxu0 0
    %3935 = vmatpush1.bf16.xpose.msra.mxu0 0
    %3936 = vmatprep.subr.bf16.mxu0 0
    %3937 = vmatpush1.bf16.xpose.msra.mxu0 0
    %3938 = vmatprep.subr.bf16.mxu0 0
    %3939 = vmatpush1.bf16.xpose.msra.mxu0 0
    %3940 = vmatprep.subr.bf16.mxu0 0
    %3941 = vmatpush1.bf16.xpose.msra.mxu0 0
    %3942 = vmatprep.subr.bf16.mxu0 0
    %3943 = vmatpush1.bf16.xpose.msra.mxu0 0
    %3944 = vmatprep.mubr.bf16.mxu0 0
    %3945 = vmatmul.mubr.bf16.gmra.mrb[0].mxu0 %v3907
    %v3946 = vpop.f32.mrb[0].mxu0
    %v3947 = vadd.f32 %v1196, %v3946
    %v3948 = vpop.f32.mrb[0].mxu0
    %v3949 = vpop.f32.mrb[0].mxu0
    %v3950 = vpop.f32.mrb[0].mxu0
    %3951 = vdwg.mxu0
    %v3953 = vsel %vm1203, %v3164, 0
    %v3956 = vsel %vm1203, %v3464, 0
    %3958 = vmatprep.subr.bf16.mxu0 0
    %3959 = vmatpush1.bf16.xpose.msra.mxu0 %v3956
    %3960 = vmatprep.subr.bf16.mxu0 0
    %3961 = vmatpush1.bf16.xpose.msra.mxu0 0
    %3962 = vmatprep.subr.bf16.mxu0 0
    %3963 = vmatpush1.bf16.xpose.msra.mxu0 0
    %3964 = vmatprep.subr.bf16.mxu0 0
    %3965 = vmatpush1.bf16.xpose.msra.mxu0 0
    %3966 = vmatprep.subr.bf16.mxu0 0
    %3967 = vmatpush1.bf16.xpose.msra.mxu0 0
    %3968 = vmatprep.subr.bf16.mxu0 0
    %3969 = vmatpush1.bf16.xpose.msra.mxu0 0
    %3970 = vmatprep.subr.bf16.mxu0 0
    %3971 = vmatpush1.bf16.xpose.msra.mxu0 0
    %3972 = vmatprep.subr.bf16.mxu0 0
    %3973 = vmatpush1.bf16.xpose.msra.mxu0 0
    %3974 = vmatprep.subr.bf16.mxu0 0
    %3975 = vmatpush1.bf16.xpose.msra.mxu0 0
    %3976 = vmatprep.subr.bf16.mxu0 0
    %3977 = vmatpush1.bf16.xpose.msra.mxu0 0
    %3978 = vmatprep.subr.bf16.mxu0 0
    %3979 = vmatpush1.bf16.xpose.msra.mxu0 0
    %3980 = vmatprep.subr.bf16.mxu0 0
    %3981 = vmatpush1.bf16.xpose.msra.mxu0 0
    %3982 = vmatprep.subr.bf16.mxu0 0
    %3983 = vmatpush1.bf16.xpose.msra.mxu0 0
    %3984 = vmatprep.subr.bf16.mxu0 0
    %3985 = vmatpush1.bf16.xpose.msra.mxu0 0
    %3986 = vmatprep.subr.bf16.mxu0 0
    %3987 = vmatpush1.bf16.xpose.msra.mxu0 0
    %3988 = vmatprep.subr.bf16.mxu0 0
    %3989 = vmatpush1.bf16.xpose.msra.mxu0 0
    %3990 = vmatprep.mubr.bf16.mxu0 0
    %3991 = vmatmul.mubr.bf16.gmra.mrb[0].mxu0 %v3953
    %v3992 = vpop.f32.mrb[0].mxu0
    %v3993 = vadd.f32 %v1200, %v3992
    %v3994 = vpop.f32.mrb[0].mxu0
    %v3995 = vpop.f32.mrb[0].mxu0
    %v3996 = vpop.f32.mrb[0].mxu0
    %3997 = vdwg.mxu0
    %v3999 = vsel %vm1203, %v3165, 0
    %v4002 = vsel %vm1203, %v3465, 0
    %4004 = vmatprep.subr.bf16.mxu0 0
    %4005 = vmatpush1.bf16.xpose.msra.mxu0 %v4002
    %4006 = vmatprep.subr.bf16.mxu0 0
    %4007 = vmatpush1.bf16.xpose.msra.mxu0 0
    %4008 = vmatprep.subr.bf16.mxu0 0
    %4009 = vmatpush1.bf16.xpose.msra.mxu0 0
    %4010 = vmatprep.subr.bf16.mxu0 0
    %4011 = vmatpush1.bf16.xpose.msra.mxu0 0
    %4012 = vmatprep.subr.bf16.mxu0 0
    %4013 = vmatpush1.bf16.xpose.msra.mxu0 0
    %4014 = vmatprep.subr.bf16.mxu0 0
    %4015 = vmatpush1.bf16.xpose.msra.mxu0 0
    %4016 = vmatprep.subr.bf16.mxu0 0
    %4017 = vmatpush1.bf16.xpose.msra.mxu0 0
    %4018 = vmatprep.subr.bf16.mxu0 0
    %4019 = vmatpush1.bf16.xpose.msra.mxu0 0
    %4020 = vmatprep.subr.bf16.mxu0 0
    %4021 = vmatpush1.bf16.xpose.msra.mxu0 0
    %4022 = vmatprep.subr.bf16.mxu0 0
    %4023 = vmatpush1.bf16.xpose.msra.mxu0 0
    %4024 = vmatprep.subr.bf16.mxu0 0
    %4025 = vmatpush1.bf16.xpose.msra.mxu0 0
    %4026 = vmatprep.subr.bf16.mxu0 0
    %4027 = vmatpush1.bf16.xpose.msra.mxu0 0
    %4028 = vmatprep.subr.bf16.mxu0 0
    %4029 = vmatpush1.bf16.xpose.msra.mxu0 0
    %4030 = vmatprep.subr.bf16.mxu0 0
    %4031 = vmatpush1.bf16.xpose.msra.mxu0 0
    %4032 = vmatprep.subr.bf16.mxu0 0
    %4033 = vmatpush1.bf16.xpose.msra.mxu0 0
    %4034 = vmatprep.subr.bf16.mxu0 0
    %4035 = vmatpush1.bf16.xpose.msra.mxu0 0
    %4036 = vmatprep.mubr.bf16.mxu0 0
    %4037 = vmatmul.mubr.bf16.gmra.mrb[0].mxu0 %v3999
    %v4038 = vpop.f32.mrb[0].mxu0
    %v4039 = vadd.f32 %v1200, %v4038
    %v4040 = vpop.f32.mrb[0].mxu0
    %v4041 = vpop.f32.mrb[0].mxu0
    %v4042 = vpop.f32.mrb[0].mxu0
    %4043 = vdwg.mxu0
    %v4045 = vsel %vm1203, %v3166, 0
    %v4048 = vsel %vm1203, %v3466, 0
    %4050 = vmatprep.subr.bf16.mxu0 0
    %4051 = vmatpush1.bf16.xpose.msra.mxu0 %v4048
    %4052 = vmatprep.subr.bf16.mxu0 0
    %4053 = vmatpush1.bf16.xpose.msra.mxu0 0
    %4054 = vmatprep.subr.bf16.mxu0 0
    %4055 = vmatpush1.bf16.xpose.msra.mxu0 0
    %4056 = vmatprep.subr.bf16.mxu0 0
    %4057 = vmatpush1.bf16.xpose.msra.mxu0 0
    %4058 = vmatprep.subr.bf16.mxu0 0
    %4059 = vmatpush1.bf16.xpose.msra.mxu0 0
    %4060 = vmatprep.subr.bf16.mxu0 0
    %4061 = vmatpush1.bf16.xpose.msra.mxu0 0
    %4062 = vmatprep.subr.bf16.mxu0 0
    %4063 = vmatpush1.bf16.xpose.msra.mxu0 0
    %4064 = vmatprep.subr.bf16.mxu0 0
    %4065 = vmatpush1.bf16.xpose.msra.mxu0 0
    %4066 = vmatprep.subr.bf16.mxu0 0
    %4067 = vmatpush1.bf16.xpose.msra.mxu0 0
    %4068 = vmatprep.subr.bf16.mxu0 0
    %4069 = vmatpush1.bf16.xpose.msra.mxu0 0
    %4070 = vmatprep.subr.bf16.mxu0 0
    %4071 = vmatpush1.bf16.xpose.msra.mxu0 0
    %4072 = vmatprep.subr.bf16.mxu0 0
    %4073 = vmatpush1.bf16.xpose.msra.mxu0 0
    %4074 = vmatprep.subr.bf16.mxu0 0
    %4075 = vmatpush1.bf16.xpose.msra.mxu0 0
    %4076 = vmatprep.subr.bf16.mxu0 0
    %4077 = vmatpush1.bf16.xpose.msra.mxu0 0
    %4078 = vmatprep.subr.bf16.mxu0 0
    %4079 = vmatpush1.bf16.xpose.msra.mxu0 0
    %4080 = vmatprep.subr.bf16.mxu0 0
    %4081 = vmatpush1.bf16.xpose.msra.mxu0 0
    %4082 = vmatprep.mubr.bf16.mxu0 0
    %4083 = vmatmul.mubr.bf16.gmra.mrb[0].mxu0 %v4045
    %v4084 = vpop.f32.mrb[0].mxu0
    %v4085 = vadd.f32 %v1200, %v4084
    %v4086 = vpop.f32.mrb[0].mxu0
    %v4087 = vpop.f32.mrb[0].mxu0
    %v4088 = vpop.f32.mrb[0].mxu0
    %4089 = vdwg.mxu0
    %v4091 = vsel %vm1203, %v3167, 0
    %v4094 = vsel %vm1203, %v3467, 0
    %4096 = vmatprep.subr.bf16.mxu0 0
    %4097 = vmatpush1.bf16.xpose.msra.mxu0 %v4094
    %4098 = vmatprep.subr.bf16.mxu0 0
    %4099 = vmatpush1.bf16.xpose.msra.mxu0 0
    %4100 = vmatprep.subr.bf16.mxu0 0
    %4101 = vmatpush1.bf16.xpose.msra.mxu0 0
    %4102 = vmatprep.subr.bf16.mxu0 0
    %4103 = vmatpush1.bf16.xpose.msra.mxu0 0
    %4104 = vmatprep.subr.bf16.mxu0 0
    %4105 = vmatpush1.bf16.xpose.msra.mxu0 0
    %4106 = vmatprep.subr.bf16.mxu0 0
    %4107 = vmatpush1.bf16.xpose.msra.mxu0 0
    %4108 = vmatprep.subr.bf16.mxu0 0
    %4109 = vmatpush1.bf16.xpose.msra.mxu0 0
    %4110 = vmatprep.subr.bf16.mxu0 0
    %4111 = vmatpush1.bf16.xpose.msra.mxu0 0
    %4112 = vmatprep.subr.bf16.mxu0 0
    %4113 = vmatpush1.bf16.xpose.msra.mxu0 0
    %4114 = vmatprep.subr.bf16.mxu0 0
    %4115 = vmatpush1.bf16.xpose.msra.mxu0 0
    %4116 = vmatprep.subr.bf16.mxu0 0
    %4117 = vmatpush1.bf16.xpose.msra.mxu0 0
    %4118 = vmatprep.subr.bf16.mxu0 0
    %4119 = vmatpush1.bf16.xpose.msra.mxu0 0
    %4120 = vmatprep.subr.bf16.mxu0 0
    %4121 = vmatpush1.bf16.xpose.msra.mxu0 0
    %4122 = vmatprep.subr.bf16.mxu0 0
    %4123 = vmatpush1.bf16.xpose.msra.mxu0 0
    %4124 = vmatprep.subr.bf16.mxu0 0
    %4125 = vmatpush1.bf16.xpose.msra.mxu0 0
    %4126 = vmatprep.subr.bf16.mxu0 0
    %4127 = vmatpush1.bf16.xpose.msra.mxu0 0
    %4128 = vmatprep.mubr.bf16.mxu0 0
    %4129 = vmatmul.mubr.bf16.gmra.mrb[0].mxu0 %v4091
    %v4130 = vpop.f32.mrb[0].mxu0
    %v4131 = vadd.f32 %v1200, %v4130
    %v4132 = vpop.f32.mrb[0].mxu0
    %v4133 = vpop.f32.mrb[0].mxu0
    %v4134 = vpop.f32.mrb[0].mxu0
    %4135 = vdwg.mxu0
    %v4136 = vsel %vm1203, %v3809, -inf
    %4137 = vmax.xlane.f32.xlu0 %v4136
    %v4138 = vpop.xlane.xlu0 %4137
    %v4139 = vsel %vm1203, %v3855, -inf
    %4140 = vmax.xlane.f32.xlu0 %v4139
    %v4141 = vpop.xlane.xlu0 %4140
    %v4142 = vsel %vm1203, %v3901, -inf
    %4143 = vmax.xlane.f32.xlu0 %v4142
    %v4144 = vpop.xlane.xlu0 %4143
    %v4145 = vsel %vm1203, %v3947, -inf
    %4146 = vmax.xlane.f32.xlu0 %v4145
    %v4147 = vpop.xlane.xlu0 %4146
    %v4148 = vsel %vm1203, %v3993, -inf
    %4149 = vmax.xlane.f32.xlu0 %v4148
    %v4150 = vpop.xlane.xlu0 %4149
    %v4151 = vsel %vm1203, %v4039, -inf
    %4152 = vmax.xlane.f32.xlu0 %v4151
    %v4153 = vpop.xlane.xlu0 %4152
    %v4154 = vsel %vm1203, %v4085, -inf
    %4155 = vmax.xlane.f32.xlu0 %v4154
    %v4156 = vpop.xlane.xlu0 %4155
    %v4157 = vsel %vm1203, %v4131, -inf
    %4158 = vmax.xlane.f32.xlu0 %v4157
    %v4159 = vpop.xlane.xlu0 %4158
    %v4160 = vsub.f32 %v3809, %v4138
    %v4161 = vsub.f32 %v3855, %v4141
    %v4162 = vsub.f32 %v3901, %v4144
    %v4163 = vsub.f32 %v3947, %v4147
    %v4164 = vsub.f32 %v3993, %v4150
    %v4165 = vsub.f32 %v4039, %v4153
    %v4166 = vsub.f32 %v4085, %v4156
    %v4167 = vsub.f32 %v4131, %v4159
    %v4168 = vmul.f32 %v4160, 1.442695
    %v4169 = vpow.pop %v4168
    %v4170 = vmul.f32 %v4161, 1.442695
    %v4171 = vpow.pop %v4170
    %v4172 = vmul.f32 %v4162, 1.442695
    %v4173 = vpow.pop %v4172
    %v4174 = vmul.f32 %v4163, 1.442695
    %v4175 = vpow.pop %v4174
    %v4176 = vmul.f32 %v4164, 1.442695
    %v4177 = vpow.pop %v4176
    %v4178 = vmul.f32 %v4165, 1.442695
    %v4179 = vpow.pop %v4178
    %v4180 = vmul.f32 %v4166, 1.442695
    %v4181 = vpow.pop %v4180
    %v4182 = vmul.f32 %v4167, 1.442695
    %v4183 = vpow.pop %v4182
    %v4184 = vsel %vm1203, %v4169, 0.0
    %4185 = vadd.xlane.f32.xlu0 %v4184
    %v4186 = vpop.xlane.xlu0 %4185
    %v4187 = vsel %vm1203, %v4171, 0.0
    %4188 = vadd.xlane.f32.xlu0 %v4187
    %v4189 = vpop.xlane.xlu0 %4188
    %v4190 = vsel %vm1203, %v4173, 0.0
    %4191 = vadd.xlane.f32.xlu0 %v4190
    %v4192 = vpop.xlane.xlu0 %4191
    %v4193 = vsel %vm1203, %v4175, 0.0
    %4194 = vadd.xlane.f32.xlu0 %v4193
    %v4195 = vpop.xlane.xlu0 %4194
    %v4196 = vsel %vm1203, %v4177, 0.0
    %4197 = vadd.xlane.f32.xlu0 %v4196
    %v4198 = vpop.xlane.xlu0 %4197
    %v4199 = vsel %vm1203, %v4179, 0.0
    %4200 = vadd.xlane.f32.xlu0 %v4199
    %v4201 = vpop.xlane.xlu0 %4200
    %v4202 = vsel %vm1203, %v4181, 0.0
    %4203 = vadd.xlane.f32.xlu0 %v4202
    %v4204 = vpop.xlane.xlu0 %4203
    %v4205 = vsel %vm1203, %v4183, 0.0
    %4206 = vadd.xlane.f32.xlu0 %v4205
    %v4207 = vpop.xlane.xlu0 %4206
    %v4208 = vmax.f32 %v4186, 1e-30
    %v4209 = vmax.f32 %v4189, 1e-30
    %v4210 = vmax.f32 %v4192, 1e-30
    %v4211 = vmax.f32 %v4195, 1e-30
    %v4212 = vmax.f32 %v4198, 1e-30
    %v4213 = vmax.f32 %v4201, 1e-30
    %v4214 = vmax.f32 %v4204, 1e-30
    %v4215 = vmax.f32 %v4207, 1e-30
    %v4216 = vrcp.pop %v4208
    %v4217 = vrcp.pop %v4209
    %v4218 = vrcp.pop %v4210
    %v4219 = vrcp.pop %v4211
    %v4220 = vrcp.pop %v4212
    %v4221 = vrcp.pop %v4213
    %v4222 = vrcp.pop %v4214
    %v4223 = vrcp.pop %v4215
    %v4224 = vmul.f32 %v4169, %v4216
    %v4225 = vmul.f32 %v4171, %v4217
    %v4226 = vmul.f32 %v4173, %v4218
    %v4227 = vmul.f32 %v4175, %v4219
    %v4228 = vmul.f32 %v4177, %v4220
    %v4229 = vmul.f32 %v4179, %v4221
    %v4230 = vmul.f32 %v4181, %v4222
    %v4231 = vmul.f32 %v4183, %v4223
    %v4232 = vpack.c.bf16 %v4224, %v4224
    %v4233 = vpack.c.bf16 %v4225, %v4225
    %v4234 = vpack.c.bf16 %v4226, %v4226
    %v4235 = vpack.c.bf16 %v4227, %v4227
    %v4236 = vpack.c.bf16 %v4228, %v4228
    %v4237 = vpack.c.bf16 %v4229, %v4229
    %v4238 = vpack.c.bf16 %v4230, %v4230
    %v4239 = vpack.c.bf16 %v4231, %v4231
    %v4241 = vsel %vm1203, %v4232, 0
    %v4244 = vsel %vm1679, %v3760, 0
    %4246 = vmatprep.subr.bf16.mxu0 0
    %4247 = vmatpush1.bf16.msra.mxu0 %v4244
    %4248 = vmatprep.subr.bf16.mxu0 0
    %4249 = vmatpush1.bf16.msra.mxu0 0
    %4250 = vmatprep.subr.bf16.mxu0 0
    %4251 = vmatpush1.bf16.msra.mxu0 0
    %4252 = vmatprep.subr.bf16.mxu0 0
    %4253 = vmatpush1.bf16.msra.mxu0 0
    %4254 = vmatprep.subr.bf16.mxu0 0
    %4255 = vmatpush1.bf16.msra.mxu0 0
    %4256 = vmatprep.subr.bf16.mxu0 0
    %4257 = vmatpush1.bf16.msra.mxu0 0
    %4258 = vmatprep.subr.bf16.mxu0 0
    %4259 = vmatpush1.bf16.msra.mxu0 0
    %4260 = vmatprep.subr.bf16.mxu0 0
    %4261 = vmatpush1.bf16.msra.mxu0 0
    %4262 = vmatprep.subr.bf16.mxu0 0
    %4263 = vmatpush1.bf16.msra.mxu0 0
    %4264 = vmatprep.subr.bf16.mxu0 0
    %4265 = vmatpush1.bf16.msra.mxu0 0
    %4266 = vmatprep.subr.bf16.mxu0 0
    %4267 = vmatpush1.bf16.msra.mxu0 0
    %4268 = vmatprep.subr.bf16.mxu0 0
    %4269 = vmatpush1.bf16.msra.mxu0 0
    %4270 = vmatprep.subr.bf16.mxu0 0
    %4271 = vmatpush1.bf16.msra.mxu0 0
    %4272 = vmatprep.subr.bf16.mxu0 0
    %4273 = vmatpush1.bf16.msra.mxu0 0
    %4274 = vmatprep.subr.bf16.mxu0 0
    %4275 = vmatpush1.bf16.msra.mxu0 0
    %4276 = vmatprep.subr.bf16.mxu0 0
    %4277 = vmatpush1.bf16.msra.mxu0 0
    %4278 = vmatprep.mubr.bf16.mxu0 0
    %4279 = vmatmul.mubr.bf16.gmra.mrb[0].mxu0 %v4241
    %v4280 = vpop.f32.mrb[0].mxu0
    %v4281 = vadd.f32 0.0, %v4280
    %v4282 = vpop.f32.mrb[0].mxu0
    %v4283 = vpop.f32.mrb[0].mxu0
    %v4284 = vpop.f32.mrb[0].mxu0
    %4285 = vdwg.mxu0
    %v4287 = vsel %vm1203, %v4233, 0
    %v4290 = vsel %vm1679, %v3761, 0
    %4292 = vmatprep.subr.bf16.mxu0 0
    %4293 = vmatpush1.bf16.msra.mxu0 %v4290
    %4294 = vmatprep.subr.bf16.mxu0 0
    %4295 = vmatpush1.bf16.msra.mxu0 0
    %4296 = vmatprep.subr.bf16.mxu0 0
    %4297 = vmatpush1.bf16.msra.mxu0 0
    %4298 = vmatprep.subr.bf16.mxu0 0
    %4299 = vmatpush1.bf16.msra.mxu0 0
    %4300 = vmatprep.subr.bf16.mxu0 0
    %4301 = vmatpush1.bf16.msra.mxu0 0
    %4302 = vmatprep.subr.bf16.mxu0 0
    %4303 = vmatpush1.bf16.msra.mxu0 0
    %4304 = vmatprep.subr.bf16.mxu0 0
    %4305 = vmatpush1.bf16.msra.mxu0 0
    %4306 = vmatprep.subr.bf16.mxu0 0
    %4307 = vmatpush1.bf16.msra.mxu0 0
    %4308 = vmatprep.subr.bf16.mxu0 0
    %4309 = vmatpush1.bf16.msra.mxu0 0
    %4310 = vmatprep.subr.bf16.mxu0 0
    %4311 = vmatpush1.bf16.msra.mxu0 0
    %4312 = vmatprep.subr.bf16.mxu0 0
    %4313 = vmatpush1.bf16.msra.mxu0 0
    %4314 = vmatprep.subr.bf16.mxu0 0
    %4315 = vmatpush1.bf16.msra.mxu0 0
    %4316 = vmatprep.subr.bf16.mxu0 0
    %4317 = vmatpush1.bf16.msra.mxu0 0
    %4318 = vmatprep.subr.bf16.mxu0 0
    %4319 = vmatpush1.bf16.msra.mxu0 0
    %4320 = vmatprep.subr.bf16.mxu0 0
    %4321 = vmatpush1.bf16.msra.mxu0 0
    %4322 = vmatprep.subr.bf16.mxu0 0
    %4323 = vmatpush1.bf16.msra.mxu0 0
    %4324 = vmatprep.mubr.bf16.mxu0 0
    %4325 = vmatmul.mubr.bf16.gmra.mrb[0].mxu0 %v4287
    %v4326 = vpop.f32.mrb[0].mxu0
    %v4327 = vadd.f32 0.0, %v4326
    %v4328 = vpop.f32.mrb[0].mxu0
    %v4329 = vpop.f32.mrb[0].mxu0
    %v4330 = vpop.f32.mrb[0].mxu0
    %4331 = vdwg.mxu0
    %v4333 = vsel %vm1203, %v4234, 0
    %v4336 = vsel %vm1679, %v3762, 0
    %4338 = vmatprep.subr.bf16.mxu0 0
    %4339 = vmatpush1.bf16.msra.mxu0 %v4336
    %4340 = vmatprep.subr.bf16.mxu0 0
    %4341 = vmatpush1.bf16.msra.mxu0 0
    %4342 = vmatprep.subr.bf16.mxu0 0
    %4343 = vmatpush1.bf16.msra.mxu0 0
    %4344 = vmatprep.subr.bf16.mxu0 0
    %4345 = vmatpush1.bf16.msra.mxu0 0
    %4346 = vmatprep.subr.bf16.mxu0 0
    %4347 = vmatpush1.bf16.msra.mxu0 0
    %4348 = vmatprep.subr.bf16.mxu0 0
    %4349 = vmatpush1.bf16.msra.mxu0 0
    %4350 = vmatprep.subr.bf16.mxu0 0
    %4351 = vmatpush1.bf16.msra.mxu0 0
    %4352 = vmatprep.subr.bf16.mxu0 0
    %4353 = vmatpush1.bf16.msra.mxu0 0
    %4354 = vmatprep.subr.bf16.mxu0 0
    %4355 = vmatpush1.bf16.msra.mxu0 0
    %4356 = vmatprep.subr.bf16.mxu0 0
    %4357 = vmatpush1.bf16.msra.mxu0 0
    %4358 = vmatprep.subr.bf16.mxu0 0
    %4359 = vmatpush1.bf16.msra.mxu0 0
    %4360 = vmatprep.subr.bf16.mxu0 0
    %4361 = vmatpush1.bf16.msra.mxu0 0
    %4362 = vmatprep.subr.bf16.mxu0 0
    %4363 = vmatpush1.bf16.msra.mxu0 0
    %4364 = vmatprep.subr.bf16.mxu0 0
    %4365 = vmatpush1.bf16.msra.mxu0 0
    %4366 = vmatprep.subr.bf16.mxu0 0
    %4367 = vmatpush1.bf16.msra.mxu0 0
    %4368 = vmatprep.subr.bf16.mxu0 0
    %4369 = vmatpush1.bf16.msra.mxu0 0
    %4370 = vmatprep.mubr.bf16.mxu0 0
    %4371 = vmatmul.mubr.bf16.gmra.mrb[0].mxu0 %v4333
    %v4372 = vpop.f32.mrb[0].mxu0
    %v4373 = vadd.f32 0.0, %v4372
    %v4374 = vpop.f32.mrb[0].mxu0
    %v4375 = vpop.f32.mrb[0].mxu0
    %v4376 = vpop.f32.mrb[0].mxu0
    %4377 = vdwg.mxu0
    %v4379 = vsel %vm1203, %v4235, 0
    %v4382 = vsel %vm1679, %v3763, 0
    %4384 = vmatprep.subr.bf16.mxu0 0
    %4385 = vmatpush1.bf16.msra.mxu0 %v4382
    %4386 = vmatprep.subr.bf16.mxu0 0
    %4387 = vmatpush1.bf16.msra.mxu0 0
    %4388 = vmatprep.subr.bf16.mxu0 0
    %4389 = vmatpush1.bf16.msra.mxu0 0
    %4390 = vmatprep.subr.bf16.mxu0 0
    %4391 = vmatpush1.bf16.msra.mxu0 0
    %4392 = vmatprep.subr.bf16.mxu0 0
    %4393 = vmatpush1.bf16.msra.mxu0 0
    %4394 = vmatprep.subr.bf16.mxu0 0
    %4395 = vmatpush1.bf16.msra.mxu0 0
    %4396 = vmatprep.subr.bf16.mxu0 0
    %4397 = vmatpush1.bf16.msra.mxu0 0
    %4398 = vmatprep.subr.bf16.mxu0 0
    %4399 = vmatpush1.bf16.msra.mxu0 0
    %4400 = vmatprep.subr.bf16.mxu0 0
    %4401 = vmatpush1.bf16.msra.mxu0 0
    %4402 = vmatprep.subr.bf16.mxu0 0
    %4403 = vmatpush1.bf16.msra.mxu0 0
    %4404 = vmatprep.subr.bf16.mxu0 0
    %4405 = vmatpush1.bf16.msra.mxu0 0
    %4406 = vmatprep.subr.bf16.mxu0 0
    %4407 = vmatpush1.bf16.msra.mxu0 0
    %4408 = vmatprep.subr.bf16.mxu0 0
    %4409 = vmatpush1.bf16.msra.mxu0 0
    %4410 = vmatprep.subr.bf16.mxu0 0
    %4411 = vmatpush1.bf16.msra.mxu0 0
    %4412 = vmatprep.subr.bf16.mxu0 0
    %4413 = vmatpush1.bf16.msra.mxu0 0
    %4414 = vmatprep.subr.bf16.mxu0 0
    %4415 = vmatpush1.bf16.msra.mxu0 0
    %4416 = vmatprep.mubr.bf16.mxu0 0
    %4417 = vmatmul.mubr.bf16.gmra.mrb[0].mxu0 %v4379
    %v4418 = vpop.f32.mrb[0].mxu0
    %v4419 = vadd.f32 0.0, %v4418
    %v4420 = vpop.f32.mrb[0].mxu0
    %v4421 = vpop.f32.mrb[0].mxu0
    %v4422 = vpop.f32.mrb[0].mxu0
    %4423 = vdwg.mxu0
    %v4425 = vsel %vm1203, %v4236, 0
    %v4428 = vsel %vm1679, %v3764, 0
    %4430 = vmatprep.subr.bf16.mxu0 0
    %4431 = vmatpush1.bf16.msra.mxu0 %v4428
    %4432 = vmatprep.subr.bf16.mxu0 0
    %4433 = vmatpush1.bf16.msra.mxu0 0
    %4434 = vmatprep.subr.bf16.mxu0 0
    %4435 = vmatpush1.bf16.msra.mxu0 0
    %4436 = vmatprep.subr.bf16.mxu0 0
    %4437 = vmatpush1.bf16.msra.mxu0 0
    %4438 = vmatprep.subr.bf16.mxu0 0
    %4439 = vmatpush1.bf16.msra.mxu0 0
    %4440 = vmatprep.subr.bf16.mxu0 0
    %4441 = vmatpush1.bf16.msra.mxu0 0
    %4442 = vmatprep.subr.bf16.mxu0 0
    %4443 = vmatpush1.bf16.msra.mxu0 0
    %4444 = vmatprep.subr.bf16.mxu0 0
    %4445 = vmatpush1.bf16.msra.mxu0 0
    %4446 = vmatprep.subr.bf16.mxu0 0
    %4447 = vmatpush1.bf16.msra.mxu0 0
    %4448 = vmatprep.subr.bf16.mxu0 0
    %4449 = vmatpush1.bf16.msra.mxu0 0
    %4450 = vmatprep.subr.bf16.mxu0 0
    %4451 = vmatpush1.bf16.msra.mxu0 0
    %4452 = vmatprep.subr.bf16.mxu0 0
    %4453 = vmatpush1.bf16.msra.mxu0 0
    %4454 = vmatprep.subr.bf16.mxu0 0
    %4455 = vmatpush1.bf16.msra.mxu0 0
    %4456 = vmatprep.subr.bf16.mxu0 0
    %4457 = vmatpush1.bf16.msra.mxu0 0
    %4458 = vmatprep.subr.bf16.mxu0 0
    %4459 = vmatpush1.bf16.msra.mxu0 0
    %4460 = vmatprep.subr.bf16.mxu0 0
    %4461 = vmatpush1.bf16.msra.mxu0 0
    %4462 = vmatprep.mubr.bf16.mxu0 0
    %4463 = vmatmul.mubr.bf16.gmra.mrb[0].mxu0 %v4425
    %v4464 = vpop.f32.mrb[0].mxu0
    %v4465 = vadd.f32 0.0, %v4464
    %v4466 = vpop.f32.mrb[0].mxu0
    %v4467 = vpop.f32.mrb[0].mxu0
    %v4468 = vpop.f32.mrb[0].mxu0
    %4469 = vdwg.mxu0
    %v4471 = vsel %vm1203, %v4237, 0
    %v4474 = vsel %vm1679, %v3765, 0
    %4476 = vmatprep.subr.bf16.mxu0 0
    %4477 = vmatpush1.bf16.msra.mxu0 %v4474
    %4478 = vmatprep.subr.bf16.mxu0 0
    %4479 = vmatpush1.bf16.msra.mxu0 0
    %4480 = vmatprep.subr.bf16.mxu0 0
    %4481 = vmatpush1.bf16.msra.mxu0 0
    %4482 = vmatprep.subr.bf16.mxu0 0
    %4483 = vmatpush1.bf16.msra.mxu0 0
    %4484 = vmatprep.subr.bf16.mxu0 0
    %4485 = vmatpush1.bf16.msra.mxu0 0
    %4486 = vmatprep.subr.bf16.mxu0 0
    %4487 = vmatpush1.bf16.msra.mxu0 0
    %4488 = vmatprep.subr.bf16.mxu0 0
    %4489 = vmatpush1.bf16.msra.mxu0 0
    %4490 = vmatprep.subr.bf16.mxu0 0
    %4491 = vmatpush1.bf16.msra.mxu0 0
    %4492 = vmatprep.subr.bf16.mxu0 0
    %4493 = vmatpush1.bf16.msra.mxu0 0
    %4494 = vmatprep.subr.bf16.mxu0 0
    %4495 = vmatpush1.bf16.msra.mxu0 0
    %4496 = vmatprep.subr.bf16.mxu0 0
    %4497 = vmatpush1.bf16.msra.mxu0 0
    %4498 = vmatprep.subr.bf16.mxu0 0
    %4499 = vmatpush1.bf16.msra.mxu0 0
    %4500 = vmatprep.subr.bf16.mxu0 0
    %4501 = vmatpush1.bf16.msra.mxu0 0
    %4502 = vmatprep.subr.bf16.mxu0 0
    %4503 = vmatpush1.bf16.msra.mxu0 0
    %4504 = vmatprep.subr.bf16.mxu0 0
    %4505 = vmatpush1.bf16.msra.mxu0 0
    %4506 = vmatprep.subr.bf16.mxu0 0
    %4507 = vmatpush1.bf16.msra.mxu0 0
    %4508 = vmatprep.mubr.bf16.mxu0 0
    %4509 = vmatmul.mubr.bf16.gmra.mrb[0].mxu0 %v4471
    %v4510 = vpop.f32.mrb[0].mxu0
    %v4511 = vadd.f32 0.0, %v4510
    %v4512 = vpop.f32.mrb[0].mxu0
    %v4513 = vpop.f32.mrb[0].mxu0
    %v4514 = vpop.f32.mrb[0].mxu0
    %4515 = vdwg.mxu0
    %v4517 = vsel %vm1203, %v4238, 0
    %v4520 = vsel %vm1679, %v3766, 0
    %4522 = vmatprep.subr.bf16.mxu0 0
    %4523 = vmatpush1.bf16.msra.mxu0 %v4520
    %4524 = vmatprep.subr.bf16.mxu0 0
    %4525 = vmatpush1.bf16.msra.mxu0 0
    %4526 = vmatprep.subr.bf16.mxu0 0
    %4527 = vmatpush1.bf16.msra.mxu0 0
    %4528 = vmatprep.subr.bf16.mxu0 0
    %4529 = vmatpush1.bf16.msra.mxu0 0
    %4530 = vmatprep.subr.bf16.mxu0 0
    %4531 = vmatpush1.bf16.msra.mxu0 0
    %4532 = vmatprep.subr.bf16.mxu0 0
    %4533 = vmatpush1.bf16.msra.mxu0 0
    %4534 = vmatprep.subr.bf16.mxu0 0
    %4535 = vmatpush1.bf16.msra.mxu0 0
    %4536 = vmatprep.subr.bf16.mxu0 0
    %4537 = vmatpush1.bf16.msra.mxu0 0
    %4538 = vmatprep.subr.bf16.mxu0 0
    %4539 = vmatpush1.bf16.msra.mxu0 0
    %4540 = vmatprep.subr.bf16.mxu0 0
    %4541 = vmatpush1.bf16.msra.mxu0 0
    %4542 = vmatprep.subr.bf16.mxu0 0
    %4543 = vmatpush1.bf16.msra.mxu0 0
    %4544 = vmatprep.subr.bf16.mxu0 0
    %4545 = vmatpush1.bf16.msra.mxu0 0
    %4546 = vmatprep.subr.bf16.mxu0 0
    %4547 = vmatpush1.bf16.msra.mxu0 0
    %4548 = vmatprep.subr.bf16.mxu0 0
    %4549 = vmatpush1.bf16.msra.mxu0 0
    %4550 = vmatprep.subr.bf16.mxu0 0
    %4551 = vmatpush1.bf16.msra.mxu0 0
    %4552 = vmatprep.subr.bf16.mxu0 0
    %4553 = vmatpush1.bf16.msra.mxu0 0
    %4554 = vmatprep.mubr.bf16.mxu0 0
    %4555 = vmatmul.mubr.bf16.gmra.mrb[0].mxu0 %v4517
    %v4556 = vpop.f32.mrb[0].mxu0
    %v4557 = vadd.f32 0.0, %v4556
    %v4558 = vpop.f32.mrb[0].mxu0
    %v4559 = vpop.f32.mrb[0].mxu0
    %v4560 = vpop.f32.mrb[0].mxu0
    %4561 = vdwg.mxu0
    %v4563 = vsel %vm1203, %v4239, 0
    %v4566 = vsel %vm1679, %v3767, 0
    %4568 = vmatprep.subr.bf16.mxu0 0
    %4569 = vmatpush1.bf16.msra.mxu0 %v4566
    %4570 = vmatprep.subr.bf16.mxu0 0
    %4571 = vmatpush1.bf16.msra.mxu0 0
    %4572 = vmatprep.subr.bf16.mxu0 0
    %4573 = vmatpush1.bf16.msra.mxu0 0
    %4574 = vmatprep.subr.bf16.mxu0 0
    %4575 = vmatpush1.bf16.msra.mxu0 0
    %4576 = vmatprep.subr.bf16.mxu0 0
    %4577 = vmatpush1.bf16.msra.mxu0 0
    %4578 = vmatprep.subr.bf16.mxu0 0
    %4579 = vmatpush1.bf16.msra.mxu0 0
    %4580 = vmatprep.subr.bf16.mxu0 0
    %4581 = vmatpush1.bf16.msra.mxu0 0
    %4582 = vmatprep.subr.bf16.mxu0 0
    %4583 = vmatpush1.bf16.msra.mxu0 0
    %4584 = vmatprep.subr.bf16.mxu0 0
    %4585 = vmatpush1.bf16.msra.mxu0 0
    %4586 = vmatprep.subr.bf16.mxu0 0
    %4587 = vmatpush1.bf16.msra.mxu0 0
    %4588 = vmatprep.subr.bf16.mxu0 0
    %4589 = vmatpush1.bf16.msra.mxu0 0
    %4590 = vmatprep.subr.bf16.mxu0 0
    %4591 = vmatpush1.bf16.msra.mxu0 0
    %4592 = vmatprep.subr.bf16.mxu0 0
    %4593 = vmatpush1.bf16.msra.mxu0 0
    %4594 = vmatprep.subr.bf16.mxu0 0
    %4595 = vmatpush1.bf16.msra.mxu0 0
    %4596 = vmatprep.subr.bf16.mxu0 0
    %4597 = vmatpush1.bf16.msra.mxu0 0
    %4598 = vmatprep.subr.bf16.mxu0 0
    %4599 = vmatpush1.bf16.msra.mxu0 0
    %4600 = vmatprep.mubr.bf16.mxu0 0
    %4601 = vmatmul.mubr.bf16.gmra.mrb[0].mxu0 %v4563
    %v4602 = vpop.f32.mrb[0].mxu0
    %v4603 = vadd.f32 0.0, %v4602
    %v4604 = vpop.f32.mrb[0].mxu0
    %v4605 = vpop.f32.mrb[0].mxu0
    %v4606 = vpop.f32.mrb[0].mxu0
    %4607 = vdwg.mxu0
    %v4608 = vcombine.low %v4281, %v4373
    %v4609 = vcombine.high %v4281, %v4373
    %v4611 = vunpack.c.l.s4 1983009808
    %v4612 = vunpack.c.0.s8 %v4611
    %v4613 = vlaneseq
    %v4614 = vshrl.u32 %v4613, 7
    %v4615 = vsub.s32 %v4612, %v4614
    %v4616 = vrot.slane %v4608, %v4615
    %v4618 = vunpack.c.l.s4 1983009808
    %v4619 = vunpack.c.0.s8 %v4618
    %v4620 = vlaneseq
    %v4621 = vshrl.u32 %v4620, 7
    %v4622 = vsub.s32 %v4619, %v4621
    %v4623 = vrot.slane %v4609, %v4622
    %v4624 = vcombine.low %v4327, %v4419
    %v4625 = vcombine.high %v4327, %v4419
    %v4627 = vunpack.c.l.s4 1983009808
    %v4628 = vunpack.c.0.s8 %v4627
    %v4629 = vlaneseq
    %v4630 = vshrl.u32 %v4629, 7
    %v4631 = vsub.s32 %v4628, %v4630
    %v4632 = vrot.slane %v4624, %v4631
    %v4634 = vunpack.c.l.s4 1983009808
    %v4635 = vunpack.c.0.s8 %v4634
    %v4636 = vlaneseq
    %v4637 = vshrl.u32 %v4636, 7
    %v4638 = vsub.s32 %v4635, %v4637
    %v4639 = vrot.slane %v4625, %v4638
    %v4640 = vcombine.low %v4616, %v4632
    %v4641 = vcombine.high %v4616, %v4632
    %v4643 = vunpack.c.l.s4 1934713408
    %v4644 = vunpack.c.0.s8 %v4643
    %v4645 = vlaneseq
    %v4646 = vshrl.u32 %v4645, 7
    %v4647 = vsub.s32 %v4644, %v4646
    %v4648 = vrot.slane %v4640, %v4647
    %v4650 = vunpack.c.l.s4 1934713408
    %v4651 = vunpack.c.0.s8 %v4650
    %v4652 = vlaneseq
    %v4653 = vshrl.u32 %v4652, 7
    %v4654 = vsub.s32 %v4651, %v4653
    %v4655 = vrot.slane %v4641, %v4654
    %v4656 = vcombine.low %v4623, %v4639
    %v4657 = vcombine.high %v4623, %v4639
    %v4659 = vunpack.c.l.s4 1934713408
    %v4660 = vunpack.c.0.s8 %v4659
    %v4661 = vlaneseq
    %v4662 = vshrl.u32 %v4661, 7
    %v4663 = vsub.s32 %v4660, %v4662
    %v4664 = vrot.slane %v4656, %v4663
    %v4666 = vunpack.c.l.s4 1934713408
    %v4667 = vunpack.c.0.s8 %v4666
    %v4668 = vlaneseq
    %v4669 = vshrl.u32 %v4668, 7
    %v4670 = vsub.s32 %v4667, %v4669
    %v4671 = vrot.slane %v4657, %v4670
    %v4672 = vcombine.high %v4648, 0.0
    %v4673 = vcombine.high %v4655, 0.0
    %v4674 = vcombine.high %v4664, 0.0
    %v4675 = vcombine.high %v4671, 0.0
    %v4676 = vcombine.low %v4465, %v4557
    %v4677 = vcombine.high %v4465, %v4557
    %v4679 = vunpack.c.l.s4 1983009808
    %v4680 = vunpack.c.0.s8 %v4679
    %v4681 = vlaneseq
    %v4682 = vshrl.u32 %v4681, 7
    %v4683 = vsub.s32 %v4680, %v4682
    %v4684 = vrot.slane %v4676, %v4683
    %v4686 = vunpack.c.l.s4 1983009808
    %v4687 = vunpack.c.0.s8 %v4686
    %v4688 = vlaneseq
    %v4689 = vshrl.u32 %v4688, 7
    %v4690 = vsub.s32 %v4687, %v4689
    %v4691 = vrot.slane %v4677, %v4690
    %v4692 = vcombine.low %v4511, %v4603
    %v4693 = vcombine.high %v4511, %v4603
    %v4695 = vunpack.c.l.s4 1983009808
    %v4696 = vunpack.c.0.s8 %v4695
    %v4697 = vlaneseq
    %v4698 = vshrl.u32 %v4697, 7
    %v4699 = vsub.s32 %v4696, %v4698
    %v4700 = vrot.slane %v4692, %v4699
    %v4702 = vunpack.c.l.s4 1983009808
    %v4703 = vunpack.c.0.s8 %v4702
    %v4704 = vlaneseq
    %v4705 = vshrl.u32 %v4704, 7
    %v4706 = vsub.s32 %v4703, %v4705
    %v4707 = vrot.slane %v4693, %v4706
    %v4708 = vcombine.low %v4684, %v4700
    %v4709 = vcombine.high %v4684, %v4700
    %v4711 = vunpack.c.l.s4 1934713408
    %v4712 = vunpack.c.0.s8 %v4711
    %v4713 = vlaneseq
    %v4714 = vshrl.u32 %v4713, 7
    %v4715 = vsub.s32 %v4712, %v4714
    %v4716 = vrot.slane %v4708, %v4715
    %v4718 = vunpack.c.l.s4 1934713408
    %v4719 = vunpack.c.0.s8 %v4718
    %v4720 = vlaneseq
    %v4721 = vshrl.u32 %v4720, 7
    %v4722 = vsub.s32 %v4719, %v4721
    %v4723 = vrot.slane %v4709, %v4722
    %v4724 = vcombine.low %v4691, %v4707
    %v4725 = vcombine.high %v4691, %v4707
    %v4727 = vunpack.c.l.s4 1934713408
    %v4728 = vunpack.c.0.s8 %v4727
    %v4729 = vlaneseq
    %v4730 = vshrl.u32 %v4729, 7
    %v4731 = vsub.s32 %v4728, %v4730
    %v4732 = vrot.slane %v4724, %v4731
    %v4734 = vunpack.c.l.s4 1934713408
    %v4735 = vunpack.c.0.s8 %v4734
    %v4736 = vlaneseq
    %v4737 = vshrl.u32 %v4736, 7
    %v4738 = vsub.s32 %v4735, %v4737
    %v4739 = vrot.slane %v4725, %v4738
    %v4740 = vcombine.high %v4716, 0.0
    %v4741 = vcombine.high %v4723, 0.0
    %v4742 = vcombine.high %v4732, 0.0
    %v4743 = vcombine.high %v4739, 0.0
    %v4744 = vcombine.low %v4648, %v4655
    %v4746 = vunpack.c.l.s4 1983009808
    %v4747 = vunpack.c.0.s8 %v4746
    %v4748 = vlaneseq
    %v4749 = vshrl.u32 %v4748, 7
    %v4750 = vsub.s32 %v4747, %v4749
    %v4751 = vrot.slane %v4744, %v4750
    %v4752 = vcombine.low %v4672, %v4673
    %v4754 = vunpack.c.l.s4 1983009808
    %v4755 = vunpack.c.0.s8 %v4754
    %v4756 = vlaneseq
    %v4757 = vshrl.u32 %v4756, 7
    %v4758 = vsub.s32 %v4755, %v4757
    %v4759 = vrot.slane %v4752, %v4758
    %v4760 = vcombine.low %v4664, %v4671
    %v4762 = vunpack.c.l.s4 1983009808
    %v4763 = vunpack.c.0.s8 %v4762
    %v4764 = vlaneseq
    %v4765 = vshrl.u32 %v4764, 7
    %v4766 = vsub.s32 %v4763, %v4765
    %v4767 = vrot.slane %v4760, %v4766
    %v4768 = vcombine.low %v4674, %v4675
    %v4770 = vunpack.c.l.s4 1983009808
    %v4771 = vunpack.c.0.s8 %v4770
    %v4772 = vlaneseq
    %v4773 = vshrl.u32 %v4772, 7
    %v4774 = vsub.s32 %v4771, %v4773
    %v4775 = vrot.slane %v4768, %v4774
    %v4776 = vcombine.low %v4751, %v4759
    %v4777 = vcombine.high %v4751, %v4759
    %v4779 = vunpack.c.l.s4 1934713408
    %v4780 = vunpack.c.0.s8 %v4779
    %v4781 = vlaneseq
    %v4782 = vshrl.u32 %v4781, 7
    %v4783 = vsub.s32 %v4780, %v4782
    %v4784 = vrot.slane %v4776, %v4783
    %v4786 = vunpack.c.l.s4 1934713408
    %v4787 = vunpack.c.0.s8 %v4786
    %v4788 = vlaneseq
    %v4789 = vshrl.u32 %v4788, 7
    %v4790 = vsub.s32 %v4787, %v4789
    %v4791 = vrot.slane %v4777, %v4790
    %v4792 = vcombine.low %v4767, %v4775
    %v4793 = vcombine.high %v4767, %v4775
    %v4795 = vunpack.c.l.s4 1934713408
    %v4796 = vunpack.c.0.s8 %v4795
    %v4797 = vlaneseq
    %v4798 = vshrl.u32 %v4797, 7
    %v4799 = vsub.s32 %v4796, %v4798
    %v4800 = vrot.slane %v4792, %v4799
    %v4802 = vunpack.c.l.s4 1934713408
    %v4803 = vunpack.c.0.s8 %v4802
    %v4804 = vlaneseq
    %v4805 = vshrl.u32 %v4804, 7
    %v4806 = vsub.s32 %v4803, %v4805
    %v4807 = vrot.slane %v4793, %v4806
    %v4808 = vcombine.low %v4784, %v4800
    %v4809 = vcombine.high %v4784, %v4800
    %v4810 = vcombine.low %v4791, %v4807
    %v4811 = vcombine.high %v4791, %v4807
    %v4812 = vcombine.low %v4716, %v4723
    %v4814 = vunpack.c.l.s4 1983009808
    %v4815 = vunpack.c.0.s8 %v4814
    %v4816 = vlaneseq
    %v4817 = vshrl.u32 %v4816, 7
    %v4818 = vsub.s32 %v4815, %v4817
    %v4819 = vrot.slane %v4812, %v4818
    %v4820 = vcombine.low %v4740, %v4741
    %v4822 = vunpack.c.l.s4 1983009808
    %v4823 = vunpack.c.0.s8 %v4822
    %v4824 = vlaneseq
    %v4825 = vshrl.u32 %v4824, 7
    %v4826 = vsub.s32 %v4823, %v4825
    %v4827 = vrot.slane %v4820, %v4826
    %v4828 = vcombine.low %v4732, %v4739
    %v4830 = vunpack.c.l.s4 1983009808
    %v4831 = vunpack.c.0.s8 %v4830
    %v4832 = vlaneseq
    %v4833 = vshrl.u32 %v4832, 7
    %v4834 = vsub.s32 %v4831, %v4833
    %v4835 = vrot.slane %v4828, %v4834
    %v4836 = vcombine.low %v4742, %v4743
    %v4838 = vunpack.c.l.s4 1983009808
    %v4839 = vunpack.c.0.s8 %v4838
    %v4840 = vlaneseq
    %v4841 = vshrl.u32 %v4840, 7
    %v4842 = vsub.s32 %v4839, %v4841
    %v4843 = vrot.slane %v4836, %v4842
    %v4844 = vcombine.low %v4819, %v4827
    %v4845 = vcombine.high %v4819, %v4827
    %v4847 = vunpack.c.l.s4 1934713408
    %v4848 = vunpack.c.0.s8 %v4847
    %v4849 = vlaneseq
    %v4850 = vshrl.u32 %v4849, 7
    %v4851 = vsub.s32 %v4848, %v4850
    %v4852 = vrot.slane %v4844, %v4851
    %v4854 = vunpack.c.l.s4 1934713408
    %v4855 = vunpack.c.0.s8 %v4854
    %v4856 = vlaneseq
    %v4857 = vshrl.u32 %v4856, 7
    %v4858 = vsub.s32 %v4855, %v4857
    %v4859 = vrot.slane %v4845, %v4858
    %v4860 = vcombine.low %v4835, %v4843
    %v4861 = vcombine.high %v4835, %v4843
    %v4863 = vunpack.c.l.s4 1934713408
    %v4864 = vunpack.c.0.s8 %v4863
    %v4865 = vlaneseq
    %v4866 = vshrl.u32 %v4865, 7
    %v4867 = vsub.s32 %v4864, %v4866
    %v4868 = vrot.slane %v4860, %v4867
    %v4870 = vunpack.c.l.s4 1934713408
    %v4871 = vunpack.c.0.s8 %v4870
    %v4872 = vlaneseq
    %v4873 = vshrl.u32 %v4872, 7
    %v4874 = vsub.s32 %v4871, %v4873
    %v4875 = vrot.slane %v4861, %v4874
    %v4876 = vcombine.low %v4852, %v4868
    %v4877 = vcombine.high %v4852, %v4868
    %v4878 = vcombine.low %v4859, %v4875
    %v4879 = vcombine.high %v4859, %v4875
    %4882 = vrot.lane.b32.xlu0 %v4809, 8
    %v4883 = vpop.permute.xlu0 %4882
    %4884 = vrot.lane.b32.xlu0 %v4877, 8
    %v4885 = vpop.permute.xlu0 %4884
    %4890 = vrot.lane.b32.xlu0 %v4810, 16
    %v4891 = vpop.permute.xlu0 %4890
    %4892 = vrot.lane.b32.xlu0 %v4878, 16
    %v4893 = vpop.permute.xlu0 %4892
    %4898 = vrot.lane.b32.xlu0 %v4811, 24
    %v4899 = vpop.permute.xlu0 %4898
    %4900 = vrot.lane.b32.xlu0 %v4879, 24
    %v4901 = vpop.permute.xlu0 %4900
    %v4904 = vsel %vm1203, %v4808, %v4883
    %v4905 = vsel %vm1203, %v4876, %v4885
    %v4906 = vsel %vm2343, %v4904, %v4891
    %v4907 = vsel %vm2343, %v4905, %v4893
    %v4908 = vsel %vm2346, %v4906, %v4899
    %v4909 = vsel %vm2346, %v4907, %v4901
    %v4910 = vpack.c.bf16 %v4909, %v4908
    %s4911 = scalar_lea.vmem %s3, 16
    %v4912 = vld [vmem:[%s4911] sm:$0xf]
    %v4913 = vld [vmem:[%s4911 + $0x4] sm:$0xf]
    %v4914 = vld [vmem:[%s4911 + $0x8] sm:$0xf]
    %v4915 = vld [vmem:[%s4911 + $0xc] sm:$0xf]
    %v4920 = vunpack.c.l.b16 %v4912
    %v4921 = vunpack.c.l.b16 %v4913
    %v4922 = vunpack.c.l.b16 %v4914
    %v4923 = vunpack.c.l.b16 %v4915
    %v4924 = vpack.c.b16 %v4921, %v4920
    %v4925 = vpack.c.b16 %v4923, %v4922
    %v4927 = vsel %vm50, %v4910, 0
    %v4930 = vsel %vm50, %v4924, 0
    %v4933 = vsel %vm50, %v4925, 0
    %4935 = vmatprep.subr.bf16.mxu0 0
    %4936 = vmatpush1.bf16.xpose.msra.mxu0 %v4930
    %4937 = vmatprep.subr.bf16.mxu0 0
    %4938 = vmatpush1.bf16.xpose.msra.mxu0 %v4933
    %4939 = vmatprep.subr.bf16.mxu0 0
    %4940 = vmatpush1.bf16.xpose.msra.mxu0 0
    %4941 = vmatprep.subr.bf16.mxu0 0
    %4942 = vmatpush1.bf16.xpose.msra.mxu0 0
    %4943 = vmatprep.subr.bf16.mxu0 0
    %4944 = vmatpush1.bf16.xpose.msra.mxu0 0
    %4945 = vmatprep.subr.bf16.mxu0 0
    %4946 = vmatpush1.bf16.xpose.msra.mxu0 0
    %4947 = vmatprep.subr.bf16.mxu0 0
    %4948 = vmatpush1.bf16.xpose.msra.mxu0 0
    %4949 = vmatprep.subr.bf16.mxu0 0
    %4950 = vmatpush1.bf16.xpose.msra.mxu0 0
    %4951 = vmatprep.subr.bf16.mxu0 0
    %4952 = vmatpush1.bf16.xpose.msra.mxu0 0
    %4953 = vmatprep.subr.bf16.mxu0 0
    %4954 = vmatpush1.bf16.xpose.msra.mxu0 0
    %4955 = vmatprep.subr.bf16.mxu0 0
    %4956 = vmatpush1.bf16.xpose.msra.mxu0 0
    %4957 = vmatprep.subr.bf16.mxu0 0
    %4958 = vmatpush1.bf16.xpose.msra.mxu0 0
    %4959 = vmatprep.subr.bf16.mxu0 0
    %4960 = vmatpush1.bf16.xpose.msra.mxu0 0
    %4961 = vmatprep.subr.bf16.mxu0 0
    %4962 = vmatpush1.bf16.xpose.msra.mxu0 0
    %4963 = vmatprep.subr.bf16.mxu0 0
    %4964 = vmatpush1.bf16.xpose.msra.mxu0 0
    %4965 = vmatprep.subr.bf16.mxu0 0
    %4966 = vmatpush1.bf16.xpose.msra.mxu0 0
    %4967 = vmatprep.mubr.bf16.mxu0 0
    %4968 = vmatmul.mubr.bf16.gmra.mrb[0].mxu0 %v4927
    %v4969 = vpop.f32.mrb[0].mxu0
    %v4970 = vadd.f32 0.0, %v4969
    %v4971 = vpop.f32.mrb[0].mxu0
    %v4972 = vpop.f32.mrb[0].mxu0
    %v4973 = vadd.f32 0.0, %v4972
    %v4974 = vpop.f32.mrb[0].mxu0
    %4975 = vdwg.mxu0
    %v4976 = vadd.f32 %v2623, %v4970
    %v4977 = vadd.f32 %v2624, %v4973
    %v4978 = vlaneseq
    %v4979 = vshrl.u32 %v4978, 7
    %v4980 = vsub.s32 3, %v4979
    %v4981 = vrot.slane %v2626, %v4980
    %v4982 = vadd.f32 %v4976, %v4981
    %v4983 = vadd.f32 %v4977, %v4981
    %v4984 = vsel %vm50, %v4982, 0.0
    %4985 = vadd.xlane.f32.xlu0 %v4984
    %v4986 = vpop.xlane.xlu0 %4985
    %v4987 = vsel %vm50, %v4983, 0.0
    %4988 = vadd.xlane.f32.xlu0 %v4987
    %v4989 = vpop.xlane.xlu0 %4988
    %v4990 = vmul.f32 %v4986, %v57
    %v4991 = vmul.f32 %v4989, %v57
    %v4992 = vsub.f32 %v4982, %v4990
    %v4993 = vsub.f32 %v4983, %v4991
    %v4994 = vmul.f32 %v4992, %v4992
    %v4995 = vmul.f32 %v4993, %v4993
    %v4996 = vsel %vm50, %v4994, 0.0
    %4997 = vadd.xlane.f32.xlu0 %v4996
    %v4998 = vpop.xlane.xlu0 %4997
    %v4999 = vsel %vm50, %v4995, 0.0
    %5000 = vadd.xlane.f32.xlu0 %v4999
    %v5001 = vpop.xlane.xlu0 %5000
    %v5002 = vmul.f32 %v4998, %v57
    %v5003 = vmul.f32 %v5001, %v57
    %v5004 = vadd.f32 %v5002, 1e-05
    %v5005 = vadd.f32 %v5003, 1e-05
    %v5006 = vrsqrt.pop %v5004
    %v5007 = vrsqrt.pop %v5005
    %v5008 = vmul.f32 %v4992, %v5006
    %v5009 = vmul.f32 %v4993, %v5007
    %v5010 = vlaneseq
    %v5011 = vshrl.u32 %v5010, 7
    %v5012 = vsub.s32 6, %v5011
    %v5013 = vrot.slane %v2626, %v5012
    %v5014 = vmul.f32 %v5008, %v5013
    %v5015 = vmul.f32 %v5009, %v5013
    %v5016 = vlaneseq
    %v5017 = vshrl.u32 %v5016, 7
    %v5018 = vsub.s32 7, %v5017
    %v5019 = vrot.slane %v2626, %v5018
    %v5020 = vadd.f32 %v5014, %v5019
    %v5021 = vadd.f32 %v5015, %v5019
    %v5022 = vpack.c.bf16 %v5021, %v5020
    %s5023 = scalar_lea.vmem %s4, 32
    %v5024 = vld [vmem:[%s5023] sm:$0xf]
    %v5025 = vld [vmem:[%s5023 + $0x4] sm:$0xf]
    %v5026 = vld [vmem:[%s5023 + $0x8] sm:$0xf]
    %v5027 = vld [vmem:[%s5023 + $0xc] sm:$0xf]
    %v5028 = vld [vmem:[%s5023 + $0x10] sm:$0xf]
    %v5029 = vld [vmem:[%s5023 + $0x14] sm:$0xf]
    %v5030 = vld [vmem:[%s5023 + $0x18] sm:$0xf]
    %v5031 = vld [vmem:[%s5023 + $0x1c] sm:$0xf]
    %v5032 = vlaneseq
    %v5033 = vshrl.u32 %v5032, 7
    %v5034 = vsub.s32 1, %v5033
    %v5035 = vrot.slane %v2627, %v5034
    %v5044 = vunpack.c.l.b16 %v5024
    %v5045 = vunpack.c.l.b16 %v5025
    %v5046 = vunpack.c.l.b16 %v5026
    %v5047 = vunpack.c.l.b16 %v5027
    %v5048 = vunpack.c.l.b16 %v5028
    %v5049 = vunpack.c.l.b16 %v5029
    %v5050 = vunpack.c.l.b16 %v5030
    %v5051 = vunpack.c.l.b16 %v5031
    %v5052 = vpack.c.b16 %v5045, %v5044
    %v5053 = vpack.c.b16 %v5047, %v5046
    %v5054 = vpack.c.b16 %v5049, %v5048
    %v5055 = vpack.c.b16 %v5051, %v5050
    %v5057 = vsel %vm50, %v5022, 0
    %v5060 = vsel %vm50, %v5052, 0
    %v5063 = vsel %vm50, %v5053, 0
    %v5066 = vsel %vm50, %v5054, 0
    %v5069 = vsel %vm50, %v5055, 0
    %5071 = vmatprep.subr.bf16.mxu0 0
    %5072 = vmatpush1.bf16.xpose.msra.mxu0 %v5060
    %5073 = vmatprep.subr.bf16.mxu0 0
    %5074 = vmatpush1.bf16.xpose.msra.mxu0 %v5063
    %5075 = vmatprep.subr.bf16.mxu0 0
    %5076 = vmatpush1.bf16.xpose.msra.mxu0 %v5066
    %5077 = vmatprep.subr.bf16.mxu0 0
    %5078 = vmatpush1.bf16.xpose.msra.mxu0 %v5069
    %5079 = vmatprep.subr.bf16.mxu0 0
    %5080 = vmatpush1.bf16.xpose.msra.mxu0 0
    %5081 = vmatprep.subr.bf16.mxu0 0
    %5082 = vmatpush1.bf16.xpose.msra.mxu0 0
    %5083 = vmatprep.subr.bf16.mxu0 0
    %5084 = vmatpush1.bf16.xpose.msra.mxu0 0
    %5085 = vmatprep.subr.bf16.mxu0 0
    %5086 = vmatpush1.bf16.xpose.msra.mxu0 0
    %5087 = vmatprep.subr.bf16.mxu0 0
    %5088 = vmatpush1.bf16.xpose.msra.mxu0 0
    %5089 = vmatprep.subr.bf16.mxu0 0
    %5090 = vmatpush1.bf16.xpose.msra.mxu0 0
    %5091 = vmatprep.subr.bf16.mxu0 0
    %5092 = vmatpush1.bf16.xpose.msra.mxu0 0
    %5093 = vmatprep.subr.bf16.mxu0 0
    %5094 = vmatpush1.bf16.xpose.msra.mxu0 0
    %5095 = vmatprep.subr.bf16.mxu0 0
    %5096 = vmatpush1.bf16.xpose.msra.mxu0 0
    %5097 = vmatprep.subr.bf16.mxu0 0
    %5098 = vmatpush1.bf16.xpose.msra.mxu0 0
    %5099 = vmatprep.subr.bf16.mxu0 0
    %5100 = vmatpush1.bf16.xpose.msra.mxu0 0
    %5101 = vmatprep.subr.bf16.mxu0 0
    %5102 = vmatpush1.bf16.xpose.msra.mxu0 0
    %5103 = vmatprep.mubr.bf16.mxu0 0
    %5104 = vmatmul.mubr.bf16.gmra.mrb[0].mxu0 %v5057
    %v5105 = vpop.f32.mrb[0].mxu0
    %v5106 = vadd.f32 %v5035, %v5105
    %v5107 = vpop.f32.mrb[0].mxu0
    %v5108 = vpop.f32.mrb[0].mxu0
    %v5109 = vadd.f32 %v5035, %v5108
    %v5110 = vpop.f32.mrb[0].mxu0
    %5111 = vdwg.mxu0
    %v5112 = vmax.f32 %v5106, 0.0
    %v5113 = vmax.f32 %v5109, 0.0
    %v5114 = vpack.c.bf16 %v5113, %v5112
    %s5115 = scalar_lea.vmem %s5, 16
    %v5116 = vld [vmem:[%s5115] sm:$0xf]
    %v5117 = vld [vmem:[%s5115 + $0x4] sm:$0xf]
    %v5118 = vld [vmem:[%s5115 + $0x8] sm:$0xf]
    %v5119 = vld [vmem:[%s5115 + $0xc] sm:$0xf]
    %v5124 = vunpack.c.l.b16 %v5116
    %v5125 = vunpack.c.l.b16 %v5117
    %v5126 = vunpack.c.l.b16 %v5118
    %v5127 = vunpack.c.l.b16 %v5119
    %v5128 = vpack.c.b16 %v5125, %v5124
    %v5129 = vpack.c.b16 %v5127, %v5126
    %v5131 = vsel %vm2566, %v5114, 0
    %v5134 = vsel %vm2566, %v5128, 0
    %v5137 = vsel %vm2566, %v5129, 0
    %5139 = vmatprep.subr.bf16.mxu0 0
    %5140 = vmatpush1.bf16.xpose.msra.mxu0 %v5134
    %5141 = vmatprep.subr.bf16.mxu0 0
    %5142 = vmatpush1.bf16.xpose.msra.mxu0 %v5137
    %5143 = vmatprep.subr.bf16.mxu0 0
    %5144 = vmatpush1.bf16.xpose.msra.mxu0 0
    %5145 = vmatprep.subr.bf16.mxu0 0
    %5146 = vmatpush1.bf16.xpose.msra.mxu0 0
    %5147 = vmatprep.subr.bf16.mxu0 0
    %5148 = vmatpush1.bf16.xpose.msra.mxu0 0
    %5149 = vmatprep.subr.bf16.mxu0 0
    %5150 = vmatpush1.bf16.xpose.msra.mxu0 0
    %5151 = vmatprep.subr.bf16.mxu0 0
    %5152 = vmatpush1.bf16.xpose.msra.mxu0 0
    %5153 = vmatprep.subr.bf16.mxu0 0
    %5154 = vmatpush1.bf16.xpose.msra.mxu0 0
    %5155 = vmatprep.subr.bf16.mxu0 0
    %5156 = vmatpush1.bf16.xpose.msra.mxu0 0
    %5157 = vmatprep.subr.bf16.mxu0 0
    %5158 = vmatpush1.bf16.xpose.msra.mxu0 0
    %5159 = vmatprep.subr.bf16.mxu0 0
    %5160 = vmatpush1.bf16.xpose.msra.mxu0 0
    %5161 = vmatprep.subr.bf16.mxu0 0
    %5162 = vmatpush1.bf16.xpose.msra.mxu0 0
    %5163 = vmatprep.subr.bf16.mxu0 0
    %5164 = vmatpush1.bf16.xpose.msra.mxu0 0
    %5165 = vmatprep.subr.bf16.mxu0 0
    %5166 = vmatpush1.bf16.xpose.msra.mxu0 0
    %5167 = vmatprep.subr.bf16.mxu0 0
    %5168 = vmatpush1.bf16.xpose.msra.mxu0 0
    %5169 = vmatprep.subr.bf16.mxu0 0
    %5170 = vmatpush1.bf16.xpose.msra.mxu0 0
    %5171 = vmatprep.mubr.bf16.mxu0 0
    %5172 = vmatmul.mubr.bf16.gmra.mrb[0].mxu0 %v5131
    %v5173 = vpop.f32.mrb[0].mxu0
    %v5174 = vadd.f32 0.0, %v5173
    %v5175 = vpop.f32.mrb[0].mxu0
    %v5176 = vpop.f32.mrb[0].mxu0
    %v5177 = vadd.f32 0.0, %v5176
    %v5178 = vpop.f32.mrb[0].mxu0
    %5179 = vdwg.mxu0
    %v5180 = vadd.f32 %v4982, %v5174
    %v5181 = vadd.f32 %v4983, %v5177
    %v5182 = vlaneseq
    %v5183 = vshrl.u32 %v5182, 7
    %v5184 = vsub.s32 0, %v5183
    %v5185 = vrot.slane %v2627, %v5184
    %v5186 = vadd.f32 %v5180, %v5185
    %v5187 = vadd.f32 %v5181, %v5185
    %s5188 = scalar_lea.vmem %s6, 32
    %v5189 = vld [vmem:[%s5188] sm:$0xff]
    %v5190 = vsel %vm50, %v5186, 0.0
    %5191 = vadd.xlane.f32.xlu0 %v5190
    %v5192 = vpop.xlane.xlu0 %5191
    %v5193 = vsel %vm50, %v5187, 0.0
    %5194 = vadd.xlane.f32.xlu0 %v5193
    %v5195 = vpop.xlane.xlu0 %5194
    %v5196 = vmul.f32 %v5192, %v57
    %v5197 = vmul.f32 %v5195, %v57
    %v5198 = vsub.f32 %v5186, %v5196
    %v5199 = vsub.f32 %v5187, %v5197
    %v5200 = vmul.f32 %v5198, %v5198
    %v5201 = vmul.f32 %v5199, %v5199
    %v5202 = vsel %vm50, %v5200, 0.0
    %5203 = vadd.xlane.f32.xlu0 %v5202
    %v5204 = vpop.xlane.xlu0 %5203
    %v5205 = vsel %vm50, %v5201, 0.0
    %5206 = vadd.xlane.f32.xlu0 %v5205
    %v5207 = vpop.xlane.xlu0 %5206
    %v5208 = vmul.f32 %v5204, %v57
    %v5209 = vmul.f32 %v5207, %v57
    %v5210 = vadd.f32 %v5208, 1e-05
    %v5211 = vadd.f32 %v5209, 1e-05
    %v5212 = vrsqrt.pop %v5210
    %v5213 = vrsqrt.pop %v5211
    %v5214 = vmul.f32 %v5198, %v5212
    %v5215 = vmul.f32 %v5199, %v5213
    %v5216 = vlaneseq
    %v5217 = vshrl.u32 %v5216, 7
    %v5218 = vsub.s32 0, %v5217
    %v5219 = vrot.slane %v5189, %v5218
    %v5220 = vmul.f32 %v5214, %v5219
    %v5221 = vmul.f32 %v5215, %v5219
    %v5222 = vlaneseq
    %v5223 = vshrl.u32 %v5222, 7
    %v5224 = vsub.s32 1, %v5223
    %v5225 = vrot.slane %v5189, %v5224
    %v5226 = vadd.f32 %v5220, %v5225
    %v5227 = vadd.f32 %v5221, %v5225
    %v5228 = vpack.c.bf16 %v5226, %v5226
    %v5229 = vpack.c.bf16 %v5227, %v5227
    %vm5230 = vcmask 257024
    %5231 = vst.msk [vmem:[#allocation5] sm:$0xf] %vm5230, %v5228
    %5232 = vst.msk [vmem:[#allocation5 + $0x4] sm:$0xf] %vm5230, %v5229
    // Predicated region
    $region34: #{tpu_custom_call.1} parent=1 // pred_check
      _
    $region35: #{tpu_custom_call.1} parent=1 // pred_check_branch
      %5234 = sbr.rel (0) target = $region37
    $region36: #{tpu_custom_call.1} parent=1 // pred_region
      %s5236 = ssub.s32 128, 128
      %5237 = vsyncadd [#allocation4], %s5236
      %s5238 = sshll.u32 [#allocation5], 4
      %s5239 = int_to_ptr.vmem [resolvable:$true] %s5238
      %5244 = dma.vmem_to_hbm [thread:$0]  %s5239, 128, %s7, [#allocation4], 64, 64, 4
    $region37: #{tpu_custom_call.1} parent=1 // pred_fallthru
      _
    // Predicated region
    $region38: #{tpu_custom_call.1} parent=1 // pred_check
      _
    $region39: #{tpu_custom_call.1} parent=1 // pred_check_branch
      %5246 = sbr.rel (0) target = $region41
    $region40: #{tpu_custom_call.1} parent=1 // pred_region
      %5247 = dma.done [#allocation4], 128
    $region41: #{tpu_custom_call.1} parent=1 // pred_fallthru
      _
    %5248 = vsyncpa [#allocation3], 1
    %5249 = vsyncpa [#allocation4], 1

</llo_original>
